<compile_context>
chip_gen: v7x
topology: tpu7x:2x2x1
jax: 0.10.0
libtpu: 0.0.40
codegen_flags: <defaults>
</compile_context>

<pallas_src>
import jax
import jax.numpy as jnp
import numpy as np
from jax import lax
from jax.experimental import pallas as pl
from jax.experimental.pallas import tpu as pltpu

# Small synthetic Llama config (consistent with the module's forward semantics).
B, S, H = 2, 8, 32          # batch, seq_len, hidden_size
NH, HD = 4, 8               # num_heads, head_dim  (NH * HD == H)
I = 64                      # intermediate (MLP) size
NUM_LAYERS = 2              # layers[layer_idx_start:layer_idx_end]
EPS = 1e-6                  # RMSNorm epsilon
NEG_INF = -1e30

assert NH * HD == H


# ----------------------------- shared math helpers -----------------------------
def _rmsnorm(x, w):
    var = jnp.mean(x * x, axis=-1, keepdims=True)
    return x * lax.rsqrt(var + EPS) * w


def _rotate_half(x):  # used only by the pure-JAX reference
    d = x.shape[-1]
    return jnp.concatenate([-x[:, d // 2:], x[:, : d // 2]], axis=-1)


# ----------------------------- Pallas kernel: one (batch, layer) step -----------------------------
def llama_stack_kernel(hid_ref, cos_ref, sin_ref,
                       wq_ref, wqr_ref, wk_ref, wkr_ref, wv_ref, wo_ref,
                       wg_ref, wu_ref, wd_ref, ln1_ref, ln2_ref,
                       out_ref):
    layer = pl.program_id(1)

    # Residual stream is resident in the output block across layer steps.
    @pl.when(layer == 0)
    def _():
        out_ref[...] = hid_ref[...]

    x = out_ref[...]              # (S, H) f32 residual stream
    cos = cos_ref[...]            # (S, HD) f32
    sin = sin_ref[...]            # (S, HD) f32
    seq = x.shape[0]

    # Causal mask built in-kernel (no (T, T) HBM table / VMEM residency).
    row = lax.broadcasted_iota(jnp.int32, (seq, seq), 0)
    col = lax.broadcasted_iota(jnp.int32, (seq, seq), 1)
    causal = row >= col           # every row keeps its diagonal -> softmax never NaNs

    # ---------------- self attention ----------------
    xn = _rmsnorm(x, ln1_ref[...]).astype(jnp.bfloat16)   # bf16 operand for the MXU

    attn = jnp.zeros_like(x)      # (S, H) f32 accumulator for the head-merged output proj
    for h in range(NH):           # static unroll; every op below is a plain 2-D MXU matmul
        # RoPE folded into precomputed weights: rotate_half is a matmul with a signed
        # permutation R, so q = (xn@wq_h)*cos + (xn@(wq@R)_h)*sin.  1/sqrt(HD) is
        # pre-folded into wq / wq@R.
        q = (jnp.dot(xn, wq_ref[h], preferred_element_type=jnp.float32) * cos
             + jnp.dot(xn, wqr_ref[h], preferred_element_type=jnp.float32) * sin)   # (S, HD)
        k = (jnp.dot(xn, wk_ref[h], preferred_element_type=jnp.float32) * cos
             + jnp.dot(xn, wkr_ref[h], preferred_element_type=jnp.float32) * sin)   # (S, HD)
        v = jnp.dot(xn, wv_ref[h], preferred_element_type=jnp.float32)              # (S, HD)

        # q @ k^T as a canonical "NT" dot_general (no in-kernel transpose / relayout).
        s = lax.dot_general(q.astype(jnp.bfloat16), k.astype(jnp.bfloat16),
                            (((1,), (1,)), ((), ())),
                            preferred_element_type=jnp.float32)                     # (S, S)
        s = jnp.where(causal, s, NEG_INF)
        s = s - jnp.max(s, axis=-1, keepdims=True)
        p = jnp.exp(s)
        p = p * pl.reciprocal(jnp.sum(p, axis=-1, keepdims=True), approx=True)

        o = jnp.dot(p.astype(jnp.bfloat16), v.astype(jnp.bfloat16),
                    preferred_element_type=jnp.float32)                             # (S, HD)
        # Head merge folded into the per-head slice of the output projection
        # (no jnp.concatenate over heads).
        attn = attn + jnp.dot(o.astype(jnp.bfloat16), wo_ref[h],
                              preferred_element_type=jnp.float32)                   # (S, H)

    x = x + attn                                                                     # residual 1

    # ---------------- MLP (SwiGLU) ----------------
    xn2 = _rmsnorm(x, ln2_ref[...]).astype(jnp.bfloat16)
    g = jnp.dot(xn2, wg_ref[...], preferred_element_type=jnp.float32)                # gate_proj
    u = jnp.dot(xn2, wu_ref[...], preferred_element_type=jnp.float32)                # up_proj
    mlp = jnp.dot((g * jax.nn.sigmoid(g) * u).astype(jnp.bfloat16), wd_ref[...],
                  preferred_element_type=jnp.float32)                                # down_proj

    out_ref[...] = x + mlp                                                           # residual 2


# ----------------------------- host-side glue (precomputed tables) -----------------------------
def _rope_tables(seq_len, head_dim):
    inv_freq = 1.0 / (10000.0 ** (jnp.arange(0, head_dim, 2, dtype=jnp.float32) / head_dim))
    pos = jnp.arange(seq_len, dtype=jnp.float32)
    freqs = pos[:, None] * inv_freq[None, :]
    emb = jnp.concatenate([freqs, freqs], axis=-1)
    return jnp.cos(emb), jnp.sin(emb)          # (S, HD) each


def _rotate_half_matrix():
    # Signed per-head permutation R with (x @ R) == rotate_half applied per head.
    r = np.zeros((H, H), np.float32)
    for h in range(NH):
        base = h * HD
        for i in range(HD // 2):
            r[base + i + HD // 2, base + i] = -1.0
            r[base + i, base + i + HD // 2] = 1.0
    return jnp.asarray(r)


def _split_out_heads(w):   # (H, NH*HD) -> (NH, H, HD): columns of head h
    return w.reshape(H, NH, HD).transpose(1, 0, 2)


def _split_in_heads(w):    # (NH*HD, H) -> (NH, HD, H): rows of head h
    return w.reshape(NH, HD, H)


def llama_layers_forward(hidden_states, input_ids, params):
    """Equivalent of LlamaLayers_.forward(hidden_states, input_ids)."""
    batch, seq = input_ids.shape
    num_layers = len(params)
    scale = 1.0 / (HD ** 0.5)

    rot = _rotate_half_matrix()
    cos, sin = _rope_tables(seq, HD)           # (S, HD) each; broadcast over heads in-kernel

    # Per-layer weights: stack with a leading layer axis (grid prefetches layer l+1),
    # pre-split per head, pre-fold RoPE rotate-half + 1/sqrt(HD), cast to bf16 for the MXU.
    bf = jnp.bfloat16
    wq_all = jnp.stack([_split_out_heads(p[0] * scale) for p in params]).astype(bf)        # (L,NH,H,HD)
    wqr_all = jnp.stack([_split_out_heads((p[0] @ rot) * scale) for p in params]).astype(bf)
    wk_all = jnp.stack([_split_out_heads(p[1]) for p in params]).astype(bf)
    wkr_all = jnp.stack([_split_out_heads(p[1] @ rot) for p in params]).astype(bf)
    wv_all = jnp.stack([_split_out_heads(p[2]) for p in params]).astype(bf)
    wo_all = jnp.stack([_split_in_heads(p[3]) for p in params]).astype(bf)                  # (L,NH,HD,H)
    wg_all = jnp.stack([p[4] for p in params]).astype(bf)                                   # (L,H,I)
    wu_all = jnp.stack([p[5] for p in params]).astype(bf)                                   # (L,H,I)
    wd_all = jnp.stack([p[6] for p in params]).astype(bf)                                   # (L,I,H)
    ln1_all = jnp.stack([p[7] for p in params])                                             # (L,1,H) f32
    ln2_all = jnp.stack([p[8] for p in params])                                             # (L,1,H) f32

    def w_spec(shape):
        zeros = (0,) * len(shape)
        return pl.BlockSpec((None,) + shape, lambda b, l: (l,) + zeros)

    out3d = pl.pallas_call(
        llama_stack_kernel,
        out_shape=jax.ShapeDtypeStruct((batch, seq, H), jnp.float32),
        grid=(batch, num_layers),
        in_specs=[
            pl.BlockSpec((None, seq, H), lambda b, l: (b, 0, 0)),   # hidden (read at layer 0)
            pl.BlockSpec((seq, HD), lambda b, l: (0, 0)),           # cos table
            pl.BlockSpec((seq, HD), lambda b, l: (0, 0)),           # sin table
            w_spec((NH, H, HD)),                                    # wq   (scaled, per head)
            w_spec((NH, H, HD)),                                    # wq@R (scaled, per head)
            w_spec((NH, H, HD)),                                    # wk
            w_spec((NH, H, HD)),                                    # wk@R
            w_spec((NH, H, HD)),                                    # wv
            w_spec((NH, HD, H)),                                    # wo   (per-head rows)
            w_spec((H, I)),                                         # w_gate
            w_spec((H, I)),                                         # w_up
            w_spec((I, H)),                                         # w_down
            w_spec((1, H)),                                         # input_layernorm weight
            w_spec((1, H)),                                         # post_attn_layernorm weight
        ],
        # Output block index is constant across the (innermost) layer axis -> the residual
        # stream stays resident in VMEM for all layers of one sequence.
        out_specs=pl.BlockSpec((None, seq, H), lambda b, l: (b, 0, 0)),
        compiler_params=pltpu.CompilerParams(
            dimension_semantics=("parallel", "arbitrary")),
    )(hidden_states, cos, sin,
      wq_all, wqr_all, wk_all, wkr_all, wv_all, wo_all,
      wg_all, wu_all, wd_all, ln1_all, ln2_all)

    # input_ids.clone() -> JAX arrays are immutable; returning input_ids is equivalent.
    return out3d, input_ids


# ----------------------------- pure-JAX reference (for verification) -----------------------------
def _layer_ref(x_bsh, cos, sin, p):
    wq, wk, wv, wo, wg, wu, wd, ln1, ln2 = p

    def one(x):
        xn = _rmsnorm(x, ln1)
        q = xn @ wq
        k = xn @ wk
        v = xn @ wv
        rows = np.arange(S)[:, None]
        cols = np.arange(S)[None, :]
        keep = jnp.asarray(rows >= cols)
        scale = 1.0 / (HD ** 0.5)
        attn_proj = jnp.zeros((S, H), jnp.float32)
        for h in range(NH):
            sl = slice(h * HD, (h + 1) * HD)
            qh = q[:, sl] * cos + _rotate_half(q[:, sl]) * sin
            kh = k[:, sl] * cos + _rotate_half(k[:, sl]) * sin
            s = (qh @ kh.T) * scale
            s = jnp.where(keep, s, NEG_INF)
            p_ = jax.nn.softmax(s, axis=-1)
            attn_proj = attn_proj + (p_ @ v[:, sl]) @ wo[sl, :]
        x = x + attn_proj
        xn2 = _rmsnorm(x, ln2)
        g = xn2 @ wg
        u = xn2 @ wu
        return x + (g * jax.nn.sigmoid(g) * u) @ wd

    return jax.vmap(one)(x_bsh)


# ----------------------------- deterministic parameter init -----------------------------
def init_params(key):
    params = []
    scale = 0.02
    for l in range(NUM_LAYERS):
        ks = jax.random.split(jax.random.fold_in(key, l), 7)
        wq = jax.random.normal(ks[0], (H, H), jnp.float32) * scale
        wk = jax.random.normal(ks[1], (H, H), jnp.float32) * scale
        wv = jax.random.normal(ks[2], (H, H), jnp.float32) * scale
        wo = jax.random.normal(ks[3], (H, H), jnp.float32) * scale
        wg = jax.random.normal(ks[4], (H, I), jnp.float32) * scale
        wu = jax.random.normal(ks[5], (H, I), jnp.float32) * scale
        wd = jax.random.normal(ks[6], (I, H), jnp.float32) * scale
        ln1 = jnp.ones((1, H), jnp.float32)
        ln2 = jnp.ones((1, H), jnp.float32)
        params.append((wq, wk, wv, wo, wg, wu, wd, ln1, ln2))
    return params


if __name__ == "__main__":
    key = jax.random.PRNGKey(0)
    k1, k2, k3 = jax.random.split(key, 3)
    hidden_states = jax.random.normal(k1, (B, S, H), jnp.float32)
    input_ids = jax.random.randint(k2, (B, S), 0, 1000, dtype=jnp.int32)
    params = init_params(k3)

    fwd = jax.jit(llama_layers_forward)
    out_h, out_ids = fwd(hidden_states, input_ids, params)
    out_h = jax.block_until_ready(out_h)
    out_ids = jax.block_until_ready(out_ids)

    # verify against pure-JAX f32 reference (tolerance loosened for bf16 MXU operands
    # with f32 accumulation + approx-reciprocal softmax denominator)
    cos, sin = _rope_tables(S, HD)
    ref = hidden_states
    for lp in params:
        ref = _layer_ref(ref, cos, sin, lp)
    np.testing.assert_allclose(np.asarray(out_h), np.asarray(ref), rtol=2e-2, atol=2e-2)
    assert out_ids.shape == input_ids.shape and out_ids.dtype == input_ids.dtype

    print("KERNEL_OK")
</pallas_src>

<mosaic_0001>
module attributes {stable_mosaic.version = 11 : i64} {
  func.func @llama_stack_kernel(%arg0: i32, %arg1: i32, %arg2: memref<1x8x32xf32, #tpu.memory_space<vmem>>, %arg3: memref<8x8xf32, #tpu.memory_space<vmem>>, %arg4: memref<8x8xf32, #tpu.memory_space<vmem>>, %arg5: memref<1x4x32x8xbf16, #tpu.memory_space<vmem>>, %arg6: memref<1x4x32x8xbf16, #tpu.memory_space<vmem>>, %arg7: memref<1x4x32x8xbf16, #tpu.memory_space<vmem>>, %arg8: memref<1x4x32x8xbf16, #tpu.memory_space<vmem>>, %arg9: memref<1x4x32x8xbf16, #tpu.memory_space<vmem>>, %arg10: memref<1x4x8x32xbf16, #tpu.memory_space<vmem>>, %arg11: memref<1x32x64xbf16, #tpu.memory_space<vmem>>, %arg12: memref<1x32x64xbf16, #tpu.memory_space<vmem>>, %arg13: memref<1x64x32xbf16, #tpu.memory_space<vmem>>, %arg14: memref<1x1x32xf32, #tpu.memory_space<vmem>>, %arg15: memref<1x1x32xf32, #tpu.memory_space<vmem>>, %arg16: memref<1x8x32xf32, #tpu.memory_space<vmem>>) attributes {dimension_semantics = [#tpu.dimension_semantics<parallel>, #tpu.dimension_semantics<arbitrary>], iteration_bounds = array<i64: 2, 2>, scalar_prefetch = 0 : i64, scratch_operands = 0 : i64, tpu.core_type = #tpu.core_type<tc>, window_params = [{transform_indices = @transform_0, window_bounds = array<i64: 1, 8, 32>}, {pipeline_mode = #tpu.pipeline_mode<synchronous>, transform_indices = @transform_1, window_bounds = array<i64: 8, 8>}, {pipeline_mode = #tpu.pipeline_mode<synchronous>, transform_indices = @transform_2, window_bounds = array<i64: 8, 8>}, {transform_indices = @transform_3, window_bounds = array<i64: 1, 4, 32, 8>}, {transform_indices = @transform_4, window_bounds = array<i64: 1, 4, 32, 8>}, {transform_indices = @transform_5, window_bounds = array<i64: 1, 4, 32, 8>}, {transform_indices = @transform_6, window_bounds = array<i64: 1, 4, 32, 8>}, {transform_indices = @transform_7, window_bounds = array<i64: 1, 4, 32, 8>}, {transform_indices = @transform_8, window_bounds = array<i64: 1, 4, 8, 32>}, {transform_indices = @transform_9, window_bounds = array<i64: 1, 32, 64>}, {transform_indices = @transform_10, window_bounds = array<i64: 1, 32, 64>}, {transform_indices = @transform_11, window_bounds = array<i64: 1, 64, 32>}, {transform_indices = @transform_12, window_bounds = array<i64: 1, 1, 32>}, {transform_indices = @transform_13, window_bounds = array<i64: 1, 1, 32>}, {transform_indices = @transform_14, window_bounds = array<i64: 1, 8, 32>}]} {
    %c0_i32 = arith.constant 0 : i32
    %0 = arith.cmpi eq, %arg1, %c0_i32 : i32
    %1 = arith.extui %0 : i1 to i32
    %c0_i32_0 = arith.constant 0 : i32
    %2 = arith.cmpi ne, %1, %c0_i32_0 : i32
    scf.if %2 {
      %c0_172 = arith.constant 0 : index
      %c0_173 = arith.constant 0 : index
      %c0_174 = arith.constant 0 : index
      %239 = vector.load %arg2[%c0_172, %c0_173, %c0_174] : memref<1x8x32xf32, #tpu.memory_space<vmem>>, vector<1x8x32xf32>
      %240 = vector.shape_cast %239 : vector<1x8x32xf32> to vector<8x32xf32>
      %c0_175 = arith.constant 0 : index
      %c0_176 = arith.constant 0 : index
      %c0_177 = arith.constant 0 : index
      %241 = vector.load %arg16[%c0_175, %c0_176, %c0_177] : memref<1x8x32xf32, #tpu.memory_space<vmem>>, vector<1x8x32xf32>
      %242 = vector.shape_cast %241 : vector<1x8x32xf32> to vector<8x32xf32>
      %243 = vector.shape_cast %240 : vector<8x32xf32> to vector<1x8x32xf32>
      tpu.vector_store %arg16[%c0_175, %c0_176, %c0_177], %243 {strides = array<i32>} : memref<1x8x32xf32, #tpu.memory_space<vmem>>, vector<1x8x32xf32>,
    } else {
    }
    %c0 = arith.constant 0 : index
    %c0_1 = arith.constant 0 : index
    %c0_2 = arith.constant 0 : index
    %3 = vector.load %arg16[%c0, %c0_1, %c0_2] : memref<1x8x32xf32, #tpu.memory_space<vmem>>, vector<1x8x32xf32>
    %4 = vector.shape_cast %3 : vector<1x8x32xf32> to vector<8x32xf32>
    %c0_3 = arith.constant 0 : index
    %c0_4 = arith.constant 0 : index
    %5 = vector.load %arg3[%c0_3, %c0_4] : memref<8x8xf32, #tpu.memory_space<vmem>>, vector<8x8xf32>
    %c0_5 = arith.constant 0 : index
    %c0_6 = arith.constant 0 : index
    %6 = vector.load %arg4[%c0_5, %c0_6] : memref<8x8xf32, #tpu.memory_space<vmem>>, vector<8x8xf32>
    %7 = tpu.iota {dimensions = array<i32: 0>} : vector<8x8xi32>
    %8 = tpu.iota {dimensions = array<i32: 1>} : vector<8x8xi32>
    %9 = arith.cmpi sge, %7, %8 : vector<8x8xi32>
    %c0_7 = arith.constant 0 : index
    %c0_8 = arith.constant 0 : index
    %c0_9 = arith.constant 0 : index
    %10 = vector.load %arg14[%c0_7, %c0_8, %c0_9] : memref<1x1x32xf32, #tpu.memory_space<vmem>>, vector<1x1x32xf32>
    %11 = vector.shape_cast %10 : vector<1x1x32xf32> to vector<1x32xf32>
    %12 = arith.mulf %4, %4 : vector<8x32xf32>
    %cst = arith.constant dense<0.000000e+00> : vector<8xf32>
    %13 = vector.multi_reduction <add>, %12, %cst [1] : vector<8x32xf32> to vector<8xf32>
    %14 = vector.shape_cast %13 : vector<8xf32> to vector<8x1xf32>
    %cst_10 = arith.constant 3.200000e+01 : f32
    %15 = vector.broadcast %cst_10 : f32 to vector<8x1xf32>
    %16 = arith.divf %14, %15 : vector<8x1xf32>
    %cst_11 = arith.constant 9.99999997E-7 : f32
    %17 = vector.broadcast %cst_11 : f32 to vector<8x1xf32>
    %18 = arith.addf %16, %17 : vector<8x1xf32>
    %19 = math.rsqrt %18 : vector<8x1xf32>
    %20 = vector.broadcast %19 : vector<8x1xf32> to vector<8x32xf32>
    %21 = arith.mulf %4, %20 : vector<8x32xf32>
    %22 = vector.broadcast %11 : vector<1x32xf32> to vector<8x32xf32>
    %23 = arith.mulf %21, %22 : vector<8x32xf32>
    %24 = arith.truncf %23 : vector<8x32xf32> to vector<8x32xbf16>
    %cst_12 = arith.constant 0.000000e+00 : f32
    %25 = vector.broadcast %cst_12 : f32 to vector<8x32xf32>
    %c0_13 = arith.constant 0 : index
    %c0_14 = arith.constant 0 : index
    %c0_15 = arith.constant 0 : index
    %c0_16 = arith.constant 0 : index
    %26 = vector.load %arg5[%c0_13, %c0_14, %c0_15, %c0_16] : memref<1x4x32x8xbf16, #tpu.memory_space<vmem>>, vector<1x1x32x8xbf16>
    %27 = vector.shape_cast %26 : vector<1x1x32x8xbf16> to vector<32x8xbf16>
    %cst_17 = arith.constant dense<0.000000e+00> : vector<8x8xf32>
    %28 = tpu.matmul %24, %27, %cst_17 {dimension_numbers = #tpu.dot_dimension_numbers<[1], [0], [0], [1], [0, 0, 1, 1], [], []>} : vector<8x32xbf16>, vector<32x8xbf16>, vector<8x8xf32> -> vector<8x8xf32>
    %29 = arith.mulf %28, %5 : vector<8x8xf32>
    %c0_18 = arith.constant 0 : index
    %c0_19 = arith.constant 0 : index
    %c0_20 = arith.constant 0 : index
    %c0_21 = arith.constant 0 : index
    %30 = vector.load %arg6[%c0_18, %c0_19, %c0_20, %c0_21] : memref<1x4x32x8xbf16, #tpu.memory_space<vmem>>, vector<1x1x32x8xbf16>
    %31 = vector.shape_cast %30 : vector<1x1x32x8xbf16> to vector<32x8xbf16>
    %cst_22 = arith.constant dense<0.000000e+00> : vector<8x8xf32>
    %32 = tpu.matmul %24, %31, %cst_22 {dimension_numbers = #tpu.dot_dimension_numbers<[1], [0], [0], [1], [0, 0, 1, 1], [], []>} : vector<8x32xbf16>, vector<32x8xbf16>, vector<8x8xf32> -> vector<8x8xf32>
    %33 = arith.mulf %32, %6 : vector<8x8xf32>
    %34 = arith.addf %29, %33 : vector<8x8xf32>
    %c0_23 = arith.constant 0 : index
    %c0_24 = arith.constant 0 : index
    %c0_25 = arith.constant 0 : index
    %c0_26 = arith.constant 0 : index
    %35 = vector.load %arg7[%c0_23, %c0_24, %c0_25, %c0_26] : memref<1x4x32x8xbf16, #tpu.memory_space<vmem>>, vector<1x1x32x8xbf16>
    %36 = vector.shape_cast %35 : vector<1x1x32x8xbf16> to vector<32x8xbf16>
    %cst_27 = arith.constant dense<0.000000e+00> : vector<8x8xf32>
    %37 = tpu.matmul %24, %36, %cst_27 {dimension_numbers = #tpu.dot_dimension_numbers<[1], [0], [0], [1], [0, 0, 1, 1], [], []>} : vector<8x32xbf16>, vector<32x8xbf16>, vector<8x8xf32> -> vector<8x8xf32>
    %38 = arith.mulf %37, %5 : vector<8x8xf32>
    %c0_28 = arith.constant 0 : index
    %c0_29 = arith.constant 0 : index
    %c0_30 = arith.constant 0 : index
    %c0_31 = arith.constant 0 : index
    %39 = vector.load %arg8[%c0_28, %c0_29, %c0_30, %c0_31] : memref<1x4x32x8xbf16, #tpu.memory_space<vmem>>, vector<1x1x32x8xbf16>
    %40 = vector.shape_cast %39 : vector<1x1x32x8xbf16> to vector<32x8xbf16>
    %cst_32 = arith.constant dense<0.000000e+00> : vector<8x8xf32>
    %41 = tpu.matmul %24, %40, %cst_32 {dimension_numbers = #tpu.dot_dimension_numbers<[1], [0], [0], [1], [0, 0, 1, 1], [], []>} : vector<8x32xbf16>, vector<32x8xbf16>, vector<8x8xf32> -> vector<8x8xf32>
    %42 = arith.mulf %41, %6 : vector<8x8xf32>
    %43 = arith.addf %38, %42 : vector<8x8xf32>
    %c0_33 = arith.constant 0 : index
    %c0_34 = arith.constant 0 : index
    %c0_35 = arith.constant 0 : index
    %c0_36 = arith.constant 0 : index
    %44 = vector.load %arg9[%c0_33, %c0_34, %c0_35, %c0_36] : memref<1x4x32x8xbf16, #tpu.memory_space<vmem>>, vector<1x1x32x8xbf16>
    %45 = vector.shape_cast %44 : vector<1x1x32x8xbf16> to vector<32x8xbf16>
    %cst_37 = arith.constant dense<0.000000e+00> : vector<8x8xf32>
    %46 = tpu.matmul %24, %45, %cst_37 {dimension_numbers = #tpu.dot_dimension_numbers<[1], [0], [0], [1], [0, 0, 1, 1], [], []>} : vector<8x32xbf16>, vector<32x8xbf16>, vector<8x8xf32> -> vector<8x8xf32>
    %47 = arith.truncf %34 : vector<8x8xf32> to vector<8x8xbf16>
    %48 = arith.truncf %43 : vector<8x8xf32> to vector<8x8xbf16>
    %cst_38 = arith.constant dense<0.000000e+00> : vector<8x8xf32>
    %49 = tpu.matmul %47, %48, %cst_38 {dimension_numbers = #tpu.dot_dimension_numbers<[1], [1], [0], [0], [0, 0, 1, 0], [], []>} : vector<8x8xbf16>, vector<8x8xbf16>, vector<8x8xf32> -> vector<8x8xf32>
    %cst_39 = arith.constant -1.000000e+30 : f32
    %50 = vector.broadcast %cst_39 : f32 to vector<8x8xf32>
    %51 = arith.select %9, %49, %50 : vector<8x8xi1>, vector<8x8xf32>
    %cst_40 = arith.constant dense<0xFF800000> : vector<8xf32>
    %52 = vector.multi_reduction <maximumf>, %51, %cst_40 [1] : vector<8x8xf32> to vector<8xf32>
    %53 = vector.shape_cast %52 : vector<8xf32> to vector<8x1xf32>
    %54 = vector.broadcast %53 : vector<8x1xf32> to vector<8x8xf32>
    %55 = arith.subf %51, %54 : vector<8x8xf32>
    %56 = math.exp %55 : vector<8x8xf32>
    %cst_41 = arith.constant dense<0.000000e+00> : vector<8xf32>
    %57 = vector.multi_reduction <add>, %56, %cst_41 [1] : vector<8x8xf32> to vector<8xf32>
    %58 = vector.shape_cast %57 : vector<8xf32> to vector<8x1xf32>
    %59 = tpu.reciprocal %58 {approx = true} : vector<8x1xf32> -> vector<8x1xf32>
    %60 = vector.broadcast %59 : vector<8x1xf32> to vector<8x8xf32>
    %61 = arith.mulf %56, %60 : vector<8x8xf32>
    %62 = arith.truncf %61 : vector<8x8xf32> to vector<8x8xbf16>
    %63 = arith.truncf %46 : vector<8x8xf32> to vector<8x8xbf16>
    %cst_42 = arith.constant dense<0.000000e+00> : vector<8x8xf32>
    %64 = tpu.matmul %62, %63, %cst_42 {dimension_numbers = #tpu.dot_dimension_numbers<[1], [0], [0], [1], [0, 0, 1, 1], [], []>} : vector<8x8xbf16>, vector<8x8xbf16>, vector<8x8xf32> -> vector<8x8xf32>
    %65 = arith.truncf %64 : vector<8x8xf32> to vector<8x8xbf16>
    %c0_43 = arith.constant 0 : index
    %c0_44 = arith.constant 0 : index
    %c0_45 = arith.constant 0 : index
    %c0_46 = arith.constant 0 : index
    %66 = vector.load %arg10[%c0_43, %c0_44, %c0_45, %c0_46] : memref<1x4x8x32xbf16, #tpu.memory_space<vmem>>, vector<1x1x8x32xbf16>
    %67 = vector.shape_cast %66 : vector<1x1x8x32xbf16> to vector<8x32xbf16>
    %cst_47 = arith.constant dense<0.000000e+00> : vector<8x32xf32>
    %68 = tpu.matmul %65, %67, %cst_47 {dimension_numbers = #tpu.dot_dimension_numbers<[1], [0], [0], [1], [0, 0, 1, 1], [], []>} : vector<8x8xbf16>, vector<8x32xbf16>, vector<8x32xf32> -> vector<8x32xf32>
    %69 = arith.addf %25, %68 : vector<8x32xf32>
    %c0_48 = arith.constant 0 : index
    %c1 = arith.constant 1 : index
    %c0_49 = arith.constant 0 : index
    %c0_50 = arith.constant 0 : index
    %70 = vector.load %arg5[%c0_48, %c1, %c0_49, %c0_50] : memref<1x4x32x8xbf16, #tpu.memory_space<vmem>>, vector<1x1x32x8xbf16>
    %71 = vector.shape_cast %70 : vector<1x1x32x8xbf16> to vector<32x8xbf16>
    %cst_51 = arith.constant dense<0.000000e+00> : vector<8x8xf32>
    %72 = tpu.matmul %24, %71, %cst_51 {dimension_numbers = #tpu.dot_dimension_numbers<[1], [0], [0], [1], [0, 0, 1, 1], [], []>} : vector<8x32xbf16>, vector<32x8xbf16>, vector<8x8xf32> -> vector<8x8xf32>
    %73 = arith.mulf %72, %5 : vector<8x8xf32>
    %c0_52 = arith.constant 0 : index
    %c1_53 = arith.constant 1 : index
    %c0_54 = arith.constant 0 : index
    %c0_55 = arith.constant 0 : index
    %74 = vector.load %arg6[%c0_52, %c1_53, %c0_54, %c0_55] : memref<1x4x32x8xbf16, #tpu.memory_space<vmem>>, vector<1x1x32x8xbf16>
    %75 = vector.shape_cast %74 : vector<1x1x32x8xbf16> to vector<32x8xbf16>
    %cst_56 = arith.constant dense<0.000000e+00> : vector<8x8xf32>
    %76 = tpu.matmul %24, %75, %cst_56 {dimension_numbers = #tpu.dot_dimension_numbers<[1], [0], [0], [1], [0, 0, 1, 1], [], []>} : vector<8x32xbf16>, vector<32x8xbf16>, vector<8x8xf32> -> vector<8x8xf32>
    %77 = arith.mulf %76, %6 : vector<8x8xf32>
    %78 = arith.addf %73, %77 : vector<8x8xf32>
    %c0_57 = arith.constant 0 : index
    %c1_58 = arith.constant 1 : index
    %c0_59 = arith.constant 0 : index
    %c0_60 = arith.constant 0 : index
    %79 = vector.load %arg7[%c0_57, %c1_58, %c0_59, %c0_60] : memref<1x4x32x8xbf16, #tpu.memory_space<vmem>>, vector<1x1x32x8xbf16>
    %80 = vector.shape_cast %79 : vector<1x1x32x8xbf16> to vector<32x8xbf16>
    %cst_61 = arith.constant dense<0.000000e+00> : vector<8x8xf32>
    %81 = tpu.matmul %24, %80, %cst_61 {dimension_numbers = #tpu.dot_dimension_numbers<[1], [0], [0], [1], [0, 0, 1, 1], [], []>} : vector<8x32xbf16>, vector<32x8xbf16>, vector<8x8xf32> -> vector<8x8xf32>
    %82 = arith.mulf %81, %5 : vector<8x8xf32>
    %c0_62 = arith.constant 0 : index
    %c1_63 = arith.constant 1 : index
    %c0_64 = arith.constant 0 : index
    %c0_65 = arith.constant 0 : index
    %83 = vector.load %arg8[%c0_62, %c1_63, %c0_64, %c0_65] : memref<1x4x32x8xbf16, #tpu.memory_space<vmem>>, vector<1x1x32x8xbf16>
    %84 = vector.shape_cast %83 : vector<1x1x32x8xbf16> to vector<32x8xbf16>
    %cst_66 = arith.constant dense<0.000000e+00> : vector<8x8xf32>
    %85 = tpu.matmul %24, %84, %cst_66 {dimension_numbers = #tpu.dot_dimension_numbers<[1], [0], [0], [1], [0, 0, 1, 1], [], []>} : vector<8x32xbf16>, vector<32x8xbf16>, vector<8x8xf32> -> vector<8x8xf32>
    %86 = arith.mulf %85, %6 : vector<8x8xf32>
    %87 = arith.addf %82, %86 : vector<8x8xf32>
    %c0_67 = arith.constant 0 : index
    %c1_68 = arith.constant 1 : index
    %c0_69 = arith.constant 0 : index
    %c0_70 = arith.constant 0 : index
    %88 = vector.load %arg9[%c0_67, %c1_68, %c0_69, %c0_70] : memref<1x4x32x8xbf16, #tpu.memory_space<vmem>>, vector<1x1x32x8xbf16>
    %89 = vector.shape_cast %88 : vector<1x1x32x8xbf16> to vector<32x8xbf16>
    %cst_71 = arith.constant dense<0.000000e+00> : vector<8x8xf32>
    %90 = tpu.matmul %24, %89, %cst_71 {dimension_numbers = #tpu.dot_dimension_numbers<[1], [0], [0], [1], [0, 0, 1, 1], [], []>} : vector<8x32xbf16>, vector<32x8xbf16>, vector<8x8xf32> -> vector<8x8xf32>
    %91 = arith.truncf %78 : vector<8x8xf32> to vector<8x8xbf16>
    %92 = arith.truncf %87 : vector<8x8xf32> to vector<8x8xbf16>
    %cst_72 = arith.constant dense<0.000000e+00> : vector<8x8xf32>
    %93 = tpu.matmul %91, %92, %cst_72 {dimension_numbers = #tpu.dot_dimension_numbers<[1], [1], [0], [0], [0, 0, 1, 0], [], []>} : vector<8x8xbf16>, vector<8x8xbf16>, vector<8x8xf32> -> vector<8x8xf32>
    %cst_73 = arith.constant -1.000000e+30 : f32
    %94 = vector.broadcast %cst_73 : f32 to vector<8x8xf32>
    %95 = arith.select %9, %93, %94 : vector<8x8xi1>, vector<8x8xf32>
    %cst_74 = arith.constant dense<0xFF800000> : vector<8xf32>
    %96 = vector.multi_reduction <maximumf>, %95, %cst_74 [1] : vector<8x8xf32> to vector<8xf32>
    %97 = vector.shape_cast %96 : vector<8xf32> to vector<8x1xf32>
    %98 = vector.broadcast %97 : vector<8x1xf32> to vector<8x8xf32>
    %99 = arith.subf %95, %98 : vector<8x8xf32>
    %100 = math.exp %99 : vector<8x8xf32>
    %cst_75 = arith.constant dense<0.000000e+00> : vector<8xf32>
    %101 = vector.multi_reduction <add>, %100, %cst_75 [1] : vector<8x8xf32> to vector<8xf32>
    %102 = vector.shape_cast %101 : vector<8xf32> to vector<8x1xf32>
    %103 = tpu.reciprocal %102 {approx = true} : vector<8x1xf32> -> vector<8x1xf32>
    %104 = vector.broadcast %103 : vector<8x1xf32> to vector<8x8xf32>
    %105 = arith.mulf %100, %104 : vector<8x8xf32>
    %106 = arith.truncf %105 : vector<8x8xf32> to vector<8x8xbf16>
    %107 = arith.truncf %90 : vector<8x8xf32> to vector<8x8xbf16>
    %cst_76 = arith.constant dense<0.000000e+00> : vector<8x8xf32>
    %108 = tpu.matmul %106, %107, %cst_76 {dimension_numbers = #tpu.dot_dimension_numbers<[1], [0], [0], [1], [0, 0, 1, 1], [], []>} : vector<8x8xbf16>, vector<8x8xbf16>, vector<8x8xf32> -> vector<8x8xf32>
    %109 = arith.truncf %108 : vector<8x8xf32> to vector<8x8xbf16>
    %c0_77 = arith.constant 0 : index
    %c1_78 = arith.constant 1 : index
    %c0_79 = arith.constant 0 : index
    %c0_80 = arith.constant 0 : index
    %110 = vector.load %arg10[%c0_77, %c1_78, %c0_79, %c0_80] : memref<1x4x8x32xbf16, #tpu.memory_space<vmem>>, vector<1x1x8x32xbf16>
    %111 = vector.shape_cast %110 : vector<1x1x8x32xbf16> to vector<8x32xbf16>
    %cst_81 = arith.constant dense<0.000000e+00> : vector<8x32xf32>
    %112 = tpu.matmul %109, %111, %cst_81 {dimension_numbers = #tpu.dot_dimension_numbers<[1], [0], [0], [1], [0, 0, 1, 1], [], []>} : vector<8x8xbf16>, vector<8x32xbf16>, vector<8x32xf32> -> vector<8x32xf32>
    %113 = arith.addf %69, %112 : vector<8x32xf32>
    %c0_82 = arith.constant 0 : index
    %c2 = arith.constant 2 : index
    %c0_83 = arith.constant 0 : index
    %c0_84 = arith.constant 0 : index
    %114 = vector.load %arg5[%c0_82, %c2, %c0_83, %c0_84] : memref<1x4x32x8xbf16, #tpu.memory_space<vmem>>, vector<1x1x32x8xbf16>
    %115 = vector.shape_cast %114 : vector<1x1x32x8xbf16> to vector<32x8xbf16>
    %cst_85 = arith.constant dense<0.000000e+00> : vector<8x8xf32>
    %116 = tpu.matmul %24, %115, %cst_85 {dimension_numbers = #tpu.dot_dimension_numbers<[1], [0], [0], [1], [0, 0, 1, 1], [], []>} : vector<8x32xbf16>, vector<32x8xbf16>, vector<8x8xf32> -> vector<8x8xf32>
    %117 = arith.mulf %116, %5 : vector<8x8xf32>
    %c0_86 = arith.constant 0 : index
    %c2_87 = arith.constant 2 : index
    %c0_88 = arith.constant 0 : index
    %c0_89 = arith.constant 0 : index
    %118 = vector.load %arg6[%c0_86, %c2_87, %c0_88, %c0_89] : memref<1x4x32x8xbf16, #tpu.memory_space<vmem>>, vector<1x1x32x8xbf16>
    %119 = vector.shape_cast %118 : vector<1x1x32x8xbf16> to vector<32x8xbf16>
    %cst_90 = arith.constant dense<0.000000e+00> : vector<8x8xf32>
    %120 = tpu.matmul %24, %119, %cst_90 {dimension_numbers = #tpu.dot_dimension_numbers<[1], [0], [0], [1], [0, 0, 1, 1], [], []>} : vector<8x32xbf16>, vector<32x8xbf16>, vector<8x8xf32> -> vector<8x8xf32>
    %121 = arith.mulf %120, %6 : vector<8x8xf32>
    %122 = arith.addf %117, %121 : vector<8x8xf32>
    %c0_91 = arith.constant 0 : index
    %c2_92 = arith.constant 2 : index
    %c0_93 = arith.constant 0 : index
    %c0_94 = arith.constant 0 : index
    %123 = vector.load %arg7[%c0_91, %c2_92, %c0_93, %c0_94] : memref<1x4x32x8xbf16, #tpu.memory_space<vmem>>, vector<1x1x32x8xbf16>
    %124 = vector.shape_cast %123 : vector<1x1x32x8xbf16> to vector<32x8xbf16>
    %cst_95 = arith.constant dense<0.000000e+00> : vector<8x8xf32>
    %125 = tpu.matmul %24, %124, %cst_95 {dimension_numbers = #tpu.dot_dimension_numbers<[1], [0], [0], [1], [0, 0, 1, 1], [], []>} : vector<8x32xbf16>, vector<32x8xbf16>, vector<8x8xf32> -> vector<8x8xf32>
    %126 = arith.mulf %125, %5 : vector<8x8xf32>
    %c0_96 = arith.constant 0 : index
    %c2_97 = arith.constant 2 : index
    %c0_98 = arith.constant 0 : index
    %c0_99 = arith.constant 0 : index
    %127 = vector.load %arg8[%c0_96, %c2_97, %c0_98, %c0_99] : memref<1x4x32x8xbf16, #tpu.memory_space<vmem>>, vector<1x1x32x8xbf16>
    %128 = vector.shape_cast %127 : vector<1x1x32x8xbf16> to vector<32x8xbf16>
    %cst_100 = arith.constant dense<0.000000e+00> : vector<8x8xf32>
    %129 = tpu.matmul %24, %128, %cst_100 {dimension_numbers = #tpu.dot_dimension_numbers<[1], [0], [0], [1], [0, 0, 1, 1], [], []>} : vector<8x32xbf16>, vector<32x8xbf16>, vector<8x8xf32> -> vector<8x8xf32>
    %130 = arith.mulf %129, %6 : vector<8x8xf32>
    %131 = arith.addf %126, %130 : vector<8x8xf32>
    %c0_101 = arith.constant 0 : index
    %c2_102 = arith.constant 2 : index
    %c0_103 = arith.constant 0 : index
    %c0_104 = arith.constant 0 : index
    %132 = vector.load %arg9[%c0_101, %c2_102, %c0_103, %c0_104] : memref<1x4x32x8xbf16, #tpu.memory_space<vmem>>, vector<1x1x32x8xbf16>
    %133 = vector.shape_cast %132 : vector<1x1x32x8xbf16> to vector<32x8xbf16>
    %cst_105 = arith.constant dense<0.000000e+00> : vector<8x8xf32>
    %134 = tpu.matmul %24, %133, %cst_105 {dimension_numbers = #tpu.dot_dimension_numbers<[1], [0], [0], [1], [0, 0, 1, 1], [], []>} : vector<8x32xbf16>, vector<32x8xbf16>, vector<8x8xf32> -> vector<8x8xf32>
    %135 = arith.truncf %122 : vector<8x8xf32> to vector<8x8xbf16>
    %136 = arith.truncf %131 : vector<8x8xf32> to vector<8x8xbf16>
    %cst_106 = arith.constant dense<0.000000e+00> : vector<8x8xf32>
    %137 = tpu.matmul %135, %136, %cst_106 {dimension_numbers = #tpu.dot_dimension_numbers<[1], [1], [0], [0], [0, 0, 1, 0], [], []>} : vector<8x8xbf16>, vector<8x8xbf16>, vector<8x8xf32> -> vector<8x8xf32>
    %cst_107 = arith.constant -1.000000e+30 : f32
    %138 = vector.broadcast %cst_107 : f32 to vector<8x8xf32>
    %139 = arith.select %9, %137, %138 : vector<8x8xi1>, vector<8x8xf32>
    %cst_108 = arith.constant dense<0xFF800000> : vector<8xf32>
    %140 = vector.multi_reduction <maximumf>, %139, %cst_108 [1] : vector<8x8xf32> to vector<8xf32>
    %141 = vector.shape_cast %140 : vector<8xf32> to vector<8x1xf32>
    %142 = vector.broadcast %141 : vector<8x1xf32> to vector<8x8xf32>
    %143 = arith.subf %139, %142 : vector<8x8xf32>
    %144 = math.exp %143 : vector<8x8xf32>
    %cst_109 = arith.constant dense<0.000000e+00> : vector<8xf32>
    %145 = vector.multi_reduction <add>, %144, %cst_109 [1] : vector<8x8xf32> to vector<8xf32>
    %146 = vector.shape_cast %145 : vector<8xf32> to vector<8x1xf32>
    %147 = tpu.reciprocal %146 {approx = true} : vector<8x1xf32> -> vector<8x1xf32>
    %148 = vector.broadcast %147 : vector<8x1xf32> to vector<8x8xf32>
    %149 = arith.mulf %144, %148 : vector<8x8xf32>
    %150 = arith.truncf %149 : vector<8x8xf32> to vector<8x8xbf16>
    %151 = arith.truncf %134 : vector<8x8xf32> to vector<8x8xbf16>
    %cst_110 = arith.constant dense<0.000000e+00> : vector<8x8xf32>
    %152 = tpu.matmul %150, %151, %cst_110 {dimension_numbers = #tpu.dot_dimension_numbers<[1], [0], [0], [1], [0, 0, 1, 1], [], []>} : vector<8x8xbf16>, vector<8x8xbf16>, vector<8x8xf32> -> vector<8x8xf32>
    %153 = arith.truncf %152 : vector<8x8xf32> to vector<8x8xbf16>
    %c0_111 = arith.constant 0 : index
    %c2_112 = arith.constant 2 : index
    %c0_113 = arith.constant 0 : index
    %c0_114 = arith.constant 0 : index
    %154 = vector.load %arg10[%c0_111, %c2_112, %c0_113, %c0_114] : memref<1x4x8x32xbf16, #tpu.memory_space<vmem>>, vector<1x1x8x32xbf16>
    %155 = vector.shape_cast %154 : vector<1x1x8x32xbf16> to vector<8x32xbf16>
    %cst_115 = arith.constant dense<0.000000e+00> : vector<8x32xf32>
    %156 = tpu.matmul %153, %155, %cst_115 {dimension_numbers = #tpu.dot_dimension_numbers<[1], [0], [0], [1], [0, 0, 1, 1], [], []>} : vector<8x8xbf16>, vector<8x32xbf16>, vector<8x32xf32> -> vector<8x32xf32>
    %157 = arith.addf %113, %156 : vector<8x32xf32>
    %c0_116 = arith.constant 0 : index
    %c3 = arith.constant 3 : index
    %c0_117 = arith.constant 0 : index
    %c0_118 = arith.constant 0 : index
    %158 = vector.load %arg5[%c0_116, %c3, %c0_117, %c0_118] : memref<1x4x32x8xbf16, #tpu.memory_space<vmem>>, vector<1x1x32x8xbf16>
    %159 = vector.shape_cast %158 : vector<1x1x32x8xbf16> to vector<32x8xbf16>
    %cst_119 = arith.constant dense<0.000000e+00> : vector<8x8xf32>
    %160 = tpu.matmul %24, %159, %cst_119 {dimension_numbers = #tpu.dot_dimension_numbers<[1], [0], [0], [1], [0, 0, 1, 1], [], []>} : vector<8x32xbf16>, vector<32x8xbf16>, vector<8x8xf32> -> vector<8x8xf32>
    %161 = arith.mulf %160, %5 : vector<8x8xf32>
    %c0_120 = arith.constant 0 : index
    %c3_121 = arith.constant 3 : index
    %c0_122 = arith.constant 0 : index
    %c0_123 = arith.constant 0 : index
    %162 = vector.load %arg6[%c0_120, %c3_121, %c0_122, %c0_123] : memref<1x4x32x8xbf16, #tpu.memory_space<vmem>>, vector<1x1x32x8xbf16>
    %163 = vector.shape_cast %162 : vector<1x1x32x8xbf16> to vector<32x8xbf16>
    %cst_124 = arith.constant dense<0.000000e+00> : vector<8x8xf32>
    %164 = tpu.matmul %24, %163, %cst_124 {dimension_numbers = #tpu.dot_dimension_numbers<[1], [0], [0], [1], [0, 0, 1, 1], [], []>} : vector<8x32xbf16>, vector<32x8xbf16>, vector<8x8xf32> -> vector<8x8xf32>
    %165 = arith.mulf %164, %6 : vector<8x8xf32>
    %166 = arith.addf %161, %165 : vector<8x8xf32>
    %c0_125 = arith.constant 0 : index
    %c3_126 = arith.constant 3 : index
    %c0_127 = arith.constant 0 : index
    %c0_128 = arith.constant 0 : index
    %167 = vector.load %arg7[%c0_125, %c3_126, %c0_127, %c0_128] : memref<1x4x32x8xbf16, #tpu.memory_space<vmem>>, vector<1x1x32x8xbf16>
    %168 = vector.shape_cast %167 : vector<1x1x32x8xbf16> to vector<32x8xbf16>
    %cst_129 = arith.constant dense<0.000000e+00> : vector<8x8xf32>
    %169 = tpu.matmul %24, %168, %cst_129 {dimension_numbers = #tpu.dot_dimension_numbers<[1], [0], [0], [1], [0, 0, 1, 1], [], []>} : vector<8x32xbf16>, vector<32x8xbf16>, vector<8x8xf32> -> vector<8x8xf32>
    %170 = arith.mulf %169, %5 : vector<8x8xf32>
    %c0_130 = arith.constant 0 : index
    %c3_131 = arith.constant 3 : index
    %c0_132 = arith.constant 0 : index
    %c0_133 = arith.constant 0 : index
    %171 = vector.load %arg8[%c0_130, %c3_131, %c0_132, %c0_133] : memref<1x4x32x8xbf16, #tpu.memory_space<vmem>>, vector<1x1x32x8xbf16>
    %172 = vector.shape_cast %171 : vector<1x1x32x8xbf16> to vector<32x8xbf16>
    %cst_134 = arith.constant dense<0.000000e+00> : vector<8x8xf32>
    %173 = tpu.matmul %24, %172, %cst_134 {dimension_numbers = #tpu.dot_dimension_numbers<[1], [0], [0], [1], [0, 0, 1, 1], [], []>} : vector<8x32xbf16>, vector<32x8xbf16>, vector<8x8xf32> -> vector<8x8xf32>
    %174 = arith.mulf %173, %6 : vector<8x8xf32>
    %175 = arith.addf %170, %174 : vector<8x8xf32>
    %c0_135 = arith.constant 0 : index
    %c3_136 = arith.constant 3 : index
    %c0_137 = arith.constant 0 : index
    %c0_138 = arith.constant 0 : index
    %176 = vector.load %arg9[%c0_135, %c3_136, %c0_137, %c0_138] : memref<1x4x32x8xbf16, #tpu.memory_space<vmem>>, vector<1x1x32x8xbf16>
    %177 = vector.shape_cast %176 : vector<1x1x32x8xbf16> to vector<32x8xbf16>
    %cst_139 = arith.constant dense<0.000000e+00> : vector<8x8xf32>
    %178 = tpu.matmul %24, %177, %cst_139 {dimension_numbers = #tpu.dot_dimension_numbers<[1], [0], [0], [1], [0, 0, 1, 1], [], []>} : vector<8x32xbf16>, vector<32x8xbf16>, vector<8x8xf32> -> vector<8x8xf32>
    %179 = arith.truncf %166 : vector<8x8xf32> to vector<8x8xbf16>
    %180 = arith.truncf %175 : vector<8x8xf32> to vector<8x8xbf16>
    %cst_140 = arith.constant dense<0.000000e+00> : vector<8x8xf32>
    %181 = tpu.matmul %179, %180, %cst_140 {dimension_numbers = #tpu.dot_dimension_numbers<[1], [1], [0], [0], [0, 0, 1, 0], [], []>} : vector<8x8xbf16>, vector<8x8xbf16>, vector<8x8xf32> -> vector<8x8xf32>
    %cst_141 = arith.constant -1.000000e+30 : f32
    %182 = vector.broadcast %cst_141 : f32 to vector<8x8xf32>
    %183 = arith.select %9, %181, %182 : vector<8x8xi1>, vector<8x8xf32>
    %cst_142 = arith.constant dense<0xFF800000> : vector<8xf32>
    %184 = vector.multi_reduction <maximumf>, %183, %cst_142 [1] : vector<8x8xf32> to vector<8xf32>
    %185 = vector.shape_cast %184 : vector<8xf32> to vector<8x1xf32>
    %186 = vector.broadcast %185 : vector<8x1xf32> to vector<8x8xf32>
    %187 = arith.subf %183, %186 : vector<8x8xf32>
    %188 = math.exp %187 : vector<8x8xf32>
    %cst_143 = arith.constant dense<0.000000e+00> : vector<8xf32>
    %189 = vector.multi_reduction <add>, %188, %cst_143 [1] : vector<8x8xf32> to vector<8xf32>
    %190 = vector.shape_cast %189 : vector<8xf32> to vector<8x1xf32>
    %191 = tpu.reciprocal %190 {approx = true} : vector<8x1xf32> -> vector<8x1xf32>
    %192 = vector.broadcast %191 : vector<8x1xf32> to vector<8x8xf32>
    %193 = arith.mulf %188, %192 : vector<8x8xf32>
    %194 = arith.truncf %193 : vector<8x8xf32> to vector<8x8xbf16>
    %195 = arith.truncf %178 : vector<8x8xf32> to vector<8x8xbf16>
    %cst_144 = arith.constant dense<0.000000e+00> : vector<8x8xf32>
    %196 = tpu.matmul %194, %195, %cst_144 {dimension_numbers = #tpu.dot_dimension_numbers<[1], [0], [0], [1], [0, 0, 1, 1], [], []>} : vector<8x8xbf16>, vector<8x8xbf16>, vector<8x8xf32> -> vector<8x8xf32>
    %197 = arith.truncf %196 : vector<8x8xf32> to vector<8x8xbf16>
    %c0_145 = arith.constant 0 : index
    %c3_146 = arith.constant 3 : index
    %c0_147 = arith.constant 0 : index
    %c0_148 = arith.constant 0 : index
    %198 = vector.load %arg10[%c0_145, %c3_146, %c0_147, %c0_148] : memref<1x4x8x32xbf16, #tpu.memory_space<vmem>>, vector<1x1x8x32xbf16>
    %199 = vector.shape_cast %198 : vector<1x1x8x32xbf16> to vector<8x32xbf16>
    %cst_149 = arith.constant dense<0.000000e+00> : vector<8x32xf32>
    %200 = tpu.matmul %197, %199, %cst_149 {dimension_numbers = #tpu.dot_dimension_numbers<[1], [0], [0], [1], [0, 0, 1, 1], [], []>} : vector<8x8xbf16>, vector<8x32xbf16>, vector<8x32xf32> -> vector<8x32xf32>
    %201 = arith.addf %157, %200 : vector<8x32xf32>
    %202 = arith.addf %4, %201 : vector<8x32xf32>
    %c0_150 = arith.constant 0 : index
    %c0_151 = arith.constant 0 : index
    %c0_152 = arith.constant 0 : index
    %203 = vector.load %arg15[%c0_150, %c0_151, %c0_152] : memref<1x1x32xf32, #tpu.memory_space<vmem>>, vector<1x1x32xf32>
    %204 = vector.shape_cast %203 : vector<1x1x32xf32> to vector<1x32xf32>
    %205 = arith.mulf %202, %202 : vector<8x32xf32>
    %cst_153 = arith.constant dense<0.000000e+00> : vector<8xf32>
    %206 = vector.multi_reduction <add>, %205, %cst_153 [1] : vector<8x32xf32> to vector<8xf32>
    %207 = vector.shape_cast %206 : vector<8xf32> to vector<8x1xf32>
    %cst_154 = arith.constant 3.200000e+01 : f32
    %208 = vector.broadcast %cst_154 : f32 to vector<8x1xf32>
    %209 = arith.divf %207, %208 : vector<8x1xf32>
    %cst_155 = arith.constant 9.99999997E-7 : f32
    %210 = vector.broadcast %cst_155 : f32 to vector<8x1xf32>
    %211 = arith.addf %209, %210 : vector<8x1xf32>
    %212 = math.rsqrt %211 : vector<8x1xf32>
    %213 = vector.broadcast %212 : vector<8x1xf32> to vector<8x32xf32>
    %214 = arith.mulf %202, %213 : vector<8x32xf32>
    %215 = vector.broadcast %204 : vector<1x32xf32> to vector<8x32xf32>
    %216 = arith.mulf %214, %215 : vector<8x32xf32>
    %217 = arith.truncf %216 : vector<8x32xf32> to vector<8x32xbf16>
    %c0_156 = arith.constant 0 : index
    %c0_157 = arith.constant 0 : index
    %c0_158 = arith.constant 0 : index
    %218 = vector.load %arg11[%c0_156, %c0_157, %c0_158] : memref<1x32x64xbf16, #tpu.memory_space<vmem>>, vector<1x32x64xbf16>
    %219 = vector.shape_cast %218 : vector<1x32x64xbf16> to vector<32x64xbf16>
    %cst_159 = arith.constant dense<0.000000e+00> : vector<8x64xf32>
    %220 = tpu.matmul %217, %219, %cst_159 {dimension_numbers = #tpu.dot_dimension_numbers<[1], [0], [0], [1], [0, 0, 1, 1], [], []>} : vector<8x32xbf16>, vector<32x64xbf16>, vector<8x64xf32> -> vector<8x64xf32>
    %c0_160 = arith.constant 0 : index
    %c0_161 = arith.constant 0 : index
    %c0_162 = arith.constant 0 : index
    %221 = vector.load %arg12[%c0_160, %c0_161, %c0_162] : memref<1x32x64xbf16, #tpu.memory_space<vmem>>, vector<1x32x64xbf16>
    %222 = vector.shape_cast %221 : vector<1x32x64xbf16> to vector<32x64xbf16>
    %cst_163 = arith.constant dense<0.000000e+00> : vector<8x64xf32>
    %223 = tpu.matmul %217, %222, %cst_163 {dimension_numbers = #tpu.dot_dimension_numbers<[1], [0], [0], [1], [0, 0, 1, 1], [], []>} : vector<8x32xbf16>, vector<32x64xbf16>, vector<8x64xf32> -> vector<8x64xf32>
    %224 = arith.negf %220 : vector<8x64xf32>
    %225 = math.exp %224 : vector<8x64xf32>
    %cst_164 = arith.constant 1.000000e+00 : f32
    %226 = vector.broadcast %cst_164 : f32 to vector<8x64xf32>
    %227 = arith.addf %226, %225 : vector<8x64xf32>
    %228 = arith.divf %226, %227 : vector<8x64xf32>
    %229 = arith.mulf %220, %228 : vector<8x64xf32>
    %230 = arith.mulf %229, %223 : vector<8x64xf32>
    %231 = arith.truncf %230 : vector<8x64xf32> to vector<8x64xbf16>
    %c0_165 = arith.constant 0 : index
    %c0_166 = arith.constant 0 : index
    %c0_167 = arith.constant 0 : index
    %232 = vector.load %arg13[%c0_165, %c0_166, %c0_167] : memref<1x64x32xbf16, #tpu.memory_space<vmem>>, vector<1x64x32xbf16>
    %233 = vector.shape_cast %232 : vector<1x64x32xbf16> to vector<64x32xbf16>
    %cst_168 = arith.constant dense<0.000000e+00> : vector<8x32xf32>
    %234 = tpu.matmul %231, %233, %cst_168 {dimension_numbers = #tpu.dot_dimension_numbers<[1], [0], [0], [1], [0, 0, 1, 1], [], []>} : vector<8x64xbf16>, vector<64x32xbf16>, vector<8x32xf32> -> vector<8x32xf32>
    %235 = arith.addf %202, %234 : vector<8x32xf32>
    %c0_169 = arith.constant 0 : index
    %c0_170 = arith.constant 0 : index
    %c0_171 = arith.constant 0 : index
    %236 = vector.load %arg16[%c0_169, %c0_170, %c0_171] : memref<1x8x32xf32, #tpu.memory_space<vmem>>, vector<1x8x32xf32>
    %237 = vector.shape_cast %236 : vector<1x8x32xf32> to vector<8x32xf32>
    %238 = vector.shape_cast %235 : vector<8x32xf32> to vector<1x8x32xf32>
    tpu.vector_store %arg16[%c0_169, %c0_170, %c0_171], %238 {strides = array<i32>} : memref<1x8x32xf32, #tpu.memory_space<vmem>>, vector<1x8x32xf32>,
    return
  }
  func.func @transform_0(%arg0: i32, %arg1: i32) -> (i32, i32, i32) {
    %c0_i32 = arith.constant 0 : i32
    %c0_i32_0 = arith.constant 0 : i32
    %c0_i32_1 = arith.constant 0 : i32
    return %arg0, %c0_i32, %c0_i32_0 : i32, i32, i32
  }
  func.func @transform_1(%arg0: i32, %arg1: i32) -> (i32, i32) {
    %c0_i32 = arith.constant 0 : i32
    %c0_i32_0 = arith.constant 0 : i32
    %c0_i32_1 = arith.constant 0 : i32
    return %c0_i32, %c0_i32_0 : i32, i32
  }
  func.func @transform_2(%arg0: i32, %arg1: i32) -> (i32, i32) {
    %c0_i32 = arith.constant 0 : i32
    %c0_i32_0 = arith.constant 0 : i32
    %c0_i32_1 = arith.constant 0 : i32
    return %c0_i32, %c0_i32_0 : i32, i32
  }
  func.func @transform_3(%arg0: i32, %arg1: i32) -> (i32, i32, i32, i32) {
    %c0_i32 = arith.constant 0 : i32
    %c0_i32_0 = arith.constant 0 : i32
    %c0_i32_1 = arith.constant 0 : i32
    %c0_i32_2 = arith.constant 0 : i32
    return %arg1, %c0_i32, %c0_i32_0, %c0_i32_1 : i32, i32, i32, i32
  }
  func.func @transform_4(%arg0: i32, %arg1: i32) -> (i32, i32, i32, i32) {
    %c0_i32 = arith.constant 0 : i32
    %c0_i32_0 = arith.constant 0 : i32
    %c0_i32_1 = arith.constant 0 : i32
    %c0_i32_2 = arith.constant 0 : i32
    return %arg1, %c0_i32, %c0_i32_0, %c0_i32_1 : i32, i32, i32, i32
  }
  func.func @transform_5(%arg0: i32, %arg1: i32) -> (i32, i32, i32, i32) {
    %c0_i32 = arith.constant 0 : i32
    %c0_i32_0 = arith.constant 0 : i32
    %c0_i32_1 = arith.constant 0 : i32
    %c0_i32_2 = arith.constant 0 : i32
    return %arg1, %c0_i32, %c0_i32_0, %c0_i32_1 : i32, i32, i32, i32
  }
  func.func @transform_6(%arg0: i32, %arg1: i32) -> (i32, i32, i32, i32) {
    %c0_i32 = arith.constant 0 : i32
    %c0_i32_0 = arith.constant 0 : i32
    %c0_i32_1 = arith.constant 0 : i32
    %c0_i32_2 = arith.constant 0 : i32
    return %arg1, %c0_i32, %c0_i32_0, %c0_i32_1 : i32, i32, i32, i32
  }
  func.func @transform_7(%arg0: i32, %arg1: i32) -> (i32, i32, i32, i32) {
    %c0_i32 = arith.constant 0 : i32
    %c0_i32_0 = arith.constant 0 : i32
    %c0_i32_1 = arith.constant 0 : i32
    %c0_i32_2 = arith.constant 0 : i32
    return %arg1, %c0_i32, %c0_i32_0, %c0_i32_1 : i32, i32, i32, i32
  }
  func.func @transform_8(%arg0: i32, %arg1: i32) -> (i32, i32, i32, i32) {
    %c0_i32 = arith.constant 0 : i32
    %c0_i32_0 = arith.constant 0 : i32
    %c0_i32_1 = arith.constant 0 : i32
    %c0_i32_2 = arith.constant 0 : i32
    return %arg1, %c0_i32, %c0_i32_0, %c0_i32_1 : i32, i32, i32, i32
  }
  func.func @transform_9(%arg0: i32, %arg1: i32) -> (i32, i32, i32) {
    %c0_i32 = arith.constant 0 : i32
    %c0_i32_0 = arith.constant 0 : i32
    %c0_i32_1 = arith.constant 0 : i32
    return %arg1, %c0_i32, %c0_i32_0 : i32, i32, i32
  }
  func.func @transform_10(%arg0: i32, %arg1: i32) -> (i32, i32, i32) {
    %c0_i32 = arith.constant 0 : i32
    %c0_i32_0 = arith.constant 0 : i32
    %c0_i32_1 = arith.constant 0 : i32
    return %arg1, %c0_i32, %c0_i32_0 : i32, i32, i32
  }
  func.func @transform_11(%arg0: i32, %arg1: i32) -> (i32, i32, i32) {
    %c0_i32 = arith.constant 0 : i32
    %c0_i32_0 = arith.constant 0 : i32
    %c0_i32_1 = arith.constant 0 : i32
    return %arg1, %c0_i32, %c0_i32_0 : i32, i32, i32
  }
  func.func @transform_12(%arg0: i32, %arg1: i32) -> (i32, i32, i32) {
    %c0_i32 = arith.constant 0 : i32
    %c0_i32_0 = arith.constant 0 : i32
    %c0_i32_1 = arith.constant 0 : i32
    return %arg1, %c0_i32, %c0_i32_0 : i32, i32, i32
  }
  func.func @transform_13(%arg0: i32, %arg1: i32) -> (i32, i32, i32) {
    %c0_i32 = arith.constant 0 : i32
    %c0_i32_0 = arith.constant 0 : i32
    %c0_i32_1 = arith.constant 0 : i32
    return %arg1, %c0_i32, %c0_i32_0 : i32, i32, i32
  }
  func.func @transform_14(%arg0: i32, %arg1: i32) -> (i32, i32, i32) {
    %c0_i32 = arith.constant 0 : i32
    %c0_i32_0 = arith.constant 0 : i32
    %c0_i32_1 = arith.constant 0 : i32
    return %arg0, %c0_i32, %c0_i32_0 : i32, i32, i32
  }
}

</mosaic_0001>

<llo_original>
// kernel: llama_layers_forward.1
$region0: #{llama_layers_forward.1}
  #allocation0 [shape = 'u32[]', space=smem, size = 0x4, offset = 0x4, fixed_abs, tag = 'smem constant byte address 0x4 - core index']
  #allocation1 [shape = 'u32[144,128]{1,0:T(1,128)}', space=vmem, size = 0x12000, scoped, tag = 'internal scratch']
  %s0 = inlined_call_operand.vmem [shape: f32[2,8,32], index: 0, kind: input, shape index: {}]
  %s1 = inlined_call_operand.vmem [shape: f32[8,8], index: 1, kind: input, shape index: {}]
  %s2 = inlined_call_operand.vmem [shape: f32[8,8], index: 2, kind: input, shape index: {}]
  %s3 = inlined_call_operand.vmem [shape: bf16[2,4,32,8], index: 3, kind: input, shape index: {}]
  %s4 = inlined_call_operand.vmem [shape: bf16[2,4,32,8], index: 4, kind: input, shape index: {}]
  %s5 = inlined_call_operand.vmem [shape: bf16[2,4,32,8], index: 5, kind: input, shape index: {}]
  %s6 = inlined_call_operand.vmem [shape: bf16[2,4,32,8], index: 6, kind: input, shape index: {}]
  %s7 = inlined_call_operand.vmem [shape: bf16[2,4,32,8], index: 7, kind: input, shape index: {}]
  %s8 = inlined_call_operand.vmem [shape: bf16[2,4,8,32], index: 8, kind: input, shape index: {}]
  %s9 = inlined_call_operand.vmem [shape: bf16[2,32,64], index: 9, kind: input, shape index: {}]
  %s10 = inlined_call_operand.vmem [shape: bf16[2,32,64], index: 10, kind: input, shape index: {}]
  %s11 = inlined_call_operand.vmem [shape: bf16[2,64,32], index: 11, kind: input, shape index: {}]
  %s12 = inlined_call_operand.vmem [shape: f32[2,1,32], index: 12, kind: input, shape index: {}]
  %s13 = inlined_call_operand.vmem [shape: f32[2,1,32], index: 13, kind: input, shape index: {}]
  %s14 = inlined_call_operand.hbm [shape: f32[2,8,32], index: 14, kind: output, shape index: {}]
  %s15 = sld [smem:[#allocation0]]
  $region93: #{llama_layers_forward.1} parent=0
    _
  %s17 = ssub.s32 1, %s15
  %s18 = scalar_select 0, %s17, %s15
  $region1: #{llama_layers_forward.1} parent=0
    #allocation2 [shape = 'u8[8192]{0}', space=vmem, size = 0x2000, scoped, tag = 'output window, operand 0']
    #allocation3 [shape = 's32[2]{0}', space=sflag, size = 0x8, scoped, tag = 'scoped memory for llama_layers_forward.1']
    %19 = vsyncpa [#allocation3], 0
    %s20 = scalar_lea.sflag [#allocation3], 1
    %21 = vsyncpa %s20, 0
    loop: start=0, step=1, limit=6
    $region2: #{llama_layers_forward.1} parent=1 // loop_pre_header
      _
    $region3: #{llama_layers_forward.1} parent=1 // loop_header
      %s23 = sphi 0, %s27
      %p24 = scmp.ge.s32.totalorder %s23, 6
      %s30 = sphi 0, %s42
      %s31 = sphi 0, %s38
      %s32 = sphi 0, %s30
      %s33 = sphi 0, %s31
      %s34 = sphi 0, %s32
      %s35 = sphi 0, %s33
      %s45 = sphi 0, %s47
      %s48 = sphi 0, %s45
      %s49 = sphi 0, %s48
      %s65 = sphi 0, %s49
      %s69 = sphi 0, %s69
      %s71 = sphi 0, %s69
      %s72 = sphi 0, %s71
      %s86 = sphi 0, %s72
      %s90 = sphi 0, %s90
      %s92 = sphi 0, %s90
      %s93 = sphi 0, %s92
      %s107 = sphi 0, %s93
      %s113 = sphi 0, %s115
      %s116 = sphi 0, %s113
      %s117 = sphi 0, %s116
      %s133 = sphi 0, %s117
      %s139 = sphi 0, %s141
      %s142 = sphi 0, %s139
      %s143 = sphi 0, %s142
      %s159 = sphi 0, %s143
      %s165 = sphi 0, %s167
      %s168 = sphi 0, %s165
      %s169 = sphi 0, %s168
      %s185 = sphi 0, %s169
      %s191 = sphi 0, %s193
      %s194 = sphi 0, %s191
      %s195 = sphi 0, %s194
      %s211 = sphi 0, %s195
      %s217 = sphi 0, %s219
      %s220 = sphi 0, %s217
      %s221 = sphi 0, %s220
      %s237 = sphi 0, %s221
      %s243 = sphi 0, %s245
      %s246 = sphi 0, %s243
      %s247 = sphi 0, %s246
      %s263 = sphi 0, %s247
      %s269 = sphi 0, %s271
      %s272 = sphi 0, %s269
      %s273 = sphi 0, %s272
      %s289 = sphi 0, %s273
      %s295 = sphi 0, %s297
      %s298 = sphi 0, %s295
      %s299 = sphi 0, %s298
      %s315 = sphi 0, %s299
      %s321 = sphi 0, %s323
      %s324 = sphi 0, %s321
      %s325 = sphi 0, %s324
      %s341 = sphi 0, %s325
      %s347 = sphi 0, %s349
      %s350 = sphi 0, %s347
      %s351 = sphi 0, %s350
      %s367 = sphi 0, %s351
      %s373 = sphi 0, %s375
      %s376 = sphi 0, %s373
      %s377 = sphi 0, %s376
      %s393 = sphi 0, %s377
      %s399 = sphi 0, %s401
      %s402 = sphi 0, %s399
      %s403 = sphi 0, %s402
      %s419 = sphi 0, %s403
    $region4: #{llama_layers_forward.1} parent=1 // loop_header_branch
      %26 = sbr.rel (%p24) target = $region8
    $region5: #{llama_layers_forward.1} parent=1 // loop_body
      %s28 = ssub.s32 %s23, 1
      %s29 = ssub.s32 %s23, 2
      %s36 = sadd.s32 1, %s31
      %p37 = scmp.ge.s32.totalorder %s36, 2
      %s38 = scalar_select %p37, 0, %s36
      %s39 = sadd.s32 1, %s30
      %s40 = scalar_select %p37, %s39, %s30
      %p41 = scmp.ge.s32.totalorder %s40, 2
      %s42 = scalar_select %p41, 0, %s40
      %s43 = ssub.s32 %s30, %s42
      %p44 = scmp.eq.s32.totalorder %s43, 0
      %s46 = sadd.s32 %s45, 1
      %s47 = scalar_select %p44, %s45, %s46
      %p50 = pneg %p44
      %p51 = scmp.eq.s32.totalorder %s23, 3
      %p52 = por %p50, %p51
      %p53 = scmp.ne.s32.totalorder %s45, %s48
      %p54 = scmp.eq.s32.totalorder %s23, 0
      %p55 = por %p53, %p54
      %p56 = scmp.ne.s32.totalorder %s45, %s48
      %p57 = scmp.eq.s32.totalorder %s28, 3
      %p58 = por %p56, %p57
      %p59 = scmp.ne.s32.totalorder %s48, %s49
      %p60 = scmp.eq.s32.totalorder %s28, 0
      %p61 = por %p59, %p60
      %p62 = scmp.ne.s32.totalorder %s48, %s49
      %p63 = scmp.eq.s32.totalorder %s29, 3
      %p64 = por %p62, %p63
      %p66 = scmp.ne.s32.totalorder %s49, %s65
      %p67 = scmp.eq.s32.totalorder %s29, 0
      %p68 = por %p66, %p67
      %s70 = sadd.s32 %s69, 1
      %p73 = scmp.eq.s32.totalorder %s23, 3
      %p74 = scmp.ne.s32.totalorder %s69, %s71
      %p75 = scmp.eq.s32.totalorder %s23, 0
      %p76 = por %p74, %p75
      %p77 = scmp.ne.s32.totalorder %s69, %s71
      %p78 = scmp.eq.s32.totalorder %s28, 3
      %p79 = por %p77, %p78
      %p80 = scmp.ne.s32.totalorder %s71, %s72
      %p81 = scmp.eq.s32.totalorder %s28, 0
      %p82 = por %p80, %p81
      %p83 = scmp.ne.s32.totalorder %s71, %s72
      %p84 = scmp.eq.s32.totalorder %s29, 3
      %p85 = por %p83, %p84
      %p87 = scmp.ne.s32.totalorder %s72, %s86
      %p88 = scmp.eq.s32.totalorder %s29, 0
      %p89 = por %p87, %p88
      %s91 = sadd.s32 %s90, 1
      %p94 = scmp.eq.s32.totalorder %s23, 3
      %p95 = scmp.ne.s32.totalorder %s90, %s92
      %p96 = scmp.eq.s32.totalorder %s23, 0
      %p97 = por %p95, %p96
      %p98 = scmp.ne.s32.totalorder %s90, %s92
      %p99 = scmp.eq.s32.totalorder %s28, 3
      %p100 = por %p98, %p99
      %p101 = scmp.ne.s32.totalorder %s92, %s93
      %p102 = scmp.eq.s32.totalorder %s28, 0
      %p103 = por %p101, %p102
      %p104 = scmp.ne.s32.totalorder %s92, %s93
      %p105 = scmp.eq.s32.totalorder %s29, 3
      %p106 = por %p104, %p105
      %p108 = scmp.ne.s32.totalorder %s93, %s107
      %p109 = scmp.eq.s32.totalorder %s29, 0
      %p110 = por %p108, %p109
      %s111 = ssub.s32 %s31, %s38
      %p112 = scmp.eq.s32.totalorder %s111, 0
      %s114 = sadd.s32 %s113, 1
      %s115 = scalar_select %p112, %s113, %s114
      %p118 = pneg %p112
      %p119 = scmp.eq.s32.totalorder %s23, 3
      %p120 = por %p118, %p119
      %p121 = scmp.ne.s32.totalorder %s113, %s116
      %p122 = scmp.eq.s32.totalorder %s23, 0
      %p123 = por %p121, %p122
      %p124 = scmp.ne.s32.totalorder %s113, %s116
      %p125 = scmp.eq.s32.totalorder %s28, 3
      %p126 = por %p124, %p125
      %p127 = scmp.ne.s32.totalorder %s116, %s117
      %p128 = scmp.eq.s32.totalorder %s28, 0
      %p129 = por %p127, %p128
      %p130 = scmp.ne.s32.totalorder %s116, %s117
      %p131 = scmp.eq.s32.totalorder %s29, 3
      %p132 = por %p130, %p131
      %p134 = scmp.ne.s32.totalorder %s117, %s133
      %p135 = scmp.eq.s32.totalorder %s29, 0
      %p136 = por %p134, %p135
      %s137 = ssub.s32 %s31, %s38
      %p138 = scmp.eq.s32.totalorder %s137, 0
      %s140 = sadd.s32 %s139, 1
      %s141 = scalar_select %p138, %s139, %s140
      %p144 = pneg %p138
      %p145 = scmp.eq.s32.totalorder %s23, 3
      %p146 = por %p144, %p145
      %p147 = scmp.ne.s32.totalorder %s139, %s142
      %p148 = scmp.eq.s32.totalorder %s23, 0
      %p149 = por %p147, %p148
      %p150 = scmp.ne.s32.totalorder %s139, %s142
      %p151 = scmp.eq.s32.totalorder %s28, 3
      %p152 = por %p150, %p151
      %p153 = scmp.ne.s32.totalorder %s142, %s143
      %p154 = scmp.eq.s32.totalorder %s28, 0
      %p155 = por %p153, %p154
      %p156 = scmp.ne.s32.totalorder %s142, %s143
      %p157 = scmp.eq.s32.totalorder %s29, 3
      %p158 = por %p156, %p157
      %p160 = scmp.ne.s32.totalorder %s143, %s159
      %p161 = scmp.eq.s32.totalorder %s29, 0
      %p162 = por %p160, %p161
      %s163 = ssub.s32 %s31, %s38
      %p164 = scmp.eq.s32.totalorder %s163, 0
      %s166 = sadd.s32 %s165, 1
      %s167 = scalar_select %p164, %s165, %s166
      %p170 = pneg %p164
      %p171 = scmp.eq.s32.totalorder %s23, 3
      %p172 = por %p170, %p171
      %p173 = scmp.ne.s32.totalorder %s165, %s168
      %p174 = scmp.eq.s32.totalorder %s23, 0
      %p175 = por %p173, %p174
      %p176 = scmp.ne.s32.totalorder %s165, %s168
      %p177 = scmp.eq.s32.totalorder %s28, 3
      %p178 = por %p176, %p177
      %p179 = scmp.ne.s32.totalorder %s168, %s169
      %p180 = scmp.eq.s32.totalorder %s28, 0
      %p181 = por %p179, %p180
      %p182 = scmp.ne.s32.totalorder %s168, %s169
      %p183 = scmp.eq.s32.totalorder %s29, 3
      %p184 = por %p182, %p183
      %p186 = scmp.ne.s32.totalorder %s169, %s185
      %p187 = scmp.eq.s32.totalorder %s29, 0
      %p188 = por %p186, %p187
      %s189 = ssub.s32 %s31, %s38
      %p190 = scmp.eq.s32.totalorder %s189, 0
      %s192 = sadd.s32 %s191, 1
      %s193 = scalar_select %p190, %s191, %s192
      %p196 = pneg %p190
      %p197 = scmp.eq.s32.totalorder %s23, 3
      %p198 = por %p196, %p197
      %p199 = scmp.ne.s32.totalorder %s191, %s194
      %p200 = scmp.eq.s32.totalorder %s23, 0
      %p201 = por %p199, %p200
      %p202 = scmp.ne.s32.totalorder %s191, %s194
      %p203 = scmp.eq.s32.totalorder %s28, 3
      %p204 = por %p202, %p203
      %p205 = scmp.ne.s32.totalorder %s194, %s195
      %p206 = scmp.eq.s32.totalorder %s28, 0
      %p207 = por %p205, %p206
      %p208 = scmp.ne.s32.totalorder %s194, %s195
      %p209 = scmp.eq.s32.totalorder %s29, 3
      %p210 = por %p208, %p209
      %p212 = scmp.ne.s32.totalorder %s195, %s211
      %p213 = scmp.eq.s32.totalorder %s29, 0
      %p214 = por %p212, %p213
      %s215 = ssub.s32 %s31, %s38
      %p216 = scmp.eq.s32.totalorder %s215, 0
      %s218 = sadd.s32 %s217, 1
      %s219 = scalar_select %p216, %s217, %s218
      %p222 = pneg %p216
      %p223 = scmp.eq.s32.totalorder %s23, 3
      %p224 = por %p222, %p223
      %p225 = scmp.ne.s32.totalorder %s217, %s220
      %p226 = scmp.eq.s32.totalorder %s23, 0
      %p227 = por %p225, %p226
      %p228 = scmp.ne.s32.totalorder %s217, %s220
      %p229 = scmp.eq.s32.totalorder %s28, 3
      %p230 = por %p228, %p229
      %p231 = scmp.ne.s32.totalorder %s220, %s221
      %p232 = scmp.eq.s32.totalorder %s28, 0
      %p233 = por %p231, %p232
      %p234 = scmp.ne.s32.totalorder %s220, %s221
      %p235 = scmp.eq.s32.totalorder %s29, 3
      %p236 = por %p234, %p235
      %p238 = scmp.ne.s32.totalorder %s221, %s237
      %p239 = scmp.eq.s32.totalorder %s29, 0
      %p240 = por %p238, %p239
      %s241 = ssub.s32 %s31, %s38
      %p242 = scmp.eq.s32.totalorder %s241, 0
      %s244 = sadd.s32 %s243, 1
      %s245 = scalar_select %p242, %s243, %s244
      %p248 = pneg %p242
      %p249 = scmp.eq.s32.totalorder %s23, 3
      %p250 = por %p248, %p249
      %p251 = scmp.ne.s32.totalorder %s243, %s246
      %p252 = scmp.eq.s32.totalorder %s23, 0
      %p253 = por %p251, %p252
      %p254 = scmp.ne.s32.totalorder %s243, %s246
      %p255 = scmp.eq.s32.totalorder %s28, 3
      %p256 = por %p254, %p255
      %p257 = scmp.ne.s32.totalorder %s246, %s247
      %p258 = scmp.eq.s32.totalorder %s28, 0
      %p259 = por %p257, %p258
      %p260 = scmp.ne.s32.totalorder %s246, %s247
      %p261 = scmp.eq.s32.totalorder %s29, 3
      %p262 = por %p260, %p261
      %p264 = scmp.ne.s32.totalorder %s247, %s263
      %p265 = scmp.eq.s32.totalorder %s29, 0
      %p266 = por %p264, %p265
      %s267 = ssub.s32 %s31, %s38
      %p268 = scmp.eq.s32.totalorder %s267, 0
      %s270 = sadd.s32 %s269, 1
      %s271 = scalar_select %p268, %s269, %s270
      %p274 = pneg %p268
      %p275 = scmp.eq.s32.totalorder %s23, 3
      %p276 = por %p274, %p275
      %p277 = scmp.ne.s32.totalorder %s269, %s272
      %p278 = scmp.eq.s32.totalorder %s23, 0
      %p279 = por %p277, %p278
      %p280 = scmp.ne.s32.totalorder %s269, %s272
      %p281 = scmp.eq.s32.totalorder %s28, 3
      %p282 = por %p280, %p281
      %p283 = scmp.ne.s32.totalorder %s272, %s273
      %p284 = scmp.eq.s32.totalorder %s28, 0
      %p285 = por %p283, %p284
      %p286 = scmp.ne.s32.totalorder %s272, %s273
      %p287 = scmp.eq.s32.totalorder %s29, 3
      %p288 = por %p286, %p287
      %p290 = scmp.ne.s32.totalorder %s273, %s289
      %p291 = scmp.eq.s32.totalorder %s29, 0
      %p292 = por %p290, %p291
      %s293 = ssub.s32 %s31, %s38
      %p294 = scmp.eq.s32.totalorder %s293, 0
      %s296 = sadd.s32 %s295, 1
      %s297 = scalar_select %p294, %s295, %s296
      %p300 = pneg %p294
      %p301 = scmp.eq.s32.totalorder %s23, 3
      %p302 = por %p300, %p301
      %p303 = scmp.ne.s32.totalorder %s295, %s298
      %p304 = scmp.eq.s32.totalorder %s23, 0
      %p305 = por %p303, %p304
      %p306 = scmp.ne.s32.totalorder %s295, %s298
      %p307 = scmp.eq.s32.totalorder %s28, 3
      %p308 = por %p306, %p307
      %p309 = scmp.ne.s32.totalorder %s298, %s299
      %p310 = scmp.eq.s32.totalorder %s28, 0
      %p311 = por %p309, %p310
      %p312 = scmp.ne.s32.totalorder %s298, %s299
      %p313 = scmp.eq.s32.totalorder %s29, 3
      %p314 = por %p312, %p313
      %p316 = scmp.ne.s32.totalorder %s299, %s315
      %p317 = scmp.eq.s32.totalorder %s29, 0
      %p318 = por %p316, %p317
      %s319 = ssub.s32 %s31, %s38
      %p320 = scmp.eq.s32.totalorder %s319, 0
      %s322 = sadd.s32 %s321, 1
      %s323 = scalar_select %p320, %s321, %s322
      %p326 = pneg %p320
      %p327 = scmp.eq.s32.totalorder %s23, 3
      %p328 = por %p326, %p327
      %p329 = scmp.ne.s32.totalorder %s321, %s324
      %p330 = scmp.eq.s32.totalorder %s23, 0
      %p331 = por %p329, %p330
      %p332 = scmp.ne.s32.totalorder %s321, %s324
      %p333 = scmp.eq.s32.totalorder %s28, 3
      %p334 = por %p332, %p333
      %p335 = scmp.ne.s32.totalorder %s324, %s325
      %p336 = scmp.eq.s32.totalorder %s28, 0
      %p337 = por %p335, %p336
      %p338 = scmp.ne.s32.totalorder %s324, %s325
      %p339 = scmp.eq.s32.totalorder %s29, 3
      %p340 = por %p338, %p339
      %p342 = scmp.ne.s32.totalorder %s325, %s341
      %p343 = scmp.eq.s32.totalorder %s29, 0
      %p344 = por %p342, %p343
      %s345 = ssub.s32 %s31, %s38
      %p346 = scmp.eq.s32.totalorder %s345, 0
      %s348 = sadd.s32 %s347, 1
      %s349 = scalar_select %p346, %s347, %s348
      %p352 = pneg %p346
      %p353 = scmp.eq.s32.totalorder %s23, 3
      %p354 = por %p352, %p353
      %p355 = scmp.ne.s32.totalorder %s347, %s350
      %p356 = scmp.eq.s32.totalorder %s23, 0
      %p357 = por %p355, %p356
      %p358 = scmp.ne.s32.totalorder %s347, %s350
      %p359 = scmp.eq.s32.totalorder %s28, 3
      %p360 = por %p358, %p359
      %p361 = scmp.ne.s32.totalorder %s350, %s351
      %p362 = scmp.eq.s32.totalorder %s28, 0
      %p363 = por %p361, %p362
      %p364 = scmp.ne.s32.totalorder %s350, %s351
      %p365 = scmp.eq.s32.totalorder %s29, 3
      %p366 = por %p364, %p365
      %p368 = scmp.ne.s32.totalorder %s351, %s367
      %p369 = scmp.eq.s32.totalorder %s29, 0
      %p370 = por %p368, %p369
      %s371 = ssub.s32 %s31, %s38
      %p372 = scmp.eq.s32.totalorder %s371, 0
      %s374 = sadd.s32 %s373, 1
      %s375 = scalar_select %p372, %s373, %s374
      %p378 = pneg %p372
      %p379 = scmp.eq.s32.totalorder %s23, 3
      %p380 = por %p378, %p379
      %p381 = scmp.ne.s32.totalorder %s373, %s376
      %p382 = scmp.eq.s32.totalorder %s23, 0
      %p383 = por %p381, %p382
      %p384 = scmp.ne.s32.totalorder %s373, %s376
      %p385 = scmp.eq.s32.totalorder %s28, 3
      %p386 = por %p384, %p385
      %p387 = scmp.ne.s32.totalorder %s376, %s377
      %p388 = scmp.eq.s32.totalorder %s28, 0
      %p389 = por %p387, %p388
      %p390 = scmp.ne.s32.totalorder %s376, %s377
      %p391 = scmp.eq.s32.totalorder %s29, 3
      %p392 = por %p390, %p391
      %p394 = scmp.ne.s32.totalorder %s377, %s393
      %p395 = scmp.eq.s32.totalorder %s29, 0
      %p396 = por %p394, %p395
      %s397 = ssub.s32 %s30, %s42
      %p398 = scmp.eq.s32.totalorder %s397, 0
      %s400 = sadd.s32 %s399, 1
      %s401 = scalar_select %p398, %s399, %s400
      %p404 = pneg %p398
      %p405 = scmp.eq.s32.totalorder %s23, 3
      %p406 = por %p404, %p405
      %p407 = scmp.ne.s32.totalorder %s399, %s402
      %p408 = scmp.eq.s32.totalorder %s23, 0
      %p409 = por %p407, %p408
      %p410 = scmp.ne.s32.totalorder %s399, %s402
      %p411 = scmp.eq.s32.totalorder %s28, 3
      %p412 = por %p410, %p411
      %p413 = scmp.ne.s32.totalorder %s402, %s403
      %p414 = scmp.eq.s32.totalorder %s28, 0
      %p415 = por %p413, %p414
      %p416 = scmp.ne.s32.totalorder %s402, %s403
      %p417 = scmp.eq.s32.totalorder %s29, 3
      %p418 = por %p416, %p417
      %p420 = scmp.ne.s32.totalorder %s403, %s419
      %p421 = scmp.eq.s32.totalorder %s29, 0
      %p422 = por %p420, %p421
      %p423 = scmp.le.s32.totalorder 1, %s23
      %p424 = scmp.lt.s32.totalorder %s23, 5
      %p425 = pnand %p423, %p424
      %p426 = pneg %p425
      // Predicated region
      $region9: #{llama_layers_forward.1} parent=5 // pred_check
        _
      $region10: #{llama_layers_forward.1} parent=5 // pred_check_branch
        %428 = sbr.rel (%p425) target = $region12
      $region11: #{llama_layers_forward.1} parent=5 // pred_region
        %s429 = ssub.s32 %s23, 1
        // Predicated region
        $region13: #{llama_layers_forward.1} parent=11 // pred_check
          %p430 = pneg %p82
        $region14: #{llama_layers_forward.1} parent=11 // pred_check_branch
          %432 = sbr.rel (%p430) target = $region16
        $region15: #{llama_layers_forward.1} parent=11 // pred_region
          _
        $region16: #{llama_layers_forward.1} parent=11 // pred_fallthru
          _
        // Predicated region
        $region17: #{llama_layers_forward.1} parent=11 // pred_check
          %p433 = pneg %p103
        $region18: #{llama_layers_forward.1} parent=11 // pred_check_branch
          %435 = sbr.rel (%p433) target = $region20
        $region19: #{llama_layers_forward.1} parent=11 // pred_region
          _
        $region20: #{llama_layers_forward.1} parent=11 // pred_fallthru
          _
      $region12: #{llama_layers_forward.1} parent=5 // pred_fallthru
        _
      %p436 = scmp.lt.s32.totalorder %s23, 4
      // Predicated region
      $region21: #{llama_layers_forward.1} parent=5 // pred_check
        %p437 = pneg %p436
      $region22: #{llama_layers_forward.1} parent=5 // pred_check_branch
        %439 = sbr.rel (%p437) target = $region24
      $region23: #{llama_layers_forward.1} parent=5 // pred_region
        // Predicated region
        $region25: #{llama_layers_forward.1} parent=23 // pred_check
          %p440 = pneg %p55
        $region26: #{llama_layers_forward.1} parent=23 // pred_check_branch
          %442 = sbr.rel (%p440) target = $region28
        $region27: #{llama_layers_forward.1} parent=23 // pred_region
          %p443 = scmp.lt.s32.totalorder %s30, 1
          %s444 = scalar_select %p443, %s30, 1
          %s445 = smul.addr %s444, 8
          %s446 = scalar_lea.vmem %s0, %s445
        $region28: #{llama_layers_forward.1} parent=23 // pred_fallthru
          _
        // Predicated region
        $region29: #{llama_layers_forward.1} parent=23 // pred_check
          %p447 = pneg %p123
        $region30: #{llama_layers_forward.1} parent=23 // pred_check_branch
          %449 = sbr.rel (%p447) target = $region32
        $region31: #{llama_layers_forward.1} parent=23 // pred_region
          %p450 = scmp.lt.s32.totalorder %s31, 1
          %s451 = scalar_select %p450, %s31, 1
          %s452 = smul.addr %s451, 16
          %s453 = smul.addr %s452, 4
          %s454 = scalar_lea.vmem %s3, %s453
        $region32: #{llama_layers_forward.1} parent=23 // pred_fallthru
          _
        // Predicated region
        $region33: #{llama_layers_forward.1} parent=23 // pred_check
          %p455 = pneg %p149
        $region34: #{llama_layers_forward.1} parent=23 // pred_check_branch
          %457 = sbr.rel (%p455) target = $region36
        $region35: #{llama_layers_forward.1} parent=23 // pred_region
          %p458 = scmp.lt.s32.totalorder %s31, 1
          %s459 = scalar_select %p458, %s31, 1
          %s460 = smul.addr %s459, 16
          %s461 = smul.addr %s460, 4
          %s462 = scalar_lea.vmem %s4, %s461
        $region36: #{llama_layers_forward.1} parent=23 // pred_fallthru
          _
        // Predicated region
        $region37: #{llama_layers_forward.1} parent=23 // pred_check
          %p463 = pneg %p175
        $region38: #{llama_layers_forward.1} parent=23 // pred_check_branch
          %465 = sbr.rel (%p463) target = $region40
        $region39: #{llama_layers_forward.1} parent=23 // pred_region
          %p466 = scmp.lt.s32.totalorder %s31, 1
          %s467 = scalar_select %p466, %s31, 1
          %s468 = smul.addr %s467, 16
          %s469 = smul.addr %s468, 4
          %s470 = scalar_lea.vmem %s5, %s469
        $region40: #{llama_layers_forward.1} parent=23 // pred_fallthru
          _
        // Predicated region
        $region41: #{llama_layers_forward.1} parent=23 // pred_check
          %p471 = pneg %p201
        $region42: #{llama_layers_forward.1} parent=23 // pred_check_branch
          %473 = sbr.rel (%p471) target = $region44
        $region43: #{llama_layers_forward.1} parent=23 // pred_region
          %p474 = scmp.lt.s32.totalorder %s31, 1
          %s475 = scalar_select %p474, %s31, 1
          %s476 = smul.addr %s475, 16
          %s477 = smul.addr %s476, 4
          %s478 = scalar_lea.vmem %s6, %s477
        $region44: #{llama_layers_forward.1} parent=23 // pred_fallthru
          _
        // Predicated region
        $region45: #{llama_layers_forward.1} parent=23 // pred_check
          %p479 = pneg %p227
        $region46: #{llama_layers_forward.1} parent=23 // pred_check_branch
          %481 = sbr.rel (%p479) target = $region48
        $region47: #{llama_layers_forward.1} parent=23 // pred_region
          %p482 = scmp.lt.s32.totalorder %s31, 1
          %s483 = scalar_select %p482, %s31, 1
          %s484 = smul.addr %s483, 16
          %s485 = smul.addr %s484, 4
          %s486 = scalar_lea.vmem %s7, %s485
        $region48: #{llama_layers_forward.1} parent=23 // pred_fallthru
          _
        // Predicated region
        $region49: #{llama_layers_forward.1} parent=23 // pred_check
          %p487 = pneg %p253
        $region50: #{llama_layers_forward.1} parent=23 // pred_check_branch
          %489 = sbr.rel (%p487) target = $region52
        $region51: #{llama_layers_forward.1} parent=23 // pred_region
          %p490 = scmp.lt.s32.totalorder %s31, 1
          %s491 = scalar_select %p490, %s31, 1
          %s492 = smul.addr %s491, 4
          %s493 = smul.addr %s492, 4
          %s494 = scalar_lea.vmem %s8, %s493
        $region52: #{llama_layers_forward.1} parent=23 // pred_fallthru
          _
        // Predicated region
        $region53: #{llama_layers_forward.1} parent=23 // pred_check
          %p495 = pneg %p279
        $region54: #{llama_layers_forward.1} parent=23 // pred_check_branch
          %497 = sbr.rel (%p495) target = $region56
        $region55: #{llama_layers_forward.1} parent=23 // pred_region
          %p498 = scmp.lt.s32.totalorder %s31, 1
          %s499 = scalar_select %p498, %s31, 1
          %s500 = smul.addr %s499, 4
          %s501 = smul.addr %s500, 4
          %s502 = scalar_lea.vmem %s9, %s501
        $region56: #{llama_layers_forward.1} parent=23 // pred_fallthru
          _
        // Predicated region
        $region57: #{llama_layers_forward.1} parent=23 // pred_check
          %p503 = pneg %p305
        $region58: #{llama_layers_forward.1} parent=23 // pred_check_branch
          %505 = sbr.rel (%p503) target = $region60
        $region59: #{llama_layers_forward.1} parent=23 // pred_region
          %p506 = scmp.lt.s32.totalorder %s31, 1
          %s507 = scalar_select %p506, %s31, 1
          %s508 = smul.addr %s507, 4
          %s509 = smul.addr %s508, 4
          %s510 = scalar_lea.vmem %s10, %s509
        $region60: #{llama_layers_forward.1} parent=23 // pred_fallthru
          _
        // Predicated region
        $region61: #{llama_layers_forward.1} parent=23 // pred_check
          %p511 = pneg %p331
        $region62: #{llama_layers_forward.1} parent=23 // pred_check_branch
          %513 = sbr.rel (%p511) target = $region64
        $region63: #{llama_layers_forward.1} parent=23 // pred_region
          %p514 = scmp.lt.s32.totalorder %s31, 1
          %s515 = scalar_select %p514, %s31, 1
          %s516 = smul.addr %s515, 8
          %s517 = smul.addr %s516, 4
          %s518 = scalar_lea.vmem %s11, %s517
        $region64: #{llama_layers_forward.1} parent=23 // pred_fallthru
          _
        // Predicated region
        $region65: #{llama_layers_forward.1} parent=23 // pred_check
          %p519 = pneg %p357
        $region66: #{llama_layers_forward.1} parent=23 // pred_check_branch
          %521 = sbr.rel (%p519) target = $region68
        $region67: #{llama_layers_forward.1} parent=23 // pred_region
          %p522 = scmp.lt.s32.totalorder %s31, 1
          %s523 = scalar_select %p522, %s31, 1
          %s524 = scalar_lea.vmem %s12, %s523
        $region68: #{llama_layers_forward.1} parent=23 // pred_fallthru
          _
        // Predicated region
        $region69: #{llama_layers_forward.1} parent=23 // pred_check
          %p525 = pneg %p383
        $region70: #{llama_layers_forward.1} parent=23 // pred_check_branch
          %527 = sbr.rel (%p525) target = $region72
        $region71: #{llama_layers_forward.1} parent=23 // pred_region
          %p528 = scmp.lt.s32.totalorder %s31, 1
          %s529 = scalar_select %p528, %s31, 1
          %s530 = scalar_lea.vmem %s13, %s529
        $region72: #{llama_layers_forward.1} parent=23 // pred_fallthru
          _
      $region24: #{llama_layers_forward.1} parent=5 // pred_fallthru
        _
      %p531 = scmp.le.s32.totalorder 1, %s23
      %p532 = scmp.lt.s32.totalorder %s23, 5
      %p533 = pnand %p531, %p532
      %p534 = pneg %p533
      // Predicated region
      $region73: #{llama_layers_forward.1} parent=5 // pred_check
        _
      $region74: #{llama_layers_forward.1} parent=5 // pred_check_branch
        %536 = sbr.rel (%p533) target = $region76
      $region75: #{llama_layers_forward.1} parent=5 // pred_region
        %s537 = ssub.s32 %s23, 1
        %p538 = scmp.lt.s32.totalorder %s32, 1
        %s539 = scalar_select %p538, %s32, 1
        %s540 = smul.addr %s539, 8
        %s541 = scalar_lea.vmem %s0, %s540
        %p542 = pneg %p61
        %p543 = pneg %p58
        %p544 = pneg %p82
        %p545 = pneg %p79
        %p546 = pneg %p103
        %p547 = pneg %p100
        %p548 = scmp.lt.s32.totalorder %s33, 1
        %s549 = scalar_select %p548, %s33, 1
        %s550 = smul.addr %s549, 16
        %s551 = smul.addr %s550, 4
        %s552 = scalar_lea.vmem %s3, %s551
        %p553 = pneg %p129
        %p554 = pneg %p126
        %p555 = scmp.lt.s32.totalorder %s33, 1
        %s556 = scalar_select %p555, %s33, 1
        %s557 = smul.addr %s556, 16
        %s558 = smul.addr %s557, 4
        %s559 = scalar_lea.vmem %s4, %s558
        %p560 = pneg %p155
        %p561 = pneg %p152
        %p562 = scmp.lt.s32.totalorder %s33, 1
        %s563 = scalar_select %p562, %s33, 1
        %s564 = smul.addr %s563, 16
        %s565 = smul.addr %s564, 4
        %s566 = scalar_lea.vmem %s5, %s565
        %p567 = pneg %p181
        %p568 = pneg %p178
        %p569 = scmp.lt.s32.totalorder %s33, 1
        %s570 = scalar_select %p569, %s33, 1
        %s571 = smul.addr %s570, 16
        %s572 = smul.addr %s571, 4
        %s573 = scalar_lea.vmem %s6, %s572
        %p574 = pneg %p207
        %p575 = pneg %p204
        %p576 = scmp.lt.s32.totalorder %s33, 1
        %s577 = scalar_select %p576, %s33, 1
        %s578 = smul.addr %s577, 16
        %s579 = smul.addr %s578, 4
        %s580 = scalar_lea.vmem %s7, %s579
        %p581 = pneg %p233
        %p582 = pneg %p230
        %p583 = scmp.lt.s32.totalorder %s33, 1
        %s584 = scalar_select %p583, %s33, 1
        %s585 = smul.addr %s584, 4
        %s586 = smul.addr %s585, 4
        %s587 = scalar_lea.vmem %s8, %s586
        %p588 = pneg %p259
        %p589 = pneg %p256
        %p590 = scmp.lt.s32.totalorder %s33, 1
        %s591 = scalar_select %p590, %s33, 1
        %s592 = smul.addr %s591, 4
        %s593 = smul.addr %s592, 4
        %s594 = scalar_lea.vmem %s9, %s593
        %p595 = pneg %p285
        %p596 = pneg %p282
        %p597 = scmp.lt.s32.totalorder %s33, 1
        %s598 = scalar_select %p597, %s33, 1
        %s599 = smul.addr %s598, 4
        %s600 = smul.addr %s599, 4
        %s601 = scalar_lea.vmem %s10, %s600
        %p602 = pneg %p311
        %p603 = pneg %p308
        %p604 = scmp.lt.s32.totalorder %s33, 1
        %s605 = scalar_select %p604, %s33, 1
        %s606 = smul.addr %s605, 8
        %s607 = smul.addr %s606, 4
        %s608 = scalar_lea.vmem %s11, %s607
        %p609 = pneg %p337
        %p610 = pneg %p334
        %p611 = scmp.lt.s32.totalorder %s33, 1
        %s612 = scalar_select %p611, %s33, 1
        %s613 = scalar_lea.vmem %s12, %s612
        %p614 = pneg %p363
        %p615 = pneg %p360
        %p616 = scmp.lt.s32.totalorder %s33, 1
        %s617 = scalar_select %p616, %s33, 1
        %s618 = scalar_lea.vmem %s13, %s617
        %p619 = pneg %p389
        %p620 = pneg %p386
        %p621 = pneg %p415
        %p622 = pneg %p412
        %s623 = sand.u32 %s402, 1
        %s624 = scalar_lea.sflag [#allocation3], %s623
        %s625 = sand.u32 %s402, 1
        %s626 = smul.addr %s625, 8
        %s627 = scalar_lea.vmem [#allocation2], %s626
        %p628 = scmp.lt.s32.totalorder %s32, 1
        %s629 = scalar_select %p628, %s32, 1
        %s630 = smul.addr %s629, 8
        %s631 = scalar_lea.vmem %s0, %s630
        %p632 = scmp.lt.s32.totalorder %s33, 1
        %s633 = scalar_select %p632, %s33, 1
        %s634 = smul.addr %s633, 16
        %s635 = smul.addr %s634, 4
        %s636 = scalar_lea.vmem %s3, %s635
        %p637 = scmp.lt.s32.totalorder %s33, 1
        %s638 = scalar_select %p637, %s33, 1
        %s639 = smul.addr %s638, 16
        %s640 = smul.addr %s639, 4
        %s641 = scalar_lea.vmem %s4, %s640
        %p642 = scmp.lt.s32.totalorder %s33, 1
        %s643 = scalar_select %p642, %s33, 1
        %s644 = smul.addr %s643, 16
        %s645 = smul.addr %s644, 4
        %s646 = scalar_lea.vmem %s5, %s645
        %p647 = scmp.lt.s32.totalorder %s33, 1
        %s648 = scalar_select %p647, %s33, 1
        %s649 = smul.addr %s648, 16
        %s650 = smul.addr %s649, 4
        %s651 = scalar_lea.vmem %s6, %s650
        %p652 = scmp.lt.s32.totalorder %s33, 1
        %s653 = scalar_select %p652, %s33, 1
        %s654 = smul.addr %s653, 16
        %s655 = smul.addr %s654, 4
        %s656 = scalar_lea.vmem %s7, %s655
        %p657 = scmp.lt.s32.totalorder %s33, 1
        %s658 = scalar_select %p657, %s33, 1
        %s659 = smul.addr %s658, 4
        %s660 = smul.addr %s659, 4
        %s661 = scalar_lea.vmem %s8, %s660
        %p662 = scmp.lt.s32.totalorder %s33, 1
        %s663 = scalar_select %p662, %s33, 1
        %s664 = smul.addr %s663, 4
        %s665 = smul.addr %s664, 4
        %s666 = scalar_lea.vmem %s9, %s665
        %p667 = scmp.lt.s32.totalorder %s33, 1
        %s668 = scalar_select %p667, %s33, 1
        %s669 = smul.addr %s668, 4
        %s670 = smul.addr %s669, 4
        %s671 = scalar_lea.vmem %s10, %s670
        %p672 = scmp.lt.s32.totalorder %s33, 1
        %s673 = scalar_select %p672, %s33, 1
        %s674 = smul.addr %s673, 8
        %s675 = smul.addr %s674, 4
        %s676 = scalar_lea.vmem %s11, %s675
        %p677 = scmp.lt.s32.totalorder %s33, 1
        %s678 = scalar_select %p677, %s33, 1
        %s679 = scalar_lea.vmem %s12, %s678
        %p680 = scmp.lt.s32.totalorder %s33, 1
        %s681 = scalar_select %p680, %s33, 1
        %s682 = scalar_lea.vmem %s13, %s681
        %p684 = scmp.eq.s32.totalorder %s33, 0
        // Predicated region
        $region77: #{llama_layers_forward.1} parent=75 // pred_check
          %p685 = pneg %p684
        $region78: #{llama_layers_forward.1} parent=75 // pred_check_branch
          %687 = sbr.rel (%p685) target = $region80
        $region79: #{llama_layers_forward.1} parent=75 // pred_region
          %v688 = vld [vmem:[%s631] sm:$0xff]
          %vm689 = vcmask 261120
          %690 = vst.msk [vmem:[%s627] sm:$0xff] %vm689, %v688
        $region80: #{llama_layers_forward.1} parent=75 // pred_fallthru
          _
        %v691 = vld [vmem:[%s627] sm:$0xff]
        %v692 = vld [vmem:[%s1] sm:$0xff]
        %v693 = vld [vmem:[%s2] sm:$0xff]
        %v694 = vlaneseq
        %v695 = vshrl.u32 %v694, 7
        %v696 = vlaneseq
        %v697 = vand.u32 %v696, 127
        %vm698 = vcmp.ge.s32.totalorder %v695, %v697
        %v699 = vld [vmem:[%s679] sm:$0x1]
        %v700 = vmul.f32 %v691, %v691
        %vm701 = vcmask 261120
        %v702 = vsel %vm701, %v700, 0.0
        %703 = vadd.xlane.f32.xlu0 %v702
        %v704 = vpop.xlane.xlu0 %703
        %v705 = vrcp.pop 32.0
        %v706 = vmul.f32 %v704, %v705
        %v707 = vadd.f32 %v706, 1e-06
        %v708 = vrsqrt.pop %v707
        %v709 = vmul.f32 %v691, %v708
        %v711 = vlaneseq
        %v712 = vshrl.u32 %v711, 7
        %v713 = vsub.s32 0, %v712
        %v714 = vrot.slane %v699, %v713
        %v716 = vmul.f32 %v709, %v714
        %v717 = vpack.c.bf16 %v716, %v716
        %v718 = vld [vmem:[%s636] sm:$0xf]
        %v719 = vld [vmem:[%s636 + $0x4] sm:$0xf]
        %v720 = vld [vmem:[%s636 + $0x8] sm:$0xf]
        %v721 = vld [vmem:[%s636 + $0xc] sm:$0xf]
        %v726 = vunpack.c.l.b16 %v718
        %v727 = vunpack.c.l.b16 %v719
        %v728 = vunpack.c.l.b16 %v720
        %v729 = vunpack.c.l.b16 %v721
        %v730 = vpack.c.b16 %v727, %v726
        %v731 = vpack.c.b16 %v729, %v728
        %v735 = vsel %vm701, %v717, 0
        %737 = vmatprep.subr.bf16.mxu0 0
        %738 = vmatpush1.bf16.msra.mxu0 %v730
        %739 = vmatprep.subr.bf16.mxu0 0
        %740 = vmatpush1.bf16.msra.mxu0 %v731
        %741 = vmatprep.subr.bf16.mxu0 0
        %742 = vmatpush1.bf16.msra.mxu0 0
        %743 = vmatprep.subr.bf16.mxu0 0
        %744 = vmatpush1.bf16.msra.mxu0 0
        %745 = vmatprep.subr.bf16.mxu0 0
        %746 = vmatpush1.bf16.msra.mxu0 0
        %747 = vmatprep.subr.bf16.mxu0 0
        %748 = vmatpush1.bf16.msra.mxu0 0
        %749 = vmatprep.subr.bf16.mxu0 0
        %750 = vmatpush1.bf16.msra.mxu0 0
        %751 = vmatprep.subr.bf16.mxu0 0
        %752 = vmatpush1.bf16.msra.mxu0 0
        %753 = vmatprep.subr.bf16.mxu0 0
        %754 = vmatpush1.bf16.msra.mxu0 0
        %755 = vmatprep.subr.bf16.mxu0 0
        %756 = vmatpush1.bf16.msra.mxu0 0
        %757 = vmatprep.subr.bf16.mxu0 0
        %758 = vmatpush1.bf16.msra.mxu0 0
        %759 = vmatprep.subr.bf16.mxu0 0
        %760 = vmatpush1.bf16.msra.mxu0 0
        %761 = vmatprep.subr.bf16.mxu0 0
        %762 = vmatpush1.bf16.msra.mxu0 0
        %763 = vmatprep.subr.bf16.mxu0 0
        %764 = vmatpush1.bf16.msra.mxu0 0
        %765 = vmatprep.subr.bf16.mxu0 0
        %766 = vmatpush1.bf16.msra.mxu0 0
        %767 = vmatprep.subr.bf16.mxu0 0
        %768 = vmatpush1.bf16.msra.mxu0 0
        %769 = vmatprep.mubr.bf16.mxu0 0
        %770 = vmatmul.mubr.bf16.gmra.mrb[0].mxu0 %v735
        %v771 = vpop.f32.mrb[0].mxu0
        %v772 = vadd.f32 0.0, %v771
        %v773 = vpop.f32.mrb[0].mxu0
        %v774 = vpop.f32.mrb[0].mxu0
        %v775 = vpop.f32.mrb[0].mxu0
        %776 = vdwg.mxu0
        %v777 = vmul.f32 %v772, %v692
        %v778 = vld [vmem:[%s641] sm:$0xf]
        %v779 = vld [vmem:[%s641 + $0x4] sm:$0xf]
        %v780 = vld [vmem:[%s641 + $0x8] sm:$0xf]
        %v781 = vld [vmem:[%s641 + $0xc] sm:$0xf]
        %v786 = vunpack.c.l.b16 %v778
        %v787 = vunpack.c.l.b16 %v779
        %v788 = vunpack.c.l.b16 %v780
        %v789 = vunpack.c.l.b16 %v781
        %v790 = vpack.c.b16 %v787, %v786
        %v791 = vpack.c.b16 %v789, %v788
        %794 = vmatprep.subr.bf16.mxu0 0
        %795 = vmatpush1.bf16.msra.mxu0 %v790
        %796 = vmatprep.subr.bf16.mxu0 0
        %797 = vmatpush1.bf16.msra.mxu0 %v791
        %798 = vmatprep.subr.bf16.mxu0 0
        %799 = vmatpush1.bf16.msra.mxu0 0
        %800 = vmatprep.subr.bf16.mxu0 0
        %801 = vmatpush1.bf16.msra.mxu0 0
        %802 = vmatprep.subr.bf16.mxu0 0
        %803 = vmatpush1.bf16.msra.mxu0 0
        %804 = vmatprep.subr.bf16.mxu0 0
        %805 = vmatpush1.bf16.msra.mxu0 0
        %806 = vmatprep.subr.bf16.mxu0 0
        %807 = vmatpush1.bf16.msra.mxu0 0
        %808 = vmatprep.subr.bf16.mxu0 0
        %809 = vmatpush1.bf16.msra.mxu0 0
        %810 = vmatprep.subr.bf16.mxu0 0
        %811 = vmatpush1.bf16.msra.mxu0 0
        %812 = vmatprep.subr.bf16.mxu0 0
        %813 = vmatpush1.bf16.msra.mxu0 0
        %814 = vmatprep.subr.bf16.mxu0 0
        %815 = vmatpush1.bf16.msra.mxu0 0
        %816 = vmatprep.subr.bf16.mxu0 0
        %817 = vmatpush1.bf16.msra.mxu0 0
        %818 = vmatprep.subr.bf16.mxu0 0
        %819 = vmatpush1.bf16.msra.mxu0 0
        %820 = vmatprep.subr.bf16.mxu0 0
        %821 = vmatpush1.bf16.msra.mxu0 0
        %822 = vmatprep.subr.bf16.mxu0 0
        %823 = vmatpush1.bf16.msra.mxu0 0
        %824 = vmatprep.subr.bf16.mxu0 0
        %825 = vmatpush1.bf16.msra.mxu0 0
        %826 = vmatprep.mubr.bf16.mxu0 0
        %827 = vmatmul.mubr.bf16.gmra.mrb[0].mxu0 %v735
        %v828 = vpop.f32.mrb[0].mxu0
        %v829 = vadd.f32 0.0, %v828
        %v830 = vpop.f32.mrb[0].mxu0
        %v831 = vpop.f32.mrb[0].mxu0
        %v832 = vpop.f32.mrb[0].mxu0
        %833 = vdwg.mxu0
        %v834 = vmul.f32 %v829, %v693
        %v835 = vadd.f32 %v777, %v834
        %v836 = vld [vmem:[%s646] sm:$0xf]
        %v837 = vld [vmem:[%s646 + $0x4] sm:$0xf]
        %v838 = vld [vmem:[%s646 + $0x8] sm:$0xf]
        %v839 = vld [vmem:[%s646 + $0xc] sm:$0xf]
        %v844 = vunpack.c.l.b16 %v836
        %v845 = vunpack.c.l.b16 %v837
        %v846 = vunpack.c.l.b16 %v838
        %v847 = vunpack.c.l.b16 %v839
        %v848 = vpack.c.b16 %v845, %v844
        %v849 = vpack.c.b16 %v847, %v846
        %852 = vmatprep.subr.bf16.mxu0 0
        %853 = vmatpush1.bf16.msra.mxu0 %v848
        %854 = vmatprep.subr.bf16.mxu0 0
        %855 = vmatpush1.bf16.msra.mxu0 %v849
        %856 = vmatprep.subr.bf16.mxu0 0
        %857 = vmatpush1.bf16.msra.mxu0 0
        %858 = vmatprep.subr.bf16.mxu0 0
        %859 = vmatpush1.bf16.msra.mxu0 0
        %860 = vmatprep.subr.bf16.mxu0 0
        %861 = vmatpush1.bf16.msra.mxu0 0
        %862 = vmatprep.subr.bf16.mxu0 0
        %863 = vmatpush1.bf16.msra.mxu0 0
        %864 = vmatprep.subr.bf16.mxu0 0
        %865 = vmatpush1.bf16.msra.mxu0 0
        %866 = vmatprep.subr.bf16.mxu0 0
        %867 = vmatpush1.bf16.msra.mxu0 0
        %868 = vmatprep.subr.bf16.mxu0 0
        %869 = vmatpush1.bf16.msra.mxu0 0
        %870 = vmatprep.subr.bf16.mxu0 0
        %871 = vmatpush1.bf16.msra.mxu0 0
        %872 = vmatprep.subr.bf16.mxu0 0
        %873 = vmatpush1.bf16.msra.mxu0 0
        %874 = vmatprep.subr.bf16.mxu0 0
        %875 = vmatpush1.bf16.msra.mxu0 0
        %876 = vmatprep.subr.bf16.mxu0 0
        %877 = vmatpush1.bf16.msra.mxu0 0
        %878 = vmatprep.subr.bf16.mxu0 0
        %879 = vmatpush1.bf16.msra.mxu0 0
        %880 = vmatprep.subr.bf16.mxu0 0
        %881 = vmatpush1.bf16.msra.mxu0 0
        %882 = vmatprep.subr.bf16.mxu0 0
        %883 = vmatpush1.bf16.msra.mxu0 0
        %884 = vmatprep.mubr.bf16.mxu0 0
        %885 = vmatmul.mubr.bf16.gmra.mrb[0].mxu0 %v735
        %v886 = vpop.f32.mrb[0].mxu0
        %v887 = vadd.f32 0.0, %v886
        %v888 = vpop.f32.mrb[0].mxu0
        %v889 = vpop.f32.mrb[0].mxu0
        %v890 = vpop.f32.mrb[0].mxu0
        %891 = vdwg.mxu0
        %v892 = vmul.f32 %v887, %v692
        %v893 = vld [vmem:[%s651] sm:$0xf]
        %v894 = vld [vmem:[%s651 + $0x4] sm:$0xf]
        %v895 = vld [vmem:[%s651 + $0x8] sm:$0xf]
        %v896 = vld [vmem:[%s651 + $0xc] sm:$0xf]
        %v901 = vunpack.c.l.b16 %v893
        %v902 = vunpack.c.l.b16 %v894
        %v903 = vunpack.c.l.b16 %v895
        %v904 = vunpack.c.l.b16 %v896
        %v905 = vpack.c.b16 %v902, %v901
        %v906 = vpack.c.b16 %v904, %v903
        %909 = vmatprep.subr.bf16.mxu0 0
        %910 = vmatpush1.bf16.msra.mxu0 %v905
        %911 = vmatprep.subr.bf16.mxu0 0
        %912 = vmatpush1.bf16.msra.mxu0 %v906
        %913 = vmatprep.subr.bf16.mxu0 0
        %914 = vmatpush1.bf16.msra.mxu0 0
        %915 = vmatprep.subr.bf16.mxu0 0
        %916 = vmatpush1.bf16.msra.mxu0 0
        %917 = vmatprep.subr.bf16.mxu0 0
        %918 = vmatpush1.bf16.msra.mxu0 0
        %919 = vmatprep.subr.bf16.mxu0 0
        %920 = vmatpush1.bf16.msra.mxu0 0
        %921 = vmatprep.subr.bf16.mxu0 0
        %922 = vmatpush1.bf16.msra.mxu0 0
        %923 = vmatprep.subr.bf16.mxu0 0
        %924 = vmatpush1.bf16.msra.mxu0 0
        %925 = vmatprep.subr.bf16.mxu0 0
        %926 = vmatpush1.bf16.msra.mxu0 0
        %927 = vmatprep.subr.bf16.mxu0 0
        %928 = vmatpush1.bf16.msra.mxu0 0
        %929 = vmatprep.subr.bf16.mxu0 0
        %930 = vmatpush1.bf16.msra.mxu0 0
        %931 = vmatprep.subr.bf16.mxu0 0
        %932 = vmatpush1.bf16.msra.mxu0 0
        %933 = vmatprep.subr.bf16.mxu0 0
        %934 = vmatpush1.bf16.msra.mxu0 0
        %935 = vmatprep.subr.bf16.mxu0 0
        %936 = vmatpush1.bf16.msra.mxu0 0
        %937 = vmatprep.subr.bf16.mxu0 0
        %938 = vmatpush1.bf16.msra.mxu0 0
        %939 = vmatprep.subr.bf16.mxu0 0
        %940 = vmatpush1.bf16.msra.mxu0 0
        %941 = vmatprep.mubr.bf16.mxu0 0
        %942 = vmatmul.mubr.bf16.gmra.mrb[0].mxu0 %v735
        %v943 = vpop.f32.mrb[0].mxu0
        %v944 = vadd.f32 0.0, %v943
        %v945 = vpop.f32.mrb[0].mxu0
        %v946 = vpop.f32.mrb[0].mxu0
        %v947 = vpop.f32.mrb[0].mxu0
        %948 = vdwg.mxu0
        %v949 = vmul.f32 %v944, %v693
        %v950 = vadd.f32 %v892, %v949
        %v951 = vld [vmem:[%s656] sm:$0xf]
        %v952 = vld [vmem:[%s656 + $0x4] sm:$0xf]
        %v953 = vld [vmem:[%s656 + $0x8] sm:$0xf]
        %v954 = vld [vmem:[%s656 + $0xc] sm:$0xf]
        %v959 = vunpack.c.l.b16 %v951
        %v960 = vunpack.c.l.b16 %v952
        %v961 = vunpack.c.l.b16 %v953
        %v962 = vunpack.c.l.b16 %v954
        %v963 = vpack.c.b16 %v960, %v959
        %v964 = vpack.c.b16 %v962, %v961
        %967 = vmatprep.subr.bf16.mxu0 0
        %968 = vmatpush1.bf16.msra.mxu0 %v963
        %969 = vmatprep.subr.bf16.mxu0 0
        %970 = vmatpush1.bf16.msra.mxu0 %v964
        %971 = vmatprep.subr.bf16.mxu0 0
        %972 = vmatpush1.bf16.msra.mxu0 0
        %973 = vmatprep.subr.bf16.mxu0 0
        %974 = vmatpush1.bf16.msra.mxu0 0
        %975 = vmatprep.subr.bf16.mxu0 0
        %976 = vmatpush1.bf16.msra.mxu0 0
        %977 = vmatprep.subr.bf16.mxu0 0
        %978 = vmatpush1.bf16.msra.mxu0 0
        %979 = vmatprep.subr.bf16.mxu0 0
        %980 = vmatpush1.bf16.msra.mxu0 0
        %981 = vmatprep.subr.bf16.mxu0 0
        %982 = vmatpush1.bf16.msra.mxu0 0
        %983 = vmatprep.subr.bf16.mxu0 0
        %984 = vmatpush1.bf16.msra.mxu0 0
        %985 = vmatprep.subr.bf16.mxu0 0
        %986 = vmatpush1.bf16.msra.mxu0 0
        %987 = vmatprep.subr.bf16.mxu0 0
        %988 = vmatpush1.bf16.msra.mxu0 0
        %989 = vmatprep.subr.bf16.mxu0 0
        %990 = vmatpush1.bf16.msra.mxu0 0
        %991 = vmatprep.subr.bf16.mxu0 0
        %992 = vmatpush1.bf16.msra.mxu0 0
        %993 = vmatprep.subr.bf16.mxu0 0
        %994 = vmatpush1.bf16.msra.mxu0 0
        %995 = vmatprep.subr.bf16.mxu0 0
        %996 = vmatpush1.bf16.msra.mxu0 0
        %997 = vmatprep.subr.bf16.mxu0 0
        %998 = vmatpush1.bf16.msra.mxu0 0
        %999 = vmatprep.mubr.bf16.mxu0 0
        %1000 = vmatmul.mubr.bf16.gmra.mrb[0].mxu0 %v735
        %v1001 = vpop.f32.mrb[0].mxu0
        %v1002 = vadd.f32 0.0, %v1001
        %v1003 = vpop.f32.mrb[0].mxu0
        %v1004 = vpop.f32.mrb[0].mxu0
        %v1005 = vpop.f32.mrb[0].mxu0
        %1006 = vdwg.mxu0
        %v1007 = vpack.c.bf16 %v835, %v835
        %v1008 = vpack.c.bf16 %v950, %v950
        %vm1009 = vcmask 64512
        %v1011 = vsel %vm1009, %v1007, 0
        %v1014 = vsel %vm1009, %v1008, 0
        %1016 = vmatprep.subr.bf16.mxu0 0
        %1017 = vmatpush1.bf16.xpose.msra.mxu0 %v1014
        %1018 = vmatprep.subr.bf16.mxu0 0
        %1019 = vmatpush1.bf16.xpose.msra.mxu0 0
        %1020 = vmatprep.subr.bf16.mxu0 0
        %1021 = vmatpush1.bf16.xpose.msra.mxu0 0
        %1022 = vmatprep.subr.bf16.mxu0 0
        %1023 = vmatpush1.bf16.xpose.msra.mxu0 0
        %1024 = vmatprep.subr.bf16.mxu0 0
        %1025 = vmatpush1.bf16.xpose.msra.mxu0 0
        %1026 = vmatprep.subr.bf16.mxu0 0
        %1027 = vmatpush1.bf16.xpose.msra.mxu0 0
        %1028 = vmatprep.subr.bf16.mxu0 0
        %1029 = vmatpush1.bf16.xpose.msra.mxu0 0
        %1030 = vmatprep.subr.bf16.mxu0 0
        %1031 = vmatpush1.bf16.xpose.msra.mxu0 0
        %1032 = vmatprep.subr.bf16.mxu0 0
        %1033 = vmatpush1.bf16.xpose.msra.mxu0 0
        %1034 = vmatprep.subr.bf16.mxu0 0
        %1035 = vmatpush1.bf16.xpose.msra.mxu0 0
        %1036 = vmatprep.subr.bf16.mxu0 0
        %1037 = vmatpush1.bf16.xpose.msra.mxu0 0
        %1038 = vmatprep.subr.bf16.mxu0 0
        %1039 = vmatpush1.bf16.xpose.msra.mxu0 0
        %1040 = vmatprep.subr.bf16.mxu0 0
        %1041 = vmatpush1.bf16.xpose.msra.mxu0 0
        %1042 = vmatprep.subr.bf16.mxu0 0
        %1043 = vmatpush1.bf16.xpose.msra.mxu0 0
        %1044 = vmatprep.subr.bf16.mxu0 0
        %1045 = vmatpush1.bf16.xpose.msra.mxu0 0
        %1046 = vmatprep.subr.bf16.mxu0 0
        %1047 = vmatpush1.bf16.xpose.msra.mxu0 0
        %1048 = vmatprep.mubr.bf16.mxu0 0
        %1049 = vmatmul.mubr.bf16.gmra.mrb[0].mxu0 %v1011
        %v1050 = vpop.f32.mrb[0].mxu0
        %v1051 = vadd.f32 0.0, %v1050
        %v1052 = vpop.f32.mrb[0].mxu0
        %v1053 = vpop.f32.mrb[0].mxu0
        %v1054 = vpop.f32.mrb[0].mxu0
        %1055 = vdwg.mxu0
        %v1056 = vsel %vm698, %v1051, -1e+30
        %v1057 = vsel %vm1009, %v1056, -inf
        %1058 = vmax.xlane.f32.xlu0 %v1057
        %v1059 = vpop.xlane.xlu0 %1058
        %v1060 = vsub.f32 %v1056, %v1059
        %v1061 = vmul.f32 %v1060, 1.442695
        %v1062 = vpow.pop %v1061
        %v1063 = vsel %vm1009, %v1062, 0.0
        %1064 = vadd.xlane.f32.xlu0 %v1063
        %v1065 = vpop.xlane.xlu0 %1064
        %v1066 = vrcp.pop %v1065
        %v1067 = vmul.f32 %v1062, %v1066
        %v1068 = vpack.c.bf16 %v1067, %v1067
        %v1069 = vpack.c.bf16 %v1002, %v1002
        %v1071 = vsel %vm1009, %v1068, 0
        %vm1073 = vcmask 1043456
        %v1075 = vsel %vm1073, %v1069, 0
        %1077 = vmatprep.subr.bf16.mxu0 0
        %1078 = vmatpush1.bf16.msra.mxu0 %v1075
        %1079 = vmatprep.subr.bf16.mxu0 0
        %1080 = vmatpush1.bf16.msra.mxu0 0
        %1081 = vmatprep.subr.bf16.mxu0 0
        %1082 = vmatpush1.bf16.msra.mxu0 0
        %1083 = vmatprep.subr.bf16.mxu0 0
        %1084 = vmatpush1.bf16.msra.mxu0 0
        %1085 = vmatprep.subr.bf16.mxu0 0
        %1086 = vmatpush1.bf16.msra.mxu0 0
        %1087 = vmatprep.subr.bf16.mxu0 0
        %1088 = vmatpush1.bf16.msra.mxu0 0
        %1089 = vmatprep.subr.bf16.mxu0 0
        %1090 = vmatpush1.bf16.msra.mxu0 0
        %1091 = vmatprep.subr.bf16.mxu0 0
        %1092 = vmatpush1.bf16.msra.mxu0 0
        %1093 = vmatprep.subr.bf16.mxu0 0
        %1094 = vmatpush1.bf16.msra.mxu0 0
        %1095 = vmatprep.subr.bf16.mxu0 0
        %1096 = vmatpush1.bf16.msra.mxu0 0
        %1097 = vmatprep.subr.bf16.mxu0 0
        %1098 = vmatpush1.bf16.msra.mxu0 0
        %1099 = vmatprep.subr.bf16.mxu0 0
        %1100 = vmatpush1.bf16.msra.mxu0 0
        %1101 = vmatprep.subr.bf16.mxu0 0
        %1102 = vmatpush1.bf16.msra.mxu0 0
        %1103 = vmatprep.subr.bf16.mxu0 0
        %1104 = vmatpush1.bf16.msra.mxu0 0
        %1105 = vmatprep.subr.bf16.mxu0 0
        %1106 = vmatpush1.bf16.msra.mxu0 0
        %1107 = vmatprep.subr.bf16.mxu0 0
        %1108 = vmatpush1.bf16.msra.mxu0 0
        %1109 = vmatprep.mubr.bf16.mxu0 0
        %1110 = vmatmul.mubr.bf16.gmra.mrb[0].mxu0 %v1071
        %v1111 = vpop.f32.mrb[0].mxu0
        %v1112 = vadd.f32 0.0, %v1111
        %v1113 = vpop.f32.mrb[0].mxu0
        %v1114 = vpop.f32.mrb[0].mxu0
        %v1115 = vpop.f32.mrb[0].mxu0
        %1116 = vdwg.mxu0
        %v1117 = vpack.c.bf16 %v1112, %v1112
        %v1118 = vld [vmem:[%s661] sm:$0xf]
        %s1119 = scalar_lea.vmem %s636, 16
        %v1120 = vld [vmem:[%s1119] sm:$0xf]
        %v1121 = vld [vmem:[%s1119 + $0x4] sm:$0xf]
        %v1122 = vld [vmem:[%s1119 + $0x8] sm:$0xf]
        %v1123 = vld [vmem:[%s1119 + $0xc] sm:$0xf]
        %v1128 = vunpack.c.l.b16 %v1120
        %v1129 = vunpack.c.l.b16 %v1121
        %v1130 = vunpack.c.l.b16 %v1122
        %v1131 = vunpack.c.l.b16 %v1123
        %v1132 = vpack.c.b16 %v1129, %v1128
        %v1133 = vpack.c.b16 %v1131, %v1130
        %1136 = vmatprep.subr.bf16.mxu0 0
        %1137 = vmatpush1.bf16.msra.mxu0 %v1132
        %1138 = vmatprep.subr.bf16.mxu0 0
        %1139 = vmatpush1.bf16.msra.mxu0 %v1133
        %1140 = vmatprep.subr.bf16.mxu0 0
        %1141 = vmatpush1.bf16.msra.mxu0 0
        %1142 = vmatprep.subr.bf16.mxu0 0
        %1143 = vmatpush1.bf16.msra.mxu0 0
        %1144 = vmatprep.subr.bf16.mxu0 0
        %1145 = vmatpush1.bf16.msra.mxu0 0
        %1146 = vmatprep.subr.bf16.mxu0 0
        %1147 = vmatpush1.bf16.msra.mxu0 0
        %1148 = vmatprep.subr.bf16.mxu0 0
        %1149 = vmatpush1.bf16.msra.mxu0 0
        %1150 = vmatprep.subr.bf16.mxu0 0
        %1151 = vmatpush1.bf16.msra.mxu0 0
        %1152 = vmatprep.subr.bf16.mxu0 0
        %1153 = vmatpush1.bf16.msra.mxu0 0
        %1154 = vmatprep.subr.bf16.mxu0 0
        %1155 = vmatpush1.bf16.msra.mxu0 0
        %1156 = vmatprep.subr.bf16.mxu0 0
        %1157 = vmatpush1.bf16.msra.mxu0 0
        %1158 = vmatprep.subr.bf16.mxu0 0
        %1159 = vmatpush1.bf16.msra.mxu0 0
        %1160 = vmatprep.subr.bf16.mxu0 0
        %1161 = vmatpush1.bf16.msra.mxu0 0
        %1162 = vmatprep.subr.bf16.mxu0 0
        %1163 = vmatpush1.bf16.msra.mxu0 0
        %1164 = vmatprep.subr.bf16.mxu0 0
        %1165 = vmatpush1.bf16.msra.mxu0 0
        %1166 = vmatprep.subr.bf16.mxu0 0
        %1167 = vmatpush1.bf16.msra.mxu0 0
        %1168 = vmatprep.mubr.bf16.mxu0 0
        %1169 = vmatmul.mubr.bf16.gmra.mrb[0].mxu0 %v735
        %v1170 = vpop.f32.mrb[0].mxu0
        %v1171 = vadd.f32 0.0, %v1170
        %v1172 = vpop.f32.mrb[0].mxu0
        %v1173 = vpop.f32.mrb[0].mxu0
        %v1174 = vpop.f32.mrb[0].mxu0
        %1175 = vdwg.mxu0
        %v1176 = vmul.f32 %v1171, %v692
        %s1177 = scalar_lea.vmem %s641, 16
        %v1178 = vld [vmem:[%s1177] sm:$0xf]
        %v1179 = vld [vmem:[%s1177 + $0x4] sm:$0xf]
        %v1180 = vld [vmem:[%s1177 + $0x8] sm:$0xf]
        %v1181 = vld [vmem:[%s1177 + $0xc] sm:$0xf]
        %v1186 = vunpack.c.l.b16 %v1178
        %v1187 = vunpack.c.l.b16 %v1179
        %v1188 = vunpack.c.l.b16 %v1180
        %v1189 = vunpack.c.l.b16 %v1181
        %v1190 = vpack.c.b16 %v1187, %v1186
        %v1191 = vpack.c.b16 %v1189, %v1188
        %1194 = vmatprep.subr.bf16.mxu0 0
        %1195 = vmatpush1.bf16.msra.mxu0 %v1190
        %1196 = vmatprep.subr.bf16.mxu0 0
        %1197 = vmatpush1.bf16.msra.mxu0 %v1191
        %1198 = vmatprep.subr.bf16.mxu0 0
        %1199 = vmatpush1.bf16.msra.mxu0 0
        %1200 = vmatprep.subr.bf16.mxu0 0
        %1201 = vmatpush1.bf16.msra.mxu0 0
        %1202 = vmatprep.subr.bf16.mxu0 0
        %1203 = vmatpush1.bf16.msra.mxu0 0
        %1204 = vmatprep.subr.bf16.mxu0 0
        %1205 = vmatpush1.bf16.msra.mxu0 0
        %1206 = vmatprep.subr.bf16.mxu0 0
        %1207 = vmatpush1.bf16.msra.mxu0 0
        %1208 = vmatprep.subr.bf16.mxu0 0
        %1209 = vmatpush1.bf16.msra.mxu0 0
        %1210 = vmatprep.subr.bf16.mxu0 0
        %1211 = vmatpush1.bf16.msra.mxu0 0
        %1212 = vmatprep.subr.bf16.mxu0 0
        %1213 = vmatpush1.bf16.msra.mxu0 0
        %1214 = vmatprep.subr.bf16.mxu0 0
        %1215 = vmatpush1.bf16.msra.mxu0 0
        %1216 = vmatprep.subr.bf16.mxu0 0
        %1217 = vmatpush1.bf16.msra.mxu0 0
        %1218 = vmatprep.subr.bf16.mxu0 0
        %1219 = vmatpush1.bf16.msra.mxu0 0
        %1220 = vmatprep.subr.bf16.mxu0 0
        %1221 = vmatpush1.bf16.msra.mxu0 0
        %1222 = vmatprep.subr.bf16.mxu0 0
        %1223 = vmatpush1.bf16.msra.mxu0 0
        %1224 = vmatprep.subr.bf16.mxu0 0
        %1225 = vmatpush1.bf16.msra.mxu0 0
        %1226 = vmatprep.mubr.bf16.mxu0 0
        %1227 = vmatmul.mubr.bf16.gmra.mrb[0].mxu0 %v735
        %v1228 = vpop.f32.mrb[0].mxu0
        %v1229 = vadd.f32 0.0, %v1228
        %v1230 = vpop.f32.mrb[0].mxu0
        %v1231 = vpop.f32.mrb[0].mxu0
        %v1232 = vpop.f32.mrb[0].mxu0
        %1233 = vdwg.mxu0
        %v1234 = vmul.f32 %v1229, %v693
        %v1235 = vadd.f32 %v1176, %v1234
        %s1236 = scalar_lea.vmem %s646, 16
        %v1237 = vld [vmem:[%s1236] sm:$0xf]
        %v1238 = vld [vmem:[%s1236 + $0x4] sm:$0xf]
        %v1239 = vld [vmem:[%s1236 + $0x8] sm:$0xf]
        %v1240 = vld [vmem:[%s1236 + $0xc] sm:$0xf]
        %v1245 = vunpack.c.l.b16 %v1237
        %v1246 = vunpack.c.l.b16 %v1238
        %v1247 = vunpack.c.l.b16 %v1239
        %v1248 = vunpack.c.l.b16 %v1240
        %v1249 = vpack.c.b16 %v1246, %v1245
        %v1250 = vpack.c.b16 %v1248, %v1247
        %1253 = vmatprep.subr.bf16.mxu0 0
        %1254 = vmatpush1.bf16.msra.mxu0 %v1249
        %1255 = vmatprep.subr.bf16.mxu0 0
        %1256 = vmatpush1.bf16.msra.mxu0 %v1250
        %1257 = vmatprep.subr.bf16.mxu0 0
        %1258 = vmatpush1.bf16.msra.mxu0 0
        %1259 = vmatprep.subr.bf16.mxu0 0
        %1260 = vmatpush1.bf16.msra.mxu0 0
        %1261 = vmatprep.subr.bf16.mxu0 0
        %1262 = vmatpush1.bf16.msra.mxu0 0
        %1263 = vmatprep.subr.bf16.mxu0 0
        %1264 = vmatpush1.bf16.msra.mxu0 0
        %1265 = vmatprep.subr.bf16.mxu0 0
        %1266 = vmatpush1.bf16.msra.mxu0 0
        %1267 = vmatprep.subr.bf16.mxu0 0
        %1268 = vmatpush1.bf16.msra.mxu0 0
        %1269 = vmatprep.subr.bf16.mxu0 0
        %1270 = vmatpush1.bf16.msra.mxu0 0
        %1271 = vmatprep.subr.bf16.mxu0 0
        %1272 = vmatpush1.bf16.msra.mxu0 0
        %1273 = vmatprep.subr.bf16.mxu0 0
        %1274 = vmatpush1.bf16.msra.mxu0 0
        %1275 = vmatprep.subr.bf16.mxu0 0
        %1276 = vmatpush1.bf16.msra.mxu0 0
        %1277 = vmatprep.subr.bf16.mxu0 0
        %1278 = vmatpush1.bf16.msra.mxu0 0
        %1279 = vmatprep.subr.bf16.mxu0 0
        %1280 = vmatpush1.bf16.msra.mxu0 0
        %1281 = vmatprep.subr.bf16.mxu0 0
        %1282 = vmatpush1.bf16.msra.mxu0 0
        %1283 = vmatprep.subr.bf16.mxu0 0
        %1284 = vmatpush1.bf16.msra.mxu0 0
        %1285 = vmatprep.mubr.bf16.mxu0 0
        %1286 = vmatmul.mubr.bf16.gmra.mrb[0].mxu0 %v735
        %v1287 = vpop.f32.mrb[0].mxu0
        %v1288 = vadd.f32 0.0, %v1287
        %v1289 = vpop.f32.mrb[0].mxu0
        %v1290 = vpop.f32.mrb[0].mxu0
        %v1291 = vpop.f32.mrb[0].mxu0
        %1292 = vdwg.mxu0
        %v1293 = vmul.f32 %v1288, %v692
        %s1294 = scalar_lea.vmem %s651, 16
        %v1295 = vld [vmem:[%s1294] sm:$0xf]
        %v1296 = vld [vmem:[%s1294 + $0x4] sm:$0xf]
        %v1297 = vld [vmem:[%s1294 + $0x8] sm:$0xf]
        %v1298 = vld [vmem:[%s1294 + $0xc] sm:$0xf]
        %v1303 = vunpack.c.l.b16 %v1295
        %v1304 = vunpack.c.l.b16 %v1296
        %v1305 = vunpack.c.l.b16 %v1297
        %v1306 = vunpack.c.l.b16 %v1298
        %v1307 = vpack.c.b16 %v1304, %v1303
        %v1308 = vpack.c.b16 %v1306, %v1305
        %1311 = vmatprep.subr.bf16.mxu0 0
        %1312 = vmatpush1.bf16.msra.mxu0 %v1307
        %1313 = vmatprep.subr.bf16.mxu0 0
        %1314 = vmatpush1.bf16.msra.mxu0 %v1308
        %1315 = vmatprep.subr.bf16.mxu0 0
        %1316 = vmatpush1.bf16.msra.mxu0 0
        %1317 = vmatprep.subr.bf16.mxu0 0
        %1318 = vmatpush1.bf16.msra.mxu0 0
        %1319 = vmatprep.subr.bf16.mxu0 0
        %1320 = vmatpush1.bf16.msra.mxu0 0
        %1321 = vmatprep.subr.bf16.mxu0 0
        %1322 = vmatpush1.bf16.msra.mxu0 0
        %1323 = vmatprep.subr.bf16.mxu0 0
        %1324 = vmatpush1.bf16.msra.mxu0 0
        %1325 = vmatprep.subr.bf16.mxu0 0
        %1326 = vmatpush1.bf16.msra.mxu0 0
        %1327 = vmatprep.subr.bf16.mxu0 0
        %1328 = vmatpush1.bf16.msra.mxu0 0
        %1329 = vmatprep.subr.bf16.mxu0 0
        %1330 = vmatpush1.bf16.msra.mxu0 0
        %1331 = vmatprep.subr.bf16.mxu0 0
        %1332 = vmatpush1.bf16.msra.mxu0 0
        %1333 = vmatprep.subr.bf16.mxu0 0
        %1334 = vmatpush1.bf16.msra.mxu0 0
        %1335 = vmatprep.subr.bf16.mxu0 0
        %1336 = vmatpush1.bf16.msra.mxu0 0
        %1337 = vmatprep.subr.bf16.mxu0 0
        %1338 = vmatpush1.bf16.msra.mxu0 0
        %1339 = vmatprep.subr.bf16.mxu0 0
        %1340 = vmatpush1.bf16.msra.mxu0 0
        %1341 = vmatprep.subr.bf16.mxu0 0
        %1342 = vmatpush1.bf16.msra.mxu0 0
        %1343 = vmatprep.mubr.bf16.mxu0 0
        %1344 = vmatmul.mubr.bf16.gmra.mrb[0].mxu0 %v735
        %v1345 = vpop.f32.mrb[0].mxu0
        %v1346 = vadd.f32 0.0, %v1345
        %v1347 = vpop.f32.mrb[0].mxu0
        %v1348 = vpop.f32.mrb[0].mxu0
        %v1349 = vpop.f32.mrb[0].mxu0
        %1350 = vdwg.mxu0
        %v1351 = vmul.f32 %v1346, %v693
        %v1352 = vadd.f32 %v1293, %v1351
        %s1353 = scalar_lea.vmem %s656, 16
        %v1354 = vld [vmem:[%s1353] sm:$0xf]
        %v1355 = vld [vmem:[%s1353 + $0x4] sm:$0xf]
        %v1356 = vld [vmem:[%s1353 + $0x8] sm:$0xf]
        %v1357 = vld [vmem:[%s1353 + $0xc] sm:$0xf]
        %v1362 = vunpack.c.l.b16 %v1354
        %v1363 = vunpack.c.l.b16 %v1355
        %v1364 = vunpack.c.l.b16 %v1356
        %v1365 = vunpack.c.l.b16 %v1357
        %v1366 = vpack.c.b16 %v1363, %v1362
        %v1367 = vpack.c.b16 %v1365, %v1364
        %1370 = vmatprep.subr.bf16.mxu0 0
        %1371 = vmatpush1.bf16.msra.mxu0 %v1366
        %1372 = vmatprep.subr.bf16.mxu0 0
        %1373 = vmatpush1.bf16.msra.mxu0 %v1367
        %1374 = vmatprep.subr.bf16.mxu0 0
        %1375 = vmatpush1.bf16.msra.mxu0 0
        %1376 = vmatprep.subr.bf16.mxu0 0
        %1377 = vmatpush1.bf16.msra.mxu0 0
        %1378 = vmatprep.subr.bf16.mxu0 0
        %1379 = vmatpush1.bf16.msra.mxu0 0
        %1380 = vmatprep.subr.bf16.mxu0 0
        %1381 = vmatpush1.bf16.msra.mxu0 0
        %1382 = vmatprep.subr.bf16.mxu0 0
        %1383 = vmatpush1.bf16.msra.mxu0 0
        %1384 = vmatprep.subr.bf16.mxu0 0
        %1385 = vmatpush1.bf16.msra.mxu0 0
        %1386 = vmatprep.subr.bf16.mxu0 0
        %1387 = vmatpush1.bf16.msra.mxu0 0
        %1388 = vmatprep.subr.bf16.mxu0 0
        %1389 = vmatpush1.bf16.msra.mxu0 0
        %1390 = vmatprep.subr.bf16.mxu0 0
        %1391 = vmatpush1.bf16.msra.mxu0 0
        %1392 = vmatprep.subr.bf16.mxu0 0
        %1393 = vmatpush1.bf16.msra.mxu0 0
        %1394 = vmatprep.subr.bf16.mxu0 0
        %1395 = vmatpush1.bf16.msra.mxu0 0
        %1396 = vmatprep.subr.bf16.mxu0 0
        %1397 = vmatpush1.bf16.msra.mxu0 0
        %1398 = vmatprep.subr.bf16.mxu0 0
        %1399 = vmatpush1.bf16.msra.mxu0 0
        %1400 = vmatprep.subr.bf16.mxu0 0
        %1401 = vmatpush1.bf16.msra.mxu0 0
        %1402 = vmatprep.mubr.bf16.mxu0 0
        %1403 = vmatmul.mubr.bf16.gmra.mrb[0].mxu0 %v735
        %v1404 = vpop.f32.mrb[0].mxu0
        %v1405 = vadd.f32 0.0, %v1404
        %v1406 = vpop.f32.mrb[0].mxu0
        %v1407 = vpop.f32.mrb[0].mxu0
        %v1408 = vpop.f32.mrb[0].mxu0
        %1409 = vdwg.mxu0
        %v1410 = vpack.c.bf16 %v1235, %v1235
        %v1411 = vpack.c.bf16 %v1352, %v1352
        %v1413 = vsel %vm1009, %v1410, 0
        %v1416 = vsel %vm1009, %v1411, 0
        %1418 = vmatprep.subr.bf16.mxu0 0
        %1419 = vmatpush1.bf16.xpose.msra.mxu0 %v1416
        %1420 = vmatprep.subr.bf16.mxu0 0
        %1421 = vmatpush1.bf16.xpose.msra.mxu0 0
        %1422 = vmatprep.subr.bf16.mxu0 0
        %1423 = vmatpush1.bf16.xpose.msra.mxu0 0
        %1424 = vmatprep.subr.bf16.mxu0 0
        %1425 = vmatpush1.bf16.xpose.msra.mxu0 0
        %1426 = vmatprep.subr.bf16.mxu0 0
        %1427 = vmatpush1.bf16.xpose.msra.mxu0 0
        %1428 = vmatprep.subr.bf16.mxu0 0
        %1429 = vmatpush1.bf16.xpose.msra.mxu0 0
        %1430 = vmatprep.subr.bf16.mxu0 0
        %1431 = vmatpush1.bf16.xpose.msra.mxu0 0
        %1432 = vmatprep.subr.bf16.mxu0 0
        %1433 = vmatpush1.bf16.xpose.msra.mxu0 0
        %1434 = vmatprep.subr.bf16.mxu0 0
        %1435 = vmatpush1.bf16.xpose.msra.mxu0 0
        %1436 = vmatprep.subr.bf16.mxu0 0
        %1437 = vmatpush1.bf16.xpose.msra.mxu0 0
        %1438 = vmatprep.subr.bf16.mxu0 0
        %1439 = vmatpush1.bf16.xpose.msra.mxu0 0
        %1440 = vmatprep.subr.bf16.mxu0 0
        %1441 = vmatpush1.bf16.xpose.msra.mxu0 0
        %1442 = vmatprep.subr.bf16.mxu0 0
        %1443 = vmatpush1.bf16.xpose.msra.mxu0 0
        %1444 = vmatprep.subr.bf16.mxu0 0
        %1445 = vmatpush1.bf16.xpose.msra.mxu0 0
        %1446 = vmatprep.subr.bf16.mxu0 0
        %1447 = vmatpush1.bf16.xpose.msra.mxu0 0
        %1448 = vmatprep.subr.bf16.mxu0 0
        %1449 = vmatpush1.bf16.xpose.msra.mxu0 0
        %1450 = vmatprep.mubr.bf16.mxu0 0
        %1451 = vmatmul.mubr.bf16.gmra.mrb[0].mxu0 %v1413
        %v1452 = vpop.f32.mrb[0].mxu0
        %v1453 = vadd.f32 0.0, %v1452
        %v1454 = vpop.f32.mrb[0].mxu0
        %v1455 = vpop.f32.mrb[0].mxu0
        %v1456 = vpop.f32.mrb[0].mxu0
        %1457 = vdwg.mxu0
        %v1458 = vsel %vm698, %v1453, -1e+30
        %v1459 = vsel %vm1009, %v1458, -inf
        %1460 = vmax.xlane.f32.xlu0 %v1459
        %v1461 = vpop.xlane.xlu0 %1460
        %v1462 = vsub.f32 %v1458, %v1461
        %v1463 = vmul.f32 %v1462, 1.442695
        %v1464 = vpow.pop %v1463
        %v1465 = vsel %vm1009, %v1464, 0.0
        %1466 = vadd.xlane.f32.xlu0 %v1465
        %v1467 = vpop.xlane.xlu0 %1466
        %v1468 = vrcp.pop %v1467
        %v1469 = vmul.f32 %v1464, %v1468
        %v1470 = vpack.c.bf16 %v1469, %v1469
        %v1471 = vpack.c.bf16 %v1405, %v1405
        %v1473 = vsel %vm1009, %v1470, 0
        %v1476 = vsel %vm1073, %v1471, 0
        %1478 = vmatprep.subr.bf16.mxu0 0
        %1479 = vmatpush1.bf16.msra.mxu0 %v1476
        %1480 = vmatprep.subr.bf16.mxu0 0
        %1481 = vmatpush1.bf16.msra.mxu0 0
        %1482 = vmatprep.subr.bf16.mxu0 0
        %1483 = vmatpush1.bf16.msra.mxu0 0
        %1484 = vmatprep.subr.bf16.mxu0 0
        %1485 = vmatpush1.bf16.msra.mxu0 0
        %1486 = vmatprep.subr.bf16.mxu0 0
        %1487 = vmatpush1.bf16.msra.mxu0 0
        %1488 = vmatprep.subr.bf16.mxu0 0
        %1489 = vmatpush1.bf16.msra.mxu0 0
        %1490 = vmatprep.subr.bf16.mxu0 0
        %1491 = vmatpush1.bf16.msra.mxu0 0
        %1492 = vmatprep.subr.bf16.mxu0 0
        %1493 = vmatpush1.bf16.msra.mxu0 0
        %1494 = vmatprep.subr.bf16.mxu0 0
        %1495 = vmatpush1.bf16.msra.mxu0 0
        %1496 = vmatprep.subr.bf16.mxu0 0
        %1497 = vmatpush1.bf16.msra.mxu0 0
        %1498 = vmatprep.subr.bf16.mxu0 0
        %1499 = vmatpush1.bf16.msra.mxu0 0
        %1500 = vmatprep.subr.bf16.mxu0 0
        %1501 = vmatpush1.bf16.msra.mxu0 0
        %1502 = vmatprep.subr.bf16.mxu0 0
        %1503 = vmatpush1.bf16.msra.mxu0 0
        %1504 = vmatprep.subr.bf16.mxu0 0
        %1505 = vmatpush1.bf16.msra.mxu0 0
        %1506 = vmatprep.subr.bf16.mxu0 0
        %1507 = vmatpush1.bf16.msra.mxu0 0
        %1508 = vmatprep.subr.bf16.mxu0 0
        %1509 = vmatpush1.bf16.msra.mxu0 0
        %1510 = vmatprep.mubr.bf16.mxu0 0
        %1511 = vmatmul.mubr.bf16.gmra.mrb[0].mxu0 %v1473
        %v1512 = vpop.f32.mrb[0].mxu0
        %v1513 = vadd.f32 0.0, %v1512
        %v1514 = vpop.f32.mrb[0].mxu0
        %v1515 = vpop.f32.mrb[0].mxu0
        %v1516 = vpop.f32.mrb[0].mxu0
        %1517 = vdwg.mxu0
        %v1518 = vpack.c.bf16 %v1513, %v1513
        %s1519 = scalar_lea.vmem %s661, 4
        %v1520 = vld [vmem:[%s1519] sm:$0xf]
        %v1522 = vsel %vm1009, %v1518, 0
        %v1525 = vsel %vm1073, %v1520, 0
        %1527 = vmatprep.subr.bf16.mxu0 0
        %1528 = vmatpush1.bf16.msra.mxu0 %v1525
        %1529 = vmatprep.subr.bf16.mxu0 0
        %1530 = vmatpush1.bf16.msra.mxu0 0
        %1531 = vmatprep.subr.bf16.mxu0 0
        %1532 = vmatpush1.bf16.msra.mxu0 0
        %1533 = vmatprep.subr.bf16.mxu0 0
        %1534 = vmatpush1.bf16.msra.mxu0 0
        %1535 = vmatprep.subr.bf16.mxu0 0
        %1536 = vmatpush1.bf16.msra.mxu0 0
        %1537 = vmatprep.subr.bf16.mxu0 0
        %1538 = vmatpush1.bf16.msra.mxu0 0
        %1539 = vmatprep.subr.bf16.mxu0 0
        %1540 = vmatpush1.bf16.msra.mxu0 0
        %1541 = vmatprep.subr.bf16.mxu0 0
        %1542 = vmatpush1.bf16.msra.mxu0 0
        %1543 = vmatprep.subr.bf16.mxu0 0
        %1544 = vmatpush1.bf16.msra.mxu0 0
        %1545 = vmatprep.subr.bf16.mxu0 0
        %1546 = vmatpush1.bf16.msra.mxu0 0
        %1547 = vmatprep.subr.bf16.mxu0 0
        %1548 = vmatpush1.bf16.msra.mxu0 0
        %1549 = vmatprep.subr.bf16.mxu0 0
        %1550 = vmatpush1.bf16.msra.mxu0 0
        %1551 = vmatprep.subr.bf16.mxu0 0
        %1552 = vmatpush1.bf16.msra.mxu0 0
        %1553 = vmatprep.subr.bf16.mxu0 0
        %1554 = vmatpush1.bf16.msra.mxu0 0
        %1555 = vmatprep.subr.bf16.mxu0 0
        %1556 = vmatpush1.bf16.msra.mxu0 0
        %1557 = vmatprep.subr.bf16.mxu0 0
        %1558 = vmatpush1.bf16.msra.mxu0 0
        %1559 = vmatprep.mubr.bf16.mxu0 0
        %1560 = vmatmul.mubr.bf16.gmra.mrb[0].mxu0 %v1522
        %v1561 = vpop.f32.mrb[0].mxu0
        %v1562 = vadd.f32 0.0, %v1561
        %v1563 = vpop.f32.mrb[0].mxu0
        %v1564 = vpop.f32.mrb[0].mxu0
        %v1565 = vpop.f32.mrb[0].mxu0
        %1566 = vdwg.mxu0
        %v1568 = vsel %vm1009, %v1117, 0
        %v1571 = vsel %vm1073, %v1118, 0
        %1573 = vmatprep.subr.bf16.mxu0 0
        %1574 = vmatpush1.bf16.msra.mxu0 %v1571
        %1575 = vmatprep.subr.bf16.mxu0 0
        %1576 = vmatpush1.bf16.msra.mxu0 0
        %1577 = vmatprep.subr.bf16.mxu0 0
        %1578 = vmatpush1.bf16.msra.mxu0 0
        %1579 = vmatprep.subr.bf16.mxu0 0
        %1580 = vmatpush1.bf16.msra.mxu0 0
        %1581 = vmatprep.subr.bf16.mxu0 0
        %1582 = vmatpush1.bf16.msra.mxu0 0
        %1583 = vmatprep.subr.bf16.mxu0 0
        %1584 = vmatpush1.bf16.msra.mxu0 0
        %1585 = vmatprep.subr.bf16.mxu0 0
        %1586 = vmatpush1.bf16.msra.mxu0 0
        %1587 = vmatprep.subr.bf16.mxu0 0
        %1588 = vmatpush1.bf16.msra.mxu0 0
        %1589 = vmatprep.subr.bf16.mxu0 0
        %1590 = vmatpush1.bf16.msra.mxu0 0
        %1591 = vmatprep.subr.bf16.mxu0 0
        %1592 = vmatpush1.bf16.msra.mxu0 0
        %1593 = vmatprep.subr.bf16.mxu0 0
        %1594 = vmatpush1.bf16.msra.mxu0 0
        %1595 = vmatprep.subr.bf16.mxu0 0
        %1596 = vmatpush1.bf16.msra.mxu0 0
        %1597 = vmatprep.subr.bf16.mxu0 0
        %1598 = vmatpush1.bf16.msra.mxu0 0
        %1599 = vmatprep.subr.bf16.mxu0 0
        %1600 = vmatpush1.bf16.msra.mxu0 0
        %1601 = vmatprep.subr.bf16.mxu0 0
        %1602 = vmatpush1.bf16.msra.mxu0 0
        %1603 = vmatprep.subr.bf16.mxu0 0
        %1604 = vmatpush1.bf16.msra.mxu0 0
        %1605 = vmatprep.mubr.bf16.mxu0 0
        %1606 = vmatmul.mubr.bf16.gmra.mrb[0].mxu0 %v1568
        %v1607 = vpop.f32.mrb[0].mxu0
        %v1608 = vadd.f32 %v1562, %v1607
        %v1609 = vpop.f32.mrb[0].mxu0
        %v1610 = vpop.f32.mrb[0].mxu0
        %v1611 = vpop.f32.mrb[0].mxu0
        %1612 = vdwg.mxu0
        %s1613 = scalar_lea.vmem %s636, 32
        %v1614 = vld [vmem:[%s1613] sm:$0xf]
        %v1615 = vld [vmem:[%s1613 + $0x4] sm:$0xf]
        %v1616 = vld [vmem:[%s1613 + $0x8] sm:$0xf]
        %v1617 = vld [vmem:[%s1613 + $0xc] sm:$0xf]
        %v1622 = vunpack.c.l.b16 %v1614
        %v1623 = vunpack.c.l.b16 %v1615
        %v1624 = vunpack.c.l.b16 %v1616
        %v1625 = vunpack.c.l.b16 %v1617
        %v1626 = vpack.c.b16 %v1623, %v1622
        %v1627 = vpack.c.b16 %v1625, %v1624
        %1630 = vmatprep.subr.bf16.mxu0 0
        %1631 = vmatpush1.bf16.msra.mxu0 %v1626
        %1632 = vmatprep.subr.bf16.mxu0 0
        %1633 = vmatpush1.bf16.msra.mxu0 %v1627
        %1634 = vmatprep.subr.bf16.mxu0 0
        %1635 = vmatpush1.bf16.msra.mxu0 0
        %1636 = vmatprep.subr.bf16.mxu0 0
        %1637 = vmatpush1.bf16.msra.mxu0 0
        %1638 = vmatprep.subr.bf16.mxu0 0
        %1639 = vmatpush1.bf16.msra.mxu0 0
        %1640 = vmatprep.subr.bf16.mxu0 0
        %1641 = vmatpush1.bf16.msra.mxu0 0
        %1642 = vmatprep.subr.bf16.mxu0 0
        %1643 = vmatpush1.bf16.msra.mxu0 0
        %1644 = vmatprep.subr.bf16.mxu0 0
        %1645 = vmatpush1.bf16.msra.mxu0 0
        %1646 = vmatprep.subr.bf16.mxu0 0
        %1647 = vmatpush1.bf16.msra.mxu0 0
        %1648 = vmatprep.subr.bf16.mxu0 0
        %1649 = vmatpush1.bf16.msra.mxu0 0
        %1650 = vmatprep.subr.bf16.mxu0 0
        %1651 = vmatpush1.bf16.msra.mxu0 0
        %1652 = vmatprep.subr.bf16.mxu0 0
        %1653 = vmatpush1.bf16.msra.mxu0 0
        %1654 = vmatprep.subr.bf16.mxu0 0
        %1655 = vmatpush1.bf16.msra.mxu0 0
        %1656 = vmatprep.subr.bf16.mxu0 0
        %1657 = vmatpush1.bf16.msra.mxu0 0
        %1658 = vmatprep.subr.bf16.mxu0 0
        %1659 = vmatpush1.bf16.msra.mxu0 0
        %1660 = vmatprep.subr.bf16.mxu0 0
        %1661 = vmatpush1.bf16.msra.mxu0 0
        %1662 = vmatprep.mubr.bf16.mxu0 0
        %1663 = vmatmul.mubr.bf16.gmra.mrb[0].mxu0 %v735
        %v1664 = vpop.f32.mrb[0].mxu0
        %v1665 = vadd.f32 0.0, %v1664
        %v1666 = vpop.f32.mrb[0].mxu0
        %v1667 = vpop.f32.mrb[0].mxu0
        %v1668 = vpop.f32.mrb[0].mxu0
        %1669 = vdwg.mxu0
        %v1670 = vmul.f32 %v1665, %v692
        %s1671 = scalar_lea.vmem %s641, 32
        %v1672 = vld [vmem:[%s1671] sm:$0xf]
        %v1673 = vld [vmem:[%s1671 + $0x4] sm:$0xf]
        %v1674 = vld [vmem:[%s1671 + $0x8] sm:$0xf]
        %v1675 = vld [vmem:[%s1671 + $0xc] sm:$0xf]
        %v1680 = vunpack.c.l.b16 %v1672
        %v1681 = vunpack.c.l.b16 %v1673
        %v1682 = vunpack.c.l.b16 %v1674
        %v1683 = vunpack.c.l.b16 %v1675
        %v1684 = vpack.c.b16 %v1681, %v1680
        %v1685 = vpack.c.b16 %v1683, %v1682
        %1688 = vmatprep.subr.bf16.mxu0 0
        %1689 = vmatpush1.bf16.msra.mxu0 %v1684
        %1690 = vmatprep.subr.bf16.mxu0 0
        %1691 = vmatpush1.bf16.msra.mxu0 %v1685
        %1692 = vmatprep.subr.bf16.mxu0 0
        %1693 = vmatpush1.bf16.msra.mxu0 0
        %1694 = vmatprep.subr.bf16.mxu0 0
        %1695 = vmatpush1.bf16.msra.mxu0 0
        %1696 = vmatprep.subr.bf16.mxu0 0
        %1697 = vmatpush1.bf16.msra.mxu0 0
        %1698 = vmatprep.subr.bf16.mxu0 0
        %1699 = vmatpush1.bf16.msra.mxu0 0
        %1700 = vmatprep.subr.bf16.mxu0 0
        %1701 = vmatpush1.bf16.msra.mxu0 0
        %1702 = vmatprep.subr.bf16.mxu0 0
        %1703 = vmatpush1.bf16.msra.mxu0 0
        %1704 = vmatprep.subr.bf16.mxu0 0
        %1705 = vmatpush1.bf16.msra.mxu0 0
        %1706 = vmatprep.subr.bf16.mxu0 0
        %1707 = vmatpush1.bf16.msra.mxu0 0
        %1708 = vmatprep.subr.bf16.mxu0 0
        %1709 = vmatpush1.bf16.msra.mxu0 0
        %1710 = vmatprep.subr.bf16.mxu0 0
        %1711 = vmatpush1.bf16.msra.mxu0 0
        %1712 = vmatprep.subr.bf16.mxu0 0
        %1713 = vmatpush1.bf16.msra.mxu0 0
        %1714 = vmatprep.subr.bf16.mxu0 0
        %1715 = vmatpush1.bf16.msra.mxu0 0
        %1716 = vmatprep.subr.bf16.mxu0 0
        %1717 = vmatpush1.bf16.msra.mxu0 0
        %1718 = vmatprep.subr.bf16.mxu0 0
        %1719 = vmatpush1.bf16.msra.mxu0 0
        %1720 = vmatprep.mubr.bf16.mxu0 0
        %1721 = vmatmul.mubr.bf16.gmra.mrb[0].mxu0 %v735
        %v1722 = vpop.f32.mrb[0].mxu0
        %v1723 = vadd.f32 0.0, %v1722
        %v1724 = vpop.f32.mrb[0].mxu0
        %v1725 = vpop.f32.mrb[0].mxu0
        %v1726 = vpop.f32.mrb[0].mxu0
        %1727 = vdwg.mxu0
        %v1728 = vmul.f32 %v1723, %v693
        %v1729 = vadd.f32 %v1670, %v1728
        %s1730 = scalar_lea.vmem %s646, 32
        %v1731 = vld [vmem:[%s1730] sm:$0xf]
        %v1732 = vld [vmem:[%s1730 + $0x4] sm:$0xf]
        %v1733 = vld [vmem:[%s1730 + $0x8] sm:$0xf]
        %v1734 = vld [vmem:[%s1730 + $0xc] sm:$0xf]
        %v1739 = vunpack.c.l.b16 %v1731
        %v1740 = vunpack.c.l.b16 %v1732
        %v1741 = vunpack.c.l.b16 %v1733
        %v1742 = vunpack.c.l.b16 %v1734
        %v1743 = vpack.c.b16 %v1740, %v1739
        %v1744 = vpack.c.b16 %v1742, %v1741
        %1747 = vmatprep.subr.bf16.mxu0 0
        %1748 = vmatpush1.bf16.msra.mxu0 %v1743
        %1749 = vmatprep.subr.bf16.mxu0 0
        %1750 = vmatpush1.bf16.msra.mxu0 %v1744
        %1751 = vmatprep.subr.bf16.mxu0 0
        %1752 = vmatpush1.bf16.msra.mxu0 0
        %1753 = vmatprep.subr.bf16.mxu0 0
        %1754 = vmatpush1.bf16.msra.mxu0 0
        %1755 = vmatprep.subr.bf16.mxu0 0
        %1756 = vmatpush1.bf16.msra.mxu0 0
        %1757 = vmatprep.subr.bf16.mxu0 0
        %1758 = vmatpush1.bf16.msra.mxu0 0
        %1759 = vmatprep.subr.bf16.mxu0 0
        %1760 = vmatpush1.bf16.msra.mxu0 0
        %1761 = vmatprep.subr.bf16.mxu0 0
        %1762 = vmatpush1.bf16.msra.mxu0 0
        %1763 = vmatprep.subr.bf16.mxu0 0
        %1764 = vmatpush1.bf16.msra.mxu0 0
        %1765 = vmatprep.subr.bf16.mxu0 0
        %1766 = vmatpush1.bf16.msra.mxu0 0
        %1767 = vmatprep.subr.bf16.mxu0 0
        %1768 = vmatpush1.bf16.msra.mxu0 0
        %1769 = vmatprep.subr.bf16.mxu0 0
        %1770 = vmatpush1.bf16.msra.mxu0 0
        %1771 = vmatprep.subr.bf16.mxu0 0
        %1772 = vmatpush1.bf16.msra.mxu0 0
        %1773 = vmatprep.subr.bf16.mxu0 0
        %1774 = vmatpush1.bf16.msra.mxu0 0
        %1775 = vmatprep.subr.bf16.mxu0 0
        %1776 = vmatpush1.bf16.msra.mxu0 0
        %1777 = vmatprep.subr.bf16.mxu0 0
        %1778 = vmatpush1.bf16.msra.mxu0 0
        %1779 = vmatprep.mubr.bf16.mxu0 0
        %1780 = vmatmul.mubr.bf16.gmra.mrb[0].mxu0 %v735
        %v1781 = vpop.f32.mrb[0].mxu0
        %v1782 = vadd.f32 0.0, %v1781
        %v1783 = vpop.f32.mrb[0].mxu0
        %v1784 = vpop.f32.mrb[0].mxu0
        %v1785 = vpop.f32.mrb[0].mxu0
        %1786 = vdwg.mxu0
        %v1787 = vmul.f32 %v1782, %v692
        %s1788 = scalar_lea.vmem %s651, 32
        %v1789 = vld [vmem:[%s1788] sm:$0xf]
        %v1790 = vld [vmem:[%s1788 + $0x4] sm:$0xf]
        %v1791 = vld [vmem:[%s1788 + $0x8] sm:$0xf]
        %v1792 = vld [vmem:[%s1788 + $0xc] sm:$0xf]
        %v1797 = vunpack.c.l.b16 %v1789
        %v1798 = vunpack.c.l.b16 %v1790
        %v1799 = vunpack.c.l.b16 %v1791
        %v1800 = vunpack.c.l.b16 %v1792
        %v1801 = vpack.c.b16 %v1798, %v1797
        %v1802 = vpack.c.b16 %v1800, %v1799
        %1805 = vmatprep.subr.bf16.mxu0 0
        %1806 = vmatpush1.bf16.msra.mxu0 %v1801
        %1807 = vmatprep.subr.bf16.mxu0 0
        %1808 = vmatpush1.bf16.msra.mxu0 %v1802
        %1809 = vmatprep.subr.bf16.mxu0 0
        %1810 = vmatpush1.bf16.msra.mxu0 0
        %1811 = vmatprep.subr.bf16.mxu0 0
        %1812 = vmatpush1.bf16.msra.mxu0 0
        %1813 = vmatprep.subr.bf16.mxu0 0
        %1814 = vmatpush1.bf16.msra.mxu0 0
        %1815 = vmatprep.subr.bf16.mxu0 0
        %1816 = vmatpush1.bf16.msra.mxu0 0
        %1817 = vmatprep.subr.bf16.mxu0 0
        %1818 = vmatpush1.bf16.msra.mxu0 0
        %1819 = vmatprep.subr.bf16.mxu0 0
        %1820 = vmatpush1.bf16.msra.mxu0 0
        %1821 = vmatprep.subr.bf16.mxu0 0
        %1822 = vmatpush1.bf16.msra.mxu0 0
        %1823 = vmatprep.subr.bf16.mxu0 0
        %1824 = vmatpush1.bf16.msra.mxu0 0
        %1825 = vmatprep.subr.bf16.mxu0 0
        %1826 = vmatpush1.bf16.msra.mxu0 0
        %1827 = vmatprep.subr.bf16.mxu0 0
        %1828 = vmatpush1.bf16.msra.mxu0 0
        %1829 = vmatprep.subr.bf16.mxu0 0
        %1830 = vmatpush1.bf16.msra.mxu0 0
        %1831 = vmatprep.subr.bf16.mxu0 0
        %1832 = vmatpush1.bf16.msra.mxu0 0
        %1833 = vmatprep.subr.bf16.mxu0 0
        %1834 = vmatpush1.bf16.msra.mxu0 0
        %1835 = vmatprep.subr.bf16.mxu0 0
        %1836 = vmatpush1.bf16.msra.mxu0 0
        %1837 = vmatprep.mubr.bf16.mxu0 0
        %1838 = vmatmul.mubr.bf16.gmra.mrb[0].mxu0 %v735
        %v1839 = vpop.f32.mrb[0].mxu0
        %v1840 = vadd.f32 0.0, %v1839
        %v1841 = vpop.f32.mrb[0].mxu0
        %v1842 = vpop.f32.mrb[0].mxu0
        %v1843 = vpop.f32.mrb[0].mxu0
        %1844 = vdwg.mxu0
        %v1845 = vmul.f32 %v1840, %v693
        %v1846 = vadd.f32 %v1787, %v1845
        %s1847 = scalar_lea.vmem %s656, 32
        %v1848 = vld [vmem:[%s1847] sm:$0xf]
        %v1849 = vld [vmem:[%s1847 + $0x4] sm:$0xf]
        %v1850 = vld [vmem:[%s1847 + $0x8] sm:$0xf]
        %v1851 = vld [vmem:[%s1847 + $0xc] sm:$0xf]
        %v1856 = vunpack.c.l.b16 %v1848
        %v1857 = vunpack.c.l.b16 %v1849
        %v1858 = vunpack.c.l.b16 %v1850
        %v1859 = vunpack.c.l.b16 %v1851
        %v1860 = vpack.c.b16 %v1857, %v1856
        %v1861 = vpack.c.b16 %v1859, %v1858
        %1864 = vmatprep.subr.bf16.mxu0 0
        %1865 = vmatpush1.bf16.msra.mxu0 %v1860
        %1866 = vmatprep.subr.bf16.mxu0 0
        %1867 = vmatpush1.bf16.msra.mxu0 %v1861
        %1868 = vmatprep.subr.bf16.mxu0 0
        %1869 = vmatpush1.bf16.msra.mxu0 0
        %1870 = vmatprep.subr.bf16.mxu0 0
        %1871 = vmatpush1.bf16.msra.mxu0 0
        %1872 = vmatprep.subr.bf16.mxu0 0
        %1873 = vmatpush1.bf16.msra.mxu0 0
        %1874 = vmatprep.subr.bf16.mxu0 0
        %1875 = vmatpush1.bf16.msra.mxu0 0
        %1876 = vmatprep.subr.bf16.mxu0 0
        %1877 = vmatpush1.bf16.msra.mxu0 0
        %1878 = vmatprep.subr.bf16.mxu0 0
        %1879 = vmatpush1.bf16.msra.mxu0 0
        %1880 = vmatprep.subr.bf16.mxu0 0
        %1881 = vmatpush1.bf16.msra.mxu0 0
        %1882 = vmatprep.subr.bf16.mxu0 0
        %1883 = vmatpush1.bf16.msra.mxu0 0
        %1884 = vmatprep.subr.bf16.mxu0 0
        %1885 = vmatpush1.bf16.msra.mxu0 0
        %1886 = vmatprep.subr.bf16.mxu0 0
        %1887 = vmatpush1.bf16.msra.mxu0 0
        %1888 = vmatprep.subr.bf16.mxu0 0
        %1889 = vmatpush1.bf16.msra.mxu0 0
        %1890 = vmatprep.subr.bf16.mxu0 0
        %1891 = vmatpush1.bf16.msra.mxu0 0
        %1892 = vmatprep.subr.bf16.mxu0 0
        %1893 = vmatpush1.bf16.msra.mxu0 0
        %1894 = vmatprep.subr.bf16.mxu0 0
        %1895 = vmatpush1.bf16.msra.mxu0 0
        %1896 = vmatprep.mubr.bf16.mxu0 0
        %1897 = vmatmul.mubr.bf16.gmra.mrb[0].mxu0 %v735
        %v1898 = vpop.f32.mrb[0].mxu0
        %v1899 = vadd.f32 0.0, %v1898
        %v1900 = vpop.f32.mrb[0].mxu0
        %v1901 = vpop.f32.mrb[0].mxu0
        %v1902 = vpop.f32.mrb[0].mxu0
        %1903 = vdwg.mxu0
        %v1904 = vpack.c.bf16 %v1729, %v1729
        %v1905 = vpack.c.bf16 %v1846, %v1846
        %v1907 = vsel %vm1009, %v1904, 0
        %v1910 = vsel %vm1009, %v1905, 0
        %1912 = vmatprep.subr.bf16.mxu0 0
        %1913 = vmatpush1.bf16.xpose.msra.mxu0 %v1910
        %1914 = vmatprep.subr.bf16.mxu0 0
        %1915 = vmatpush1.bf16.xpose.msra.mxu0 0
        %1916 = vmatprep.subr.bf16.mxu0 0
        %1917 = vmatpush1.bf16.xpose.msra.mxu0 0
        %1918 = vmatprep.subr.bf16.mxu0 0
        %1919 = vmatpush1.bf16.xpose.msra.mxu0 0
        %1920 = vmatprep.subr.bf16.mxu0 0
        %1921 = vmatpush1.bf16.xpose.msra.mxu0 0
        %1922 = vmatprep.subr.bf16.mxu0 0
        %1923 = vmatpush1.bf16.xpose.msra.mxu0 0
        %1924 = vmatprep.subr.bf16.mxu0 0
        %1925 = vmatpush1.bf16.xpose.msra.mxu0 0
        %1926 = vmatprep.subr.bf16.mxu0 0
        %1927 = vmatpush1.bf16.xpose.msra.mxu0 0
        %1928 = vmatprep.subr.bf16.mxu0 0
        %1929 = vmatpush1.bf16.xpose.msra.mxu0 0
        %1930 = vmatprep.subr.bf16.mxu0 0
        %1931 = vmatpush1.bf16.xpose.msra.mxu0 0
        %1932 = vmatprep.subr.bf16.mxu0 0
        %1933 = vmatpush1.bf16.xpose.msra.mxu0 0
        %1934 = vmatprep.subr.bf16.mxu0 0
        %1935 = vmatpush1.bf16.xpose.msra.mxu0 0
        %1936 = vmatprep.subr.bf16.mxu0 0
        %1937 = vmatpush1.bf16.xpose.msra.mxu0 0
        %1938 = vmatprep.subr.bf16.mxu0 0
        %1939 = vmatpush1.bf16.xpose.msra.mxu0 0
        %1940 = vmatprep.subr.bf16.mxu0 0
        %1941 = vmatpush1.bf16.xpose.msra.mxu0 0
        %1942 = vmatprep.subr.bf16.mxu0 0
        %1943 = vmatpush1.bf16.xpose.msra.mxu0 0
        %1944 = vmatprep.mubr.bf16.mxu0 0
        %1945 = vmatmul.mubr.bf16.gmra.mrb[0].mxu0 %v1907
        %v1946 = vpop.f32.mrb[0].mxu0
        %v1947 = vadd.f32 0.0, %v1946
        %v1948 = vpop.f32.mrb[0].mxu0
        %v1949 = vpop.f32.mrb[0].mxu0
        %v1950 = vpop.f32.mrb[0].mxu0
        %1951 = vdwg.mxu0
        %v1952 = vsel %vm698, %v1947, -1e+30
        %v1953 = vsel %vm1009, %v1952, -inf
        %1954 = vmax.xlane.f32.xlu0 %v1953
        %v1955 = vpop.xlane.xlu0 %1954
        %v1956 = vsub.f32 %v1952, %v1955
        %v1957 = vmul.f32 %v1956, 1.442695
        %v1958 = vpow.pop %v1957
        %v1959 = vsel %vm1009, %v1958, 0.0
        %1960 = vadd.xlane.f32.xlu0 %v1959
        %v1961 = vpop.xlane.xlu0 %1960
        %v1962 = vrcp.pop %v1961
        %v1963 = vmul.f32 %v1958, %v1962
        %v1964 = vpack.c.bf16 %v1963, %v1963
        %v1965 = vpack.c.bf16 %v1899, %v1899
        %v1967 = vsel %vm1009, %v1964, 0
        %v1970 = vsel %vm1073, %v1965, 0
        %1972 = vmatprep.subr.bf16.mxu0 0
        %1973 = vmatpush1.bf16.msra.mxu0 %v1970
        %1974 = vmatprep.subr.bf16.mxu0 0
        %1975 = vmatpush1.bf16.msra.mxu0 0
        %1976 = vmatprep.subr.bf16.mxu0 0
        %1977 = vmatpush1.bf16.msra.mxu0 0
        %1978 = vmatprep.subr.bf16.mxu0 0
        %1979 = vmatpush1.bf16.msra.mxu0 0
        %1980 = vmatprep.subr.bf16.mxu0 0
        %1981 = vmatpush1.bf16.msra.mxu0 0
        %1982 = vmatprep.subr.bf16.mxu0 0
        %1983 = vmatpush1.bf16.msra.mxu0 0
        %1984 = vmatprep.subr.bf16.mxu0 0
        %1985 = vmatpush1.bf16.msra.mxu0 0
        %1986 = vmatprep.subr.bf16.mxu0 0
        %1987 = vmatpush1.bf16.msra.mxu0 0
        %1988 = vmatprep.subr.bf16.mxu0 0
        %1989 = vmatpush1.bf16.msra.mxu0 0
        %1990 = vmatprep.subr.bf16.mxu0 0
        %1991 = vmatpush1.bf16.msra.mxu0 0
        %1992 = vmatprep.subr.bf16.mxu0 0
        %1993 = vmatpush1.bf16.msra.mxu0 0
        %1994 = vmatprep.subr.bf16.mxu0 0
        %1995 = vmatpush1.bf16.msra.mxu0 0
        %1996 = vmatprep.subr.bf16.mxu0 0
        %1997 = vmatpush1.bf16.msra.mxu0 0
        %1998 = vmatprep.subr.bf16.mxu0 0
        %1999 = vmatpush1.bf16.msra.mxu0 0
        %2000 = vmatprep.subr.bf16.mxu0 0
        %2001 = vmatpush1.bf16.msra.mxu0 0
        %2002 = vmatprep.subr.bf16.mxu0 0
        %2003 = vmatpush1.bf16.msra.mxu0 0
        %2004 = vmatprep.mubr.bf16.mxu0 0
        %2005 = vmatmul.mubr.bf16.gmra.mrb[0].mxu0 %v1967
        %v2006 = vpop.f32.mrb[0].mxu0
        %v2007 = vadd.f32 0.0, %v2006
        %v2008 = vpop.f32.mrb[0].mxu0
        %v2009 = vpop.f32.mrb[0].mxu0
        %v2010 = vpop.f32.mrb[0].mxu0
        %2011 = vdwg.mxu0
        %v2012 = vpack.c.bf16 %v2007, %v2007
        %s2013 = scalar_lea.vmem %s661, 8
        %v2014 = vld [vmem:[%s2013] sm:$0xf]
        %v2016 = vsel %vm1009, %v2012, 0
        %v2019 = vsel %vm1073, %v2014, 0
        %2021 = vmatprep.subr.bf16.mxu0 0
        %2022 = vmatpush1.bf16.msra.mxu0 %v2019
        %2023 = vmatprep.subr.bf16.mxu0 0
        %2024 = vmatpush1.bf16.msra.mxu0 0
        %2025 = vmatprep.subr.bf16.mxu0 0
        %2026 = vmatpush1.bf16.msra.mxu0 0
        %2027 = vmatprep.subr.bf16.mxu0 0
        %2028 = vmatpush1.bf16.msra.mxu0 0
        %2029 = vmatprep.subr.bf16.mxu0 0
        %2030 = vmatpush1.bf16.msra.mxu0 0
        %2031 = vmatprep.subr.bf16.mxu0 0
        %2032 = vmatpush1.bf16.msra.mxu0 0
        %2033 = vmatprep.subr.bf16.mxu0 0
        %2034 = vmatpush1.bf16.msra.mxu0 0
        %2035 = vmatprep.subr.bf16.mxu0 0
        %2036 = vmatpush1.bf16.msra.mxu0 0
        %2037 = vmatprep.subr.bf16.mxu0 0
        %2038 = vmatpush1.bf16.msra.mxu0 0
        %2039 = vmatprep.subr.bf16.mxu0 0
        %2040 = vmatpush1.bf16.msra.mxu0 0
        %2041 = vmatprep.subr.bf16.mxu0 0
        %2042 = vmatpush1.bf16.msra.mxu0 0
        %2043 = vmatprep.subr.bf16.mxu0 0
        %2044 = vmatpush1.bf16.msra.mxu0 0
        %2045 = vmatprep.subr.bf16.mxu0 0
        %2046 = vmatpush1.bf16.msra.mxu0 0
        %2047 = vmatprep.subr.bf16.mxu0 0
        %2048 = vmatpush1.bf16.msra.mxu0 0
        %2049 = vmatprep.subr.bf16.mxu0 0
        %2050 = vmatpush1.bf16.msra.mxu0 0
        %2051 = vmatprep.subr.bf16.mxu0 0
        %2052 = vmatpush1.bf16.msra.mxu0 0
        %2053 = vmatprep.mubr.bf16.mxu0 0
        %2054 = vmatmul.mubr.bf16.gmra.mrb[0].mxu0 %v2016
        %v2055 = vpop.f32.mrb[0].mxu0
        %v2056 = vadd.f32 0.0, %v2055
        %v2057 = vpop.f32.mrb[0].mxu0
        %v2058 = vpop.f32.mrb[0].mxu0
        %v2059 = vpop.f32.mrb[0].mxu0
        %2060 = vdwg.mxu0
        %v2061 = vadd.f32 %v1608, %v2056
        %s2062 = scalar_lea.vmem %s636, 48
        %v2063 = vld [vmem:[%s2062] sm:$0xf]
        %v2064 = vld [vmem:[%s2062 + $0x4] sm:$0xf]
        %v2065 = vld [vmem:[%s2062 + $0x8] sm:$0xf]
        %v2066 = vld [vmem:[%s2062 + $0xc] sm:$0xf]
        %v2071 = vunpack.c.l.b16 %v2063
        %v2072 = vunpack.c.l.b16 %v2064
        %v2073 = vunpack.c.l.b16 %v2065
        %v2074 = vunpack.c.l.b16 %v2066
        %v2075 = vpack.c.b16 %v2072, %v2071
        %v2076 = vpack.c.b16 %v2074, %v2073
        %2079 = vmatprep.subr.bf16.mxu0 0
        %2080 = vmatpush1.bf16.msra.mxu0 %v2075
        %2081 = vmatprep.subr.bf16.mxu0 0
        %2082 = vmatpush1.bf16.msra.mxu0 %v2076
        %2083 = vmatprep.subr.bf16.mxu0 0
        %2084 = vmatpush1.bf16.msra.mxu0 0
        %2085 = vmatprep.subr.bf16.mxu0 0
        %2086 = vmatpush1.bf16.msra.mxu0 0
        %2087 = vmatprep.subr.bf16.mxu0 0
        %2088 = vmatpush1.bf16.msra.mxu0 0
        %2089 = vmatprep.subr.bf16.mxu0 0
        %2090 = vmatpush1.bf16.msra.mxu0 0
        %2091 = vmatprep.subr.bf16.mxu0 0
        %2092 = vmatpush1.bf16.msra.mxu0 0
        %2093 = vmatprep.subr.bf16.mxu0 0
        %2094 = vmatpush1.bf16.msra.mxu0 0
        %2095 = vmatprep.subr.bf16.mxu0 0
        %2096 = vmatpush1.bf16.msra.mxu0 0
        %2097 = vmatprep.subr.bf16.mxu0 0
        %2098 = vmatpush1.bf16.msra.mxu0 0
        %2099 = vmatprep.subr.bf16.mxu0 0
        %2100 = vmatpush1.bf16.msra.mxu0 0
        %2101 = vmatprep.subr.bf16.mxu0 0
        %2102 = vmatpush1.bf16.msra.mxu0 0
        %2103 = vmatprep.subr.bf16.mxu0 0
        %2104 = vmatpush1.bf16.msra.mxu0 0
        %2105 = vmatprep.subr.bf16.mxu0 0
        %2106 = vmatpush1.bf16.msra.mxu0 0
        %2107 = vmatprep.subr.bf16.mxu0 0
        %2108 = vmatpush1.bf16.msra.mxu0 0
        %2109 = vmatprep.subr.bf16.mxu0 0
        %2110 = vmatpush1.bf16.msra.mxu0 0
        %2111 = vmatprep.mubr.bf16.mxu0 0
        %2112 = vmatmul.mubr.bf16.gmra.mrb[0].mxu0 %v735
        %v2113 = vpop.f32.mrb[0].mxu0
        %v2114 = vadd.f32 0.0, %v2113
        %v2115 = vpop.f32.mrb[0].mxu0
        %v2116 = vpop.f32.mrb[0].mxu0
        %v2117 = vpop.f32.mrb[0].mxu0
        %2118 = vdwg.mxu0
        %v2119 = vmul.f32 %v2114, %v692
        %s2120 = scalar_lea.vmem %s641, 48
        %v2121 = vld [vmem:[%s2120] sm:$0xf]
        %v2122 = vld [vmem:[%s2120 + $0x4] sm:$0xf]
        %v2123 = vld [vmem:[%s2120 + $0x8] sm:$0xf]
        %v2124 = vld [vmem:[%s2120 + $0xc] sm:$0xf]
        %v2129 = vunpack.c.l.b16 %v2121
        %v2130 = vunpack.c.l.b16 %v2122
        %v2131 = vunpack.c.l.b16 %v2123
        %v2132 = vunpack.c.l.b16 %v2124
        %v2133 = vpack.c.b16 %v2130, %v2129
        %v2134 = vpack.c.b16 %v2132, %v2131
        %2137 = vmatprep.subr.bf16.mxu0 0
        %2138 = vmatpush1.bf16.msra.mxu0 %v2133
        %2139 = vmatprep.subr.bf16.mxu0 0
        %2140 = vmatpush1.bf16.msra.mxu0 %v2134
        %2141 = vmatprep.subr.bf16.mxu0 0
        %2142 = vmatpush1.bf16.msra.mxu0 0
        %2143 = vmatprep.subr.bf16.mxu0 0
        %2144 = vmatpush1.bf16.msra.mxu0 0
        %2145 = vmatprep.subr.bf16.mxu0 0
        %2146 = vmatpush1.bf16.msra.mxu0 0
        %2147 = vmatprep.subr.bf16.mxu0 0
        %2148 = vmatpush1.bf16.msra.mxu0 0
        %2149 = vmatprep.subr.bf16.mxu0 0
        %2150 = vmatpush1.bf16.msra.mxu0 0
        %2151 = vmatprep.subr.bf16.mxu0 0
        %2152 = vmatpush1.bf16.msra.mxu0 0
        %2153 = vmatprep.subr.bf16.mxu0 0
        %2154 = vmatpush1.bf16.msra.mxu0 0
        %2155 = vmatprep.subr.bf16.mxu0 0
        %2156 = vmatpush1.bf16.msra.mxu0 0
        %2157 = vmatprep.subr.bf16.mxu0 0
        %2158 = vmatpush1.bf16.msra.mxu0 0
        %2159 = vmatprep.subr.bf16.mxu0 0
        %2160 = vmatpush1.bf16.msra.mxu0 0
        %2161 = vmatprep.subr.bf16.mxu0 0
        %2162 = vmatpush1.bf16.msra.mxu0 0
        %2163 = vmatprep.subr.bf16.mxu0 0
        %2164 = vmatpush1.bf16.msra.mxu0 0
        %2165 = vmatprep.subr.bf16.mxu0 0
        %2166 = vmatpush1.bf16.msra.mxu0 0
        %2167 = vmatprep.subr.bf16.mxu0 0
        %2168 = vmatpush1.bf16.msra.mxu0 0
        %2169 = vmatprep.mubr.bf16.mxu0 0
        %2170 = vmatmul.mubr.bf16.gmra.mrb[0].mxu0 %v735
        %v2171 = vpop.f32.mrb[0].mxu0
        %v2172 = vadd.f32 0.0, %v2171
        %v2173 = vpop.f32.mrb[0].mxu0
        %v2174 = vpop.f32.mrb[0].mxu0
        %v2175 = vpop.f32.mrb[0].mxu0
        %2176 = vdwg.mxu0
        %v2177 = vmul.f32 %v2172, %v693
        %v2178 = vadd.f32 %v2119, %v2177
        %s2179 = scalar_lea.vmem %s646, 48
        %v2180 = vld [vmem:[%s2179] sm:$0xf]
        %v2181 = vld [vmem:[%s2179 + $0x4] sm:$0xf]
        %v2182 = vld [vmem:[%s2179 + $0x8] sm:$0xf]
        %v2183 = vld [vmem:[%s2179 + $0xc] sm:$0xf]
        %v2188 = vunpack.c.l.b16 %v2180
        %v2189 = vunpack.c.l.b16 %v2181
        %v2190 = vunpack.c.l.b16 %v2182
        %v2191 = vunpack.c.l.b16 %v2183
        %v2192 = vpack.c.b16 %v2189, %v2188
        %v2193 = vpack.c.b16 %v2191, %v2190
        %2196 = vmatprep.subr.bf16.mxu0 0
        %2197 = vmatpush1.bf16.msra.mxu0 %v2192
        %2198 = vmatprep.subr.bf16.mxu0 0
        %2199 = vmatpush1.bf16.msra.mxu0 %v2193
        %2200 = vmatprep.subr.bf16.mxu0 0
        %2201 = vmatpush1.bf16.msra.mxu0 0
        %2202 = vmatprep.subr.bf16.mxu0 0
        %2203 = vmatpush1.bf16.msra.mxu0 0
        %2204 = vmatprep.subr.bf16.mxu0 0
        %2205 = vmatpush1.bf16.msra.mxu0 0
        %2206 = vmatprep.subr.bf16.mxu0 0
        %2207 = vmatpush1.bf16.msra.mxu0 0
        %2208 = vmatprep.subr.bf16.mxu0 0
        %2209 = vmatpush1.bf16.msra.mxu0 0
        %2210 = vmatprep.subr.bf16.mxu0 0
        %2211 = vmatpush1.bf16.msra.mxu0 0
        %2212 = vmatprep.subr.bf16.mxu0 0
        %2213 = vmatpush1.bf16.msra.mxu0 0
        %2214 = vmatprep.subr.bf16.mxu0 0
        %2215 = vmatpush1.bf16.msra.mxu0 0
        %2216 = vmatprep.subr.bf16.mxu0 0
        %2217 = vmatpush1.bf16.msra.mxu0 0
        %2218 = vmatprep.subr.bf16.mxu0 0
        %2219 = vmatpush1.bf16.msra.mxu0 0
        %2220 = vmatprep.subr.bf16.mxu0 0
        %2221 = vmatpush1.bf16.msra.mxu0 0
        %2222 = vmatprep.subr.bf16.mxu0 0
        %2223 = vmatpush1.bf16.msra.mxu0 0
        %2224 = vmatprep.subr.bf16.mxu0 0
        %2225 = vmatpush1.bf16.msra.mxu0 0
        %2226 = vmatprep.subr.bf16.mxu0 0
        %2227 = vmatpush1.bf16.msra.mxu0 0
        %2228 = vmatprep.mubr.bf16.mxu0 0
        %2229 = vmatmul.mubr.bf16.gmra.mrb[0].mxu0 %v735
        %v2230 = vpop.f32.mrb[0].mxu0
        %v2231 = vadd.f32 0.0, %v2230
        %v2232 = vpop.f32.mrb[0].mxu0
        %v2233 = vpop.f32.mrb[0].mxu0
        %v2234 = vpop.f32.mrb[0].mxu0
        %2235 = vdwg.mxu0
        %v2236 = vmul.f32 %v2231, %v692
        %s2237 = scalar_lea.vmem %s651, 48
        %v2238 = vld [vmem:[%s2237] sm:$0xf]
        %v2239 = vld [vmem:[%s2237 + $0x4] sm:$0xf]
        %v2240 = vld [vmem:[%s2237 + $0x8] sm:$0xf]
        %v2241 = vld [vmem:[%s2237 + $0xc] sm:$0xf]
        %v2246 = vunpack.c.l.b16 %v2238
        %v2247 = vunpack.c.l.b16 %v2239
        %v2248 = vunpack.c.l.b16 %v2240
        %v2249 = vunpack.c.l.b16 %v2241
        %v2250 = vpack.c.b16 %v2247, %v2246
        %v2251 = vpack.c.b16 %v2249, %v2248
        %2254 = vmatprep.subr.bf16.mxu0 0
        %2255 = vmatpush1.bf16.msra.mxu0 %v2250
        %2256 = vmatprep.subr.bf16.mxu0 0
        %2257 = vmatpush1.bf16.msra.mxu0 %v2251
        %2258 = vmatprep.subr.bf16.mxu0 0
        %2259 = vmatpush1.bf16.msra.mxu0 0
        %2260 = vmatprep.subr.bf16.mxu0 0
        %2261 = vmatpush1.bf16.msra.mxu0 0
        %2262 = vmatprep.subr.bf16.mxu0 0
        %2263 = vmatpush1.bf16.msra.mxu0 0
        %2264 = vmatprep.subr.bf16.mxu0 0
        %2265 = vmatpush1.bf16.msra.mxu0 0
        %2266 = vmatprep.subr.bf16.mxu0 0
        %2267 = vmatpush1.bf16.msra.mxu0 0
        %2268 = vmatprep.subr.bf16.mxu0 0
        %2269 = vmatpush1.bf16.msra.mxu0 0
        %2270 = vmatprep.subr.bf16.mxu0 0
        %2271 = vmatpush1.bf16.msra.mxu0 0
        %2272 = vmatprep.subr.bf16.mxu0 0
        %2273 = vmatpush1.bf16.msra.mxu0 0
        %2274 = vmatprep.subr.bf16.mxu0 0
        %2275 = vmatpush1.bf16.msra.mxu0 0
        %2276 = vmatprep.subr.bf16.mxu0 0
        %2277 = vmatpush1.bf16.msra.mxu0 0
        %2278 = vmatprep.subr.bf16.mxu0 0
        %2279 = vmatpush1.bf16.msra.mxu0 0
        %2280 = vmatprep.subr.bf16.mxu0 0
        %2281 = vmatpush1.bf16.msra.mxu0 0
        %2282 = vmatprep.subr.bf16.mxu0 0
        %2283 = vmatpush1.bf16.msra.mxu0 0
        %2284 = vmatprep.subr.bf16.mxu0 0
        %2285 = vmatpush1.bf16.msra.mxu0 0
        %2286 = vmatprep.mubr.bf16.mxu0 0
        %2287 = vmatmul.mubr.bf16.gmra.mrb[0].mxu0 %v735
        %v2288 = vpop.f32.mrb[0].mxu0
        %v2289 = vadd.f32 0.0, %v2288
        %v2290 = vpop.f32.mrb[0].mxu0
        %v2291 = vpop.f32.mrb[0].mxu0
        %v2292 = vpop.f32.mrb[0].mxu0
        %2293 = vdwg.mxu0
        %v2294 = vmul.f32 %v2289, %v693
        %v2295 = vadd.f32 %v2236, %v2294
        %s2296 = scalar_lea.vmem %s656, 48
        %v2297 = vld [vmem:[%s2296] sm:$0xf]
        %v2298 = vld [vmem:[%s2296 + $0x4] sm:$0xf]
        %v2299 = vld [vmem:[%s2296 + $0x8] sm:$0xf]
        %v2300 = vld [vmem:[%s2296 + $0xc] sm:$0xf]
        %v2305 = vunpack.c.l.b16 %v2297
        %v2306 = vunpack.c.l.b16 %v2298
        %v2307 = vunpack.c.l.b16 %v2299
        %v2308 = vunpack.c.l.b16 %v2300
        %v2309 = vpack.c.b16 %v2306, %v2305
        %v2310 = vpack.c.b16 %v2308, %v2307
        %2313 = vmatprep.subr.bf16.mxu0 0
        %2314 = vmatpush1.bf16.msra.mxu0 %v2309
        %2315 = vmatprep.subr.bf16.mxu0 0
        %2316 = vmatpush1.bf16.msra.mxu0 %v2310
        %2317 = vmatprep.subr.bf16.mxu0 0
        %2318 = vmatpush1.bf16.msra.mxu0 0
        %2319 = vmatprep.subr.bf16.mxu0 0
        %2320 = vmatpush1.bf16.msra.mxu0 0
        %2321 = vmatprep.subr.bf16.mxu0 0
        %2322 = vmatpush1.bf16.msra.mxu0 0
        %2323 = vmatprep.subr.bf16.mxu0 0
        %2324 = vmatpush1.bf16.msra.mxu0 0
        %2325 = vmatprep.subr.bf16.mxu0 0
        %2326 = vmatpush1.bf16.msra.mxu0 0
        %2327 = vmatprep.subr.bf16.mxu0 0
        %2328 = vmatpush1.bf16.msra.mxu0 0
        %2329 = vmatprep.subr.bf16.mxu0 0
        %2330 = vmatpush1.bf16.msra.mxu0 0
        %2331 = vmatprep.subr.bf16.mxu0 0
        %2332 = vmatpush1.bf16.msra.mxu0 0
        %2333 = vmatprep.subr.bf16.mxu0 0
        %2334 = vmatpush1.bf16.msra.mxu0 0
        %2335 = vmatprep.subr.bf16.mxu0 0
        %2336 = vmatpush1.bf16.msra.mxu0 0
        %2337 = vmatprep.subr.bf16.mxu0 0
        %2338 = vmatpush1.bf16.msra.mxu0 0
        %2339 = vmatprep.subr.bf16.mxu0 0
        %2340 = vmatpush1.bf16.msra.mxu0 0
        %2341 = vmatprep.subr.bf16.mxu0 0
        %2342 = vmatpush1.bf16.msra.mxu0 0
        %2343 = vmatprep.subr.bf16.mxu0 0
        %2344 = vmatpush1.bf16.msra.mxu0 0
        %2345 = vmatprep.mubr.bf16.mxu0 0
        %2346 = vmatmul.mubr.bf16.gmra.mrb[0].mxu0 %v735
        %v2347 = vpop.f32.mrb[0].mxu0
        %v2348 = vadd.f32 0.0, %v2347
        %v2349 = vpop.f32.mrb[0].mxu0
        %v2350 = vpop.f32.mrb[0].mxu0
        %v2351 = vpop.f32.mrb[0].mxu0
        %2352 = vdwg.mxu0
        %v2353 = vpack.c.bf16 %v2178, %v2178
        %v2354 = vpack.c.bf16 %v2295, %v2295
        %v2356 = vsel %vm1009, %v2353, 0
        %v2359 = vsel %vm1009, %v2354, 0
        %2361 = vmatprep.subr.bf16.mxu0 0
        %2362 = vmatpush1.bf16.xpose.msra.mxu0 %v2359
        %2363 = vmatprep.subr.bf16.mxu0 0
        %2364 = vmatpush1.bf16.xpose.msra.mxu0 0
        %2365 = vmatprep.subr.bf16.mxu0 0
        %2366 = vmatpush1.bf16.xpose.msra.mxu0 0
        %2367 = vmatprep.subr.bf16.mxu0 0
        %2368 = vmatpush1.bf16.xpose.msra.mxu0 0
        %2369 = vmatprep.subr.bf16.mxu0 0
        %2370 = vmatpush1.bf16.xpose.msra.mxu0 0
        %2371 = vmatprep.subr.bf16.mxu0 0
        %2372 = vmatpush1.bf16.xpose.msra.mxu0 0
        %2373 = vmatprep.subr.bf16.mxu0 0
        %2374 = vmatpush1.bf16.xpose.msra.mxu0 0
        %2375 = vmatprep.subr.bf16.mxu0 0
        %2376 = vmatpush1.bf16.xpose.msra.mxu0 0
        %2377 = vmatprep.subr.bf16.mxu0 0
        %2378 = vmatpush1.bf16.xpose.msra.mxu0 0
        %2379 = vmatprep.subr.bf16.mxu0 0
        %2380 = vmatpush1.bf16.xpose.msra.mxu0 0
        %2381 = vmatprep.subr.bf16.mxu0 0
        %2382 = vmatpush1.bf16.xpose.msra.mxu0 0
        %2383 = vmatprep.subr.bf16.mxu0 0
        %2384 = vmatpush1.bf16.xpose.msra.mxu0 0
        %2385 = vmatprep.subr.bf16.mxu0 0
        %2386 = vmatpush1.bf16.xpose.msra.mxu0 0
        %2387 = vmatprep.subr.bf16.mxu0 0
        %2388 = vmatpush1.bf16.xpose.msra.mxu0 0
        %2389 = vmatprep.subr.bf16.mxu0 0
        %2390 = vmatpush1.bf16.xpose.msra.mxu0 0
        %2391 = vmatprep.subr.bf16.mxu0 0
        %2392 = vmatpush1.bf16.xpose.msra.mxu0 0
        %2393 = vmatprep.mubr.bf16.mxu0 0
        %2394 = vmatmul.mubr.bf16.gmra.mrb[0].mxu0 %v2356
        %v2395 = vpop.f32.mrb[0].mxu0
        %v2396 = vadd.f32 0.0, %v2395
        %v2397 = vpop.f32.mrb[0].mxu0
        %v2398 = vpop.f32.mrb[0].mxu0
        %v2399 = vpop.f32.mrb[0].mxu0
        %2400 = vdwg.mxu0
        %v2401 = vsel %vm698, %v2396, -1e+30
        %v2402 = vsel %vm1009, %v2401, -inf
        %2403 = vmax.xlane.f32.xlu0 %v2402
        %v2404 = vpop.xlane.xlu0 %2403
        %v2405 = vsub.f32 %v2401, %v2404
        %v2406 = vmul.f32 %v2405, 1.442695
        %v2407 = vpow.pop %v2406
        %v2408 = vsel %vm1009, %v2407, 0.0
        %2409 = vadd.xlane.f32.xlu0 %v2408
        %v2410 = vpop.xlane.xlu0 %2409
        %v2411 = vrcp.pop %v2410
        %v2412 = vmul.f32 %v2407, %v2411
        %v2413 = vpack.c.bf16 %v2412, %v2412
        %v2414 = vpack.c.bf16 %v2348, %v2348
        %v2416 = vsel %vm1009, %v2413, 0
        %v2419 = vsel %vm1073, %v2414, 0
        %2421 = vmatprep.subr.bf16.mxu0 0
        %2422 = vmatpush1.bf16.msra.mxu0 %v2419
        %2423 = vmatprep.subr.bf16.mxu0 0
        %2424 = vmatpush1.bf16.msra.mxu0 0
        %2425 = vmatprep.subr.bf16.mxu0 0
        %2426 = vmatpush1.bf16.msra.mxu0 0
        %2427 = vmatprep.subr.bf16.mxu0 0
        %2428 = vmatpush1.bf16.msra.mxu0 0
        %2429 = vmatprep.subr.bf16.mxu0 0
        %2430 = vmatpush1.bf16.msra.mxu0 0
        %2431 = vmatprep.subr.bf16.mxu0 0
        %2432 = vmatpush1.bf16.msra.mxu0 0
        %2433 = vmatprep.subr.bf16.mxu0 0
        %2434 = vmatpush1.bf16.msra.mxu0 0
        %2435 = vmatprep.subr.bf16.mxu0 0
        %2436 = vmatpush1.bf16.msra.mxu0 0
        %2437 = vmatprep.subr.bf16.mxu0 0
        %2438 = vmatpush1.bf16.msra.mxu0 0
        %2439 = vmatprep.subr.bf16.mxu0 0
        %2440 = vmatpush1.bf16.msra.mxu0 0
        %2441 = vmatprep.subr.bf16.mxu0 0
        %2442 = vmatpush1.bf16.msra.mxu0 0
        %2443 = vmatprep.subr.bf16.mxu0 0
        %2444 = vmatpush1.bf16.msra.mxu0 0
        %2445 = vmatprep.subr.bf16.mxu0 0
        %2446 = vmatpush1.bf16.msra.mxu0 0
        %2447 = vmatprep.subr.bf16.mxu0 0
        %2448 = vmatpush1.bf16.msra.mxu0 0
        %2449 = vmatprep.subr.bf16.mxu0 0
        %2450 = vmatpush1.bf16.msra.mxu0 0
        %2451 = vmatprep.subr.bf16.mxu0 0
        %2452 = vmatpush1.bf16.msra.mxu0 0
        %2453 = vmatprep.mubr.bf16.mxu0 0
        %2454 = vmatmul.mubr.bf16.gmra.mrb[0].mxu0 %v2416
        %v2455 = vpop.f32.mrb[0].mxu0
        %v2456 = vadd.f32 0.0, %v2455
        %v2457 = vpop.f32.mrb[0].mxu0
        %v2458 = vpop.f32.mrb[0].mxu0
        %v2459 = vpop.f32.mrb[0].mxu0
        %2460 = vdwg.mxu0
        %v2461 = vpack.c.bf16 %v2456, %v2456
        %s2462 = scalar_lea.vmem %s661, 12
        %v2463 = vld [vmem:[%s2462] sm:$0xf]
        %v2465 = vsel %vm1009, %v2461, 0
        %v2468 = vsel %vm1073, %v2463, 0
        %2470 = vmatprep.subr.bf16.mxu0 0
        %2471 = vmatpush1.bf16.msra.mxu0 %v2468
        %2472 = vmatprep.subr.bf16.mxu0 0
        %2473 = vmatpush1.bf16.msra.mxu0 0
        %2474 = vmatprep.subr.bf16.mxu0 0
        %2475 = vmatpush1.bf16.msra.mxu0 0
        %2476 = vmatprep.subr.bf16.mxu0 0
        %2477 = vmatpush1.bf16.msra.mxu0 0
        %2478 = vmatprep.subr.bf16.mxu0 0
        %2479 = vmatpush1.bf16.msra.mxu0 0
        %2480 = vmatprep.subr.bf16.mxu0 0
        %2481 = vmatpush1.bf16.msra.mxu0 0
        %2482 = vmatprep.subr.bf16.mxu0 0
        %2483 = vmatpush1.bf16.msra.mxu0 0
        %2484 = vmatprep.subr.bf16.mxu0 0
        %2485 = vmatpush1.bf16.msra.mxu0 0
        %2486 = vmatprep.subr.bf16.mxu0 0
        %2487 = vmatpush1.bf16.msra.mxu0 0
        %2488 = vmatprep.subr.bf16.mxu0 0
        %2489 = vmatpush1.bf16.msra.mxu0 0
        %2490 = vmatprep.subr.bf16.mxu0 0
        %2491 = vmatpush1.bf16.msra.mxu0 0
        %2492 = vmatprep.subr.bf16.mxu0 0
        %2493 = vmatpush1.bf16.msra.mxu0 0
        %2494 = vmatprep.subr.bf16.mxu0 0
        %2495 = vmatpush1.bf16.msra.mxu0 0
        %2496 = vmatprep.subr.bf16.mxu0 0
        %2497 = vmatpush1.bf16.msra.mxu0 0
        %2498 = vmatprep.subr.bf16.mxu0 0
        %2499 = vmatpush1.bf16.msra.mxu0 0
        %2500 = vmatprep.subr.bf16.mxu0 0
        %2501 = vmatpush1.bf16.msra.mxu0 0
        %2502 = vmatprep.mubr.bf16.mxu0 0
        %2503 = vmatmul.mubr.bf16.gmra.mrb[0].mxu0 %v2465
        %v2504 = vpop.f32.mrb[0].mxu0
        %v2505 = vadd.f32 0.0, %v2504
        %v2506 = vpop.f32.mrb[0].mxu0
        %v2507 = vpop.f32.mrb[0].mxu0
        %v2508 = vpop.f32.mrb[0].mxu0
        %2509 = vdwg.mxu0
        %v2510 = vadd.f32 %v2061, %v2505
        %v2511 = vadd.f32 %v691, %v2510
        %v2512 = vld [vmem:[%s682] sm:$0x1]
        %v2513 = vmul.f32 %v2511, %v2511
        %v2514 = vsel %vm701, %v2513, 0.0
        %2515 = vadd.xlane.f32.xlu0 %v2514
        %v2516 = vpop.xlane.xlu0 %2515
        %v2517 = vmul.f32 %v2516, %v705
        %v2518 = vadd.f32 %v2517, 1e-06
        %v2519 = vrsqrt.pop %v2518
        %v2520 = vmul.f32 %v2511, %v2519
        %v2522 = vlaneseq
        %v2523 = vshrl.u32 %v2522, 7
        %v2524 = vsub.s32 0, %v2523
        %v2525 = vrot.slane %v2512, %v2524
        %v2527 = vmul.f32 %v2520, %v2525
        %v2528 = vpack.c.bf16 %v2527, %v2527
        %v2529 = vld [vmem:[%s666] sm:$0xf]
        %v2530 = vld [vmem:[%s666 + $0x4] sm:$0xf]
        %v2531 = vld [vmem:[%s666 + $0x8] sm:$0xf]
        %v2532 = vld [vmem:[%s666 + $0xc] sm:$0xf]
        %v2537 = vunpack.c.l.b16 %v2529
        %v2538 = vunpack.c.l.b16 %v2530
        %v2539 = vunpack.c.l.b16 %v2531
        %v2540 = vunpack.c.l.b16 %v2532
        %v2541 = vpack.c.b16 %v2538, %v2537
        %v2542 = vpack.c.b16 %v2540, %v2539
        %v2546 = vsel %vm701, %v2528, 0
        %2548 = vmatprep.subr.bf16.mxu0 0
        %2549 = vmatpush1.bf16.msra.mxu0 %v2541
        %2550 = vmatprep.subr.bf16.mxu0 0
        %2551 = vmatpush1.bf16.msra.mxu0 %v2542
        %2552 = vmatprep.subr.bf16.mxu0 0
        %2553 = vmatpush1.bf16.msra.mxu0 0
        %2554 = vmatprep.subr.bf16.mxu0 0
        %2555 = vmatpush1.bf16.msra.mxu0 0
        %2556 = vmatprep.subr.bf16.mxu0 0
        %2557 = vmatpush1.bf16.msra.mxu0 0
        %2558 = vmatprep.subr.bf16.mxu0 0
        %2559 = vmatpush1.bf16.msra.mxu0 0
        %2560 = vmatprep.subr.bf16.mxu0 0
        %2561 = vmatpush1.bf16.msra.mxu0 0
        %2562 = vmatprep.subr.bf16.mxu0 0
        %2563 = vmatpush1.bf16.msra.mxu0 0
        %2564 = vmatprep.subr.bf16.mxu0 0
        %2565 = vmatpush1.bf16.msra.mxu0 0
        %2566 = vmatprep.subr.bf16.mxu0 0
        %2567 = vmatpush1.bf16.msra.mxu0 0
        %2568 = vmatprep.subr.bf16.mxu0 0
        %2569 = vmatpush1.bf16.msra.mxu0 0
        %2570 = vmatprep.subr.bf16.mxu0 0
        %2571 = vmatpush1.bf16.msra.mxu0 0
        %2572 = vmatprep.subr.bf16.mxu0 0
        %2573 = vmatpush1.bf16.msra.mxu0 0
        %2574 = vmatprep.subr.bf16.mxu0 0
        %2575 = vmatpush1.bf16.msra.mxu0 0
        %2576 = vmatprep.subr.bf16.mxu0 0
        %2577 = vmatpush1.bf16.msra.mxu0 0
        %2578 = vmatprep.subr.bf16.mxu0 0
        %2579 = vmatpush1.bf16.msra.mxu0 0
        %2580 = vmatprep.mubr.bf16.mxu0 0
        %2581 = vmatmul.mubr.bf16.gmra.mrb[0].mxu0 %v2546
        %v2582 = vpop.f32.mrb[0].mxu0
        %v2583 = vadd.f32 0.0, %v2582
        %v2584 = vpop.f32.mrb[0].mxu0
        %v2585 = vpop.f32.mrb[0].mxu0
        %v2586 = vpop.f32.mrb[0].mxu0
        %2587 = vdwg.mxu0
        %v2588 = vld [vmem:[%s671] sm:$0xf]
        %v2589 = vld [vmem:[%s671 + $0x4] sm:$0xf]
        %v2590 = vld [vmem:[%s671 + $0x8] sm:$0xf]
        %v2591 = vld [vmem:[%s671 + $0xc] sm:$0xf]
        %v2596 = vunpack.c.l.b16 %v2588
        %v2597 = vunpack.c.l.b16 %v2589
        %v2598 = vunpack.c.l.b16 %v2590
        %v2599 = vunpack.c.l.b16 %v2591
        %v2600 = vpack.c.b16 %v2597, %v2596
        %v2601 = vpack.c.b16 %v2599, %v2598
        %2604 = vmatprep.subr.bf16.mxu0 0
        %2605 = vmatpush1.bf16.msra.mxu0 %v2600
        %2606 = vmatprep.subr.bf16.mxu0 0
        %2607 = vmatpush1.bf16.msra.mxu0 %v2601
        %2608 = vmatprep.subr.bf16.mxu0 0
        %2609 = vmatpush1.bf16.msra.mxu0 0
        %2610 = vmatprep.subr.bf16.mxu0 0
        %2611 = vmatpush1.bf16.msra.mxu0 0
        %2612 = vmatprep.subr.bf16.mxu0 0
        %2613 = vmatpush1.bf16.msra.mxu0 0
        %2614 = vmatprep.subr.bf16.mxu0 0
        %2615 = vmatpush1.bf16.msra.mxu0 0
        %2616 = vmatprep.subr.bf16.mxu0 0
        %2617 = vmatpush1.bf16.msra.mxu0 0
        %2618 = vmatprep.subr.bf16.mxu0 0
        %2619 = vmatpush1.bf16.msra.mxu0 0
        %2620 = vmatprep.subr.bf16.mxu0 0
        %2621 = vmatpush1.bf16.msra.mxu0 0
        %2622 = vmatprep.subr.bf16.mxu0 0
        %2623 = vmatpush1.bf16.msra.mxu0 0
        %2624 = vmatprep.subr.bf16.mxu0 0
        %2625 = vmatpush1.bf16.msra.mxu0 0
        %2626 = vmatprep.subr.bf16.mxu0 0
        %2627 = vmatpush1.bf16.msra.mxu0 0
        %2628 = vmatprep.subr.bf16.mxu0 0
        %2629 = vmatpush1.bf16.msra.mxu0 0
        %2630 = vmatprep.subr.bf16.mxu0 0
        %2631 = vmatpush1.bf16.msra.mxu0 0
        %2632 = vmatprep.subr.bf16.mxu0 0
        %2633 = vmatpush1.bf16.msra.mxu0 0
        %2634 = vmatprep.subr.bf16.mxu0 0
        %2635 = vmatpush1.bf16.msra.mxu0 0
        %2636 = vmatprep.mubr.bf16.mxu0 0
        %2637 = vmatmul.mubr.bf16.gmra.mrb[0].mxu0 %v2546
        %v2638 = vpop.f32.mrb[0].mxu0
        %v2639 = vadd.f32 0.0, %v2638
        %v2640 = vpop.f32.mrb[0].mxu0
        %v2641 = vpop.f32.mrb[0].mxu0
        %v2642 = vpop.f32.mrb[0].mxu0
        %2643 = vdwg.mxu0
        %v2644 = vxor.u32 %v2583, 2147483648
        %v2645 = vmul.f32 %v2644, 1.442695
        %v2646 = vpow.pop %v2645
        %v2647 = vadd.f32 %v2646, 1.0
        %v2648 = vrcp.pop %v2647
        %v2649 = vmul.f32 1.0, %v2648
        %v2650 = vmul.f32 %v2583, %v2649
        %v2651 = vmul.f32 %v2650, %v2639
        %v2652 = vpack.c.bf16 %v2651, %v2651
        %v2653 = vld [vmem:[%s676] sm:$0xf]
        %v2654 = vld [vmem:[%s676 + $0x4] sm:$0xf]
        %v2655 = vld [vmem:[%s676 + $0x8] sm:$0xf]
        %v2656 = vld [vmem:[%s676 + $0xc] sm:$0xf]
        %v2657 = vld [vmem:[%s676 + $0x10] sm:$0xf]
        %v2658 = vld [vmem:[%s676 + $0x14] sm:$0xf]
        %v2659 = vld [vmem:[%s676 + $0x18] sm:$0xf]
        %v2660 = vld [vmem:[%s676 + $0x1c] sm:$0xf]
        %v2669 = vunpack.c.l.b16 %v2653
        %v2670 = vunpack.c.l.b16 %v2654
        %v2671 = vunpack.c.l.b16 %v2655
        %v2672 = vunpack.c.l.b16 %v2656
        %v2673 = vunpack.c.l.b16 %v2657
        %v2674 = vunpack.c.l.b16 %v2658
        %v2675 = vunpack.c.l.b16 %v2659
        %v2676 = vunpack.c.l.b16 %v2660
        %v2677 = vpack.c.b16 %v2670, %v2669
        %v2678 = vpack.c.b16 %v2672, %v2671
        %v2679 = vpack.c.b16 %v2674, %v2673
        %v2680 = vpack.c.b16 %v2676, %v2675
        %vm2685 = vcmask 523264
        %v2687 = vsel %vm2685, %v2652, 0
        %2689 = vmatprep.subr.bf16.mxu0 0
        %2690 = vmatpush1.bf16.msra.mxu0 %v2677
        %2691 = vmatprep.subr.bf16.mxu0 0
        %2692 = vmatpush1.bf16.msra.mxu0 %v2678
        %2693 = vmatprep.subr.bf16.mxu0 0
        %2694 = vmatpush1.bf16.msra.mxu0 %v2679
        %2695 = vmatprep.subr.bf16.mxu0 0
        %2696 = vmatpush1.bf16.msra.mxu0 %v2680
        %2697 = vmatprep.subr.bf16.mxu0 0
        %2698 = vmatpush1.bf16.msra.mxu0 0
        %2699 = vmatprep.subr.bf16.mxu0 0
        %2700 = vmatpush1.bf16.msra.mxu0 0
        %2701 = vmatprep.subr.bf16.mxu0 0
        %2702 = vmatpush1.bf16.msra.mxu0 0
        %2703 = vmatprep.subr.bf16.mxu0 0
        %2704 = vmatpush1.bf16.msra.mxu0 0
        %2705 = vmatprep.subr.bf16.mxu0 0
        %2706 = vmatpush1.bf16.msra.mxu0 0
        %2707 = vmatprep.subr.bf16.mxu0 0
        %2708 = vmatpush1.bf16.msra.mxu0 0
        %2709 = vmatprep.subr.bf16.mxu0 0
        %2710 = vmatpush1.bf16.msra.mxu0 0
        %2711 = vmatprep.subr.bf16.mxu0 0
        %2712 = vmatpush1.bf16.msra.mxu0 0
        %2713 = vmatprep.subr.bf16.mxu0 0
        %2714 = vmatpush1.bf16.msra.mxu0 0
        %2715 = vmatprep.subr.bf16.mxu0 0
        %2716 = vmatpush1.bf16.msra.mxu0 0
        %2717 = vmatprep.subr.bf16.mxu0 0
        %2718 = vmatpush1.bf16.msra.mxu0 0
        %2719 = vmatprep.subr.bf16.mxu0 0
        %2720 = vmatpush1.bf16.msra.mxu0 0
        %2721 = vmatprep.mubr.bf16.mxu0 0
        %2722 = vmatmul.mubr.bf16.gmra.mrb[0].mxu0 %v2687
        %v2723 = vpop.f32.mrb[0].mxu0
        %v2724 = vadd.f32 0.0, %v2723
        %v2725 = vpop.f32.mrb[0].mxu0
        %v2726 = vpop.f32.mrb[0].mxu0
        %v2727 = vpop.f32.mrb[0].mxu0
        %2728 = vdwg.mxu0
        %v2729 = vadd.f32 %v2511, %v2724
        %2730 = vst.msk [vmem:[%s627] sm:$0xff] %vm701, %v2729
        %s2731 = sand.u32 %s402, 1
        %s2732 = scalar_lea.sflag [#allocation3], %s2731
        %s2733 = sand.u32 %s402, 1
        %s2734 = smul.addr %s2733, 8
        %s2735 = scalar_lea.vmem [#allocation2], %s2734
        // Predicated region
        $region81: #{llama_layers_forward.1} parent=75 // pred_check
          %p2736 = pneg %p412
        $region82: #{llama_layers_forward.1} parent=75 // pred_check_branch
          %2738 = sbr.rel (%p2736) target = $region84
        $region83: #{llama_layers_forward.1} parent=75 // pred_region
          %s2740 = ssub.s32 128, 128
          %2741 = vsyncadd %s2732, %s2740
          %s2742 = smul.addr %s32, 128
          %s2743 = scalar_lea.hbm %s14, %s2742
          %s2745 = sshll.u32 %s2735, 4
          %s2746 = int_to_ptr.vmem [resolvable:$true] %s2745
          %2748 = dma.vmem_to_hbm [thread:$0]  %s2746, 128, %s2743, %s2732
        $region84: #{llama_layers_forward.1} parent=75 // pred_fallthru
          _
      $region76: #{llama_layers_forward.1} parent=5 // pred_fallthru
        _
      %p2749 = scmp.le.s32.totalorder 2, %s23
      // Predicated region
      $region85: #{llama_layers_forward.1} parent=5 // pred_check
        %p2750 = pneg %p2749
      $region86: #{llama_layers_forward.1} parent=5 // pred_check_branch
        %2752 = sbr.rel (%p2750) target = $region88
      $region87: #{llama_layers_forward.1} parent=5 // pred_region
        %s2753 = ssub.s32 %s23, 2
        // Predicated region
        $region89: #{llama_layers_forward.1} parent=87 // pred_check
          %p2754 = pneg %p418
        $region90: #{llama_layers_forward.1} parent=87 // pred_check_branch
          %2756 = sbr.rel (%p2754) target = $region92
        $region91: #{llama_layers_forward.1} parent=87 // pred_region
          %s2757 = sand.u32 %s403, 1
          %s2758 = scalar_lea.sflag [#allocation3], %s2757
          %s2759 = sand.u32 %s403, 1
          %s2760 = smul.addr %s2759, 8
          %s2761 = scalar_lea.vmem [#allocation2], %s2760
          %2762 = dma.done %s2758, 128
        $region92: #{llama_layers_forward.1} parent=87 // pred_fallthru
          _
      $region88: #{llama_layers_forward.1} parent=5 // pred_fallthru
        _
    $region6: #{llama_layers_forward.1} parent=1 // loop_footer
      %s27 = sadd.s32 1, %s23
    $region7: #{llama_layers_forward.1} parent=1 // loop_footer_branch
      %22 = sbr.rel target = $region3
    $region8: #{llama_layers_forward.1} parent=1 // loop_exit
      _
    %2763 = vsyncpa [#allocation3], 1
    %s2764 = scalar_lea.sflag [#allocation3], 1
    %2765 = vsyncpa %s2764, 1

</llo_original>
